<compile_context>
chip_gen: v6e
topology: v6e:2x2x1
jax: 0.10.0
libtpu: 0.0.40
codegen_flags: <defaults>
</compile_context>

<pallas_src>
import functools
import math

import jax
import jax.numpy as jnp
from jax import lax
from jax.experimental import pallas as pl
from jax.experimental.pallas import tpu as pltpu

MIB = 1 << 20


def _layer_norm(x, gamma, beta, eps=1e-5):
    mu = jnp.mean(x, axis=-1, keepdims=True)
    var = jnp.mean(jnp.square(x - mu), axis=-1, keepdims=True)
    return (x - mu) * lax.rsqrt(var + eps) * gamma + beta


def transformer_block_kernel(
    x_seq_ref,                     # (1, t, k)    f32  full sequence (j==0 only)
    x_tile_ref,                    # (1, TQ, k)   f32  current query tile
    wq_ref, wk_ref, wv_ref,        # (k, k)       bf16 pre-transposed: y = x @ W
    wu_ref,                        # (k, k)       bf16 pre-transposed
    bu_ref,                        # (1, k)       f32
    g1_ref, b1_ref,                # (1, k)       f32  layernorm1
    wf1_ref,                       # (k, 4k)      bf16 pre-transposed
    bf1_ref,                       # (1, 4k)      f32
    wf2_ref,                       # (4k, k)      bf16 pre-transposed
    bf2_ref,                       # (1, k)       f32
    g2_ref, b2_ref,                # (1, k)       f32  layernorm2
    o_ref,                         # (1, TQ, k)   f32
    k_cache, v_cache,              # (h, t, d)    bf16 VMEM scratch
    *, heads, head_dim, seq_len, proj_chunk,
):
    j = pl.program_id(1)

    # ---- K / V projection for the whole sequence, once per batch element. ----
    # Chunked so live data per matmul is (proj_chunk, k); heads are written
    # straight into their cache slices (no (t, k) stack intermediate).
    @pl.when(j == 0)
    def _():
        for c in range(seq_len // proj_chunk):                 # static unroll
            r0 = c * proj_chunk
            xb = x_seq_ref[0, r0:r0 + proj_chunk, :].astype(jnp.bfloat16)
            kk = jnp.dot(xb, wk_ref[...], preferred_element_type=jnp.float32)
            vv = jnp.dot(xb, wv_ref[...], preferred_element_type=jnp.float32)
            kkb = kk.astype(jnp.bfloat16)
            vvb = vv.astype(jnp.bfloat16)
            for h in range(heads):
                lo = h * head_dim
                k_cache[h, r0:r0 + proj_chunk, :] = kkb[:, lo:lo + head_dim]
                v_cache[h, r0:r0 + proj_chunk, :] = vvb[:, lo:lo + head_dim]

    # ---- current query tile ----
    x_tile = x_tile_ref[0]                                     # (TQ, k) f32
    xb_tile = x_tile.astype(jnp.bfloat16)

    q = jnp.dot(xb_tile, wq_ref[...], preferred_element_type=jnp.float32)
    q = q * (1.0 / math.sqrt(head_dim))    # matches torch: dot / sqrt(k // heads)
    qb = q.astype(jnp.bfloat16)                                # (TQ, k)

    # ---- attention, one head at a time ----
    # Per-head Q lane-slices feed the MXU directly (no stacked (h,TQ,d) array);
    # live f32 score state is one head's (TQ, t).
    # Production note (v7x, long t): replace this with a flash-style online
    # softmax over KV tiles to bound scores to (TQ, TK).
    ctx_heads = []
    for h in range(heads):
        lo = h * head_dim
        qh = qb[:, lo:lo + head_dim]                           # (TQ, d) bf16
        s = lax.dot_general(qh, k_cache[h], (((1,), (1,)), ((), ())),
                            preferred_element_type=jnp.float32)  # (TQ, t)
        m = jnp.max(s, axis=-1, keepdims=True)
        e = jnp.exp(s - m)
        p = e * pl.reciprocal(jnp.sum(e, axis=-1, keepdims=True), approx=True)
        ctx_heads.append(jnp.dot(p.astype(jnp.bfloat16), v_cache[h],
                                 preferred_element_type=jnp.float32))  # (TQ, d)

    # ---- unify heads: one lane-concat, then a single full-k MXU matmul ----
    ctx = jnp.concatenate(ctx_heads, axis=-1).astype(jnp.bfloat16)     # (TQ, k)
    attended = jnp.dot(ctx, wu_ref[...],
                       preferred_element_type=jnp.float32) + bu_ref[...]

    # ---- residual + LayerNorm 1 (f32) ----
    x1 = _layer_norm(attended + x_tile, g1_ref[...], b1_ref[...])

    # ---- feed-forward: Linear(k, 4k) -> ReLU -> Linear(4k, k) ----
    # Production note (v7x, large k): stream wf1/wf2 tiles over a third grid
    # axis instead of keeping them resident.
    hidden = jnp.dot(x1.astype(jnp.bfloat16), wf1_ref[...],
                     preferred_element_type=jnp.float32) + bf1_ref[...]
    hidden = jnp.maximum(hidden, 0.0)
    ff = jnp.dot(hidden.astype(jnp.bfloat16), wf2_ref[...],
                 preferred_element_type=jnp.float32) + bf2_ref[...]

    # ---- residual + LayerNorm 2 ----
    o_ref[0] = _layer_norm(ff + x1, g2_ref[...], b2_ref[...]).astype(o_ref.dtype)


def _const_index_map(nd):
    def idx(i, j):
        return (0,) * nd
    return idx


def transformer_block(x, params, *, heads, block_t=None,
                      single_buffer_invariants=True):
    b, t, k = x.shape
    assert k % heads == 0
    head_dim = k // heads

    # block_t: 256 on v6e (amortizes MXU drain / per-step overhead, 128 MiB
    # VMEM), 128 on v5e (4x128^2 MXU) and v7x (64 MiB VMEM).
    if block_t is None:
        try:
            kind = jax.devices()[0].device_kind.lower()
        except Exception:
            kind = ""
        block_t = min(t, 256 if "v6" in kind else 128)
    if t % block_t:
        block_t = math.gcd(t, block_t)
    nq = t // block_t

    proj_chunk = min(t, 256)
    if t % proj_chunk:
        proj_chunk = math.gcd(t, proj_chunk)

    (wq, wk, wv, wu, bu, g1, b1, wf1, bf1, wf2, bf2, g2, b2) = params

    # Host-side layout plumbing: PyTorch Linear stores W as (out, in) and
    # computes y = x @ W.T -> pre-transpose; matmul operands in bf16 (f32
    # accumulation in-kernel), biases / LN params stay f32.
    wq_t = wq.T.astype(jnp.bfloat16)
    wk_t = wk.T.astype(jnp.bfloat16)
    wv_t = wv.T.astype(jnp.bfloat16)
    wu_t = wu.T.astype(jnp.bfloat16)
    wf1_t = wf1.T.astype(jnp.bfloat16)
    wf2_t = wf2.T.astype(jnp.bfloat16)

    weights = (wq_t, wk_t, wv_t, wu_t, bu, g1, b1,
               wf1_t, bf1, wf2_t, bf2, g2, b2)

    kernel = functools.partial(transformer_block_kernel, heads=heads,
                               head_dim=head_dim, seq_len=t,
                               proj_chunk=proj_chunk)

    flops = (2 * b * t * k * k * 4                 # q / k / v / unify
             + 2 * b * t * k * (4 * k) * 2         # FFN
             + 2 * b * heads * t * t * head_dim * 2)   # scores + PV
    weight_bytes = sum(int(w.size) * w.dtype.itemsize for w in weights)
    cost = pl.CostEstimate(
        flops=int(flops),
        transcendentals=int(b * heads * t * t),
        bytes_accessed=int(2 * b * t * k * 4 + weight_bytes))

    def _run(single_buf):
        def const_spec(arr):
            idx = _const_index_map(arr.ndim)
            if single_buf:
                # Grid-invariant input: single-buffer (default double-buffers).
                return pl.BlockSpec(arr.shape, idx, pipeline_mode=pl.Buffered(1))
            return pl.BlockSpec(arr.shape, idx)

        if single_buf:
            x_seq_spec = pl.BlockSpec((1, t, k), lambda i, j: (i, 0, 0),
                                      pipeline_mode=pl.Buffered(1))
        else:
            x_seq_spec = pl.BlockSpec((1, t, k), lambda i, j: (i, 0, 0))

        grid_spec = pltpu.PrefetchScalarGridSpec(
            num_scalar_prefetch=0,
            grid=(b, nq),
            in_specs=[
                x_seq_spec,                                       # full seq (j==0)
                pl.BlockSpec((1, block_t, k), lambda i, j: (i, j, 0)),  # query tile
                *[const_spec(w) for w in weights],
            ],
            out_specs=pl.BlockSpec((1, block_t, k), lambda i, j: (i, j, 0)),
            scratch_shapes=[
                pltpu.VMEM((heads, t, head_dim), jnp.bfloat16),   # K cache
                pltpu.VMEM((heads, t, head_dim), jnp.bfloat16),   # V cache
            ],
        )

        # VMEM budget: (weights + full-seq x) x buffer count + pipelined tiles
        # + KV caches + per-step working set, with ~50% headroom; clamped to
        # [32 MiB, 64 MiB] so it is valid on v5e/v6e/v7x.
        buf = 1 if single_buf else 2
        resident = (buf * weight_bytes
                    + buf * t * k * 4
                    + 2 * block_t * k * 4 * 2          # x tile + out tile, 2 bufs
                    + 2 * heads * t * head_dim * 2)    # KV caches (bf16)
        working = (block_t * t * 4                     # one head's f32 scores
                   + block_t * 4 * k * 4               # FFN hidden (f32)
                   + 6 * block_t * k * 4)              # misc f32 temporaries
        vmem_limit = int(min(64 * MIB, max(32 * MIB,
                                           int(1.5 * (resident + working)))))

        return pl.pallas_call(
            kernel,
            out_shape=jax.ShapeDtypeStruct((b, t, k), jnp.float32),
            grid_spec=grid_spec,
            compiler_params=pltpu.CompilerParams(
                dimension_semantics=("parallel", "arbitrary"),
                vmem_limit_bytes=vmem_limit),
            cost_estimate=cost,
        )(x, x, *weights)

    if single_buffer_invariants:
        try:
            return _run(True)
        except Exception:
            # pipeline_mode=pl.Buffered(1) not supported on this jax build:
            # fall back to default double-buffering (correct, more VMEM).
            pass
    return _run(False)


def init_params(key, k):
    """Deterministic parameter init matching the PyTorch module's shapes."""
    keys = jax.random.split(key, 8)
    scale = 1.0 / math.sqrt(k)
    wq = jax.random.normal(keys[0], (k, k), jnp.float32) * scale
    wk = jax.random.normal(keys[1], (k, k), jnp.float32) * scale
    wv = jax.random.normal(keys[2], (k, k), jnp.float32) * scale
    wu = jax.random.normal(keys[3], (k, k), jnp.float32) * scale
    bu = jax.random.normal(keys[4], (1, k), jnp.float32) * scale
    # LayerNorm params (PyTorch default: weight=1, bias=0)
    g1 = jnp.ones((1, k), jnp.float32)
    b1 = jnp.zeros((1, k), jnp.float32)
    g2 = jnp.ones((1, k), jnp.float32)
    b2 = jnp.zeros((1, k), jnp.float32)
    # Feed-forward
    wf1 = jax.random.normal(keys[5], (4 * k, k), jnp.float32) * scale
    bf1 = jax.random.normal(keys[6], (1, 4 * k), jnp.float32) * scale
    wf2 = jax.random.normal(keys[7], (k, 4 * k), jnp.float32) * (1.0 / math.sqrt(4 * k))
    bf2 = jnp.zeros((1, k), jnp.float32)
    return (wq, wk, wv, wu, bu, g1, b1, wf1, bf1, wf2, bf2, g2, b2)


if __name__ == "__main__":
    b, t, k, heads = 2, 8, 32, 4
    key = jax.random.PRNGKey(0)
    kx, kp = jax.random.split(key)
    x = jax.random.normal(kx, (b, t, k), jnp.float32)
    params = init_params(kp, k)

    out = transformer_block(x, params, heads=heads)
    jax.block_until_ready(out)
    assert out.shape == (b, t, k)
    print("KERNEL_OK")
</pallas_src>

<mosaic_0001>
module attributes {stable_mosaic.version = 11 : i64} {
  func.func @transformer_block_kernel(%arg0: i32, %arg1: i32, %arg2: memref<1x8x32xf32, #tpu.memory_space<vmem>>, %arg3: memref<1x8x32xf32, #tpu.memory_space<vmem>>, %arg4: memref<32x32xbf16, #tpu.memory_space<vmem>>, %arg5: memref<32x32xbf16, #tpu.memory_space<vmem>>, %arg6: memref<32x32xbf16, #tpu.memory_space<vmem>>, %arg7: memref<32x32xbf16, #tpu.memory_space<vmem>>, %arg8: memref<1x32xf32, #tpu.memory_space<vmem>>, %arg9: memref<1x32xf32, #tpu.memory_space<vmem>>, %arg10: memref<1x32xf32, #tpu.memory_space<vmem>>, %arg11: memref<32x128xbf16, #tpu.memory_space<vmem>>, %arg12: memref<1x128xf32, #tpu.memory_space<vmem>>, %arg13: memref<128x32xbf16, #tpu.memory_space<vmem>>, %arg14: memref<1x32xf32, #tpu.memory_space<vmem>>, %arg15: memref<1x32xf32, #tpu.memory_space<vmem>>, %arg16: memref<1x32xf32, #tpu.memory_space<vmem>>, %arg17: memref<1x8x32xf32, #tpu.memory_space<vmem>>, %arg18: memref<4x8x8xbf16, #tpu.memory_space<vmem>>, %arg19: memref<4x8x8xbf16, #tpu.memory_space<vmem>>) attributes {dimension_semantics = [#tpu.dimension_semantics<parallel>, #tpu.dimension_semantics<arbitrary>], iteration_bounds = array<i64: 2, 1>, scalar_prefetch = 0 : i64, scratch_operands = 2 : i64, tpu.core_type = #tpu.core_type<tc>, window_params = [{pipeline_mode = #tpu.pipeline_mode<synchronous>, transform_indices = @transform_0, window_bounds = array<i64: 1, 8, 32>}, {transform_indices = @transform_1, window_bounds = array<i64: 1, 8, 32>}, {pipeline_mode = #tpu.pipeline_mode<synchronous>, transform_indices = @transform_2, window_bounds = array<i64: 32, 32>}, {pipeline_mode = #tpu.pipeline_mode<synchronous>, transform_indices = @transform_3, window_bounds = array<i64: 32, 32>}, {pipeline_mode = #tpu.pipeline_mode<synchronous>, transform_indices = @transform_4, window_bounds = array<i64: 32, 32>}, {pipeline_mode = #tpu.pipeline_mode<synchronous>, transform_indices = @transform_5, window_bounds = array<i64: 32, 32>}, {pipeline_mode = #tpu.pipeline_mode<synchronous>, transform_indices = @transform_6, window_bounds = array<i64: 1, 32>}, {pipeline_mode = #tpu.pipeline_mode<synchronous>, transform_indices = @transform_7, window_bounds = array<i64: 1, 32>}, {pipeline_mode = #tpu.pipeline_mode<synchronous>, transform_indices = @transform_8, window_bounds = array<i64: 1, 32>}, {pipeline_mode = #tpu.pipeline_mode<synchronous>, transform_indices = @transform_9, window_bounds = array<i64: 32, 128>}, {pipeline_mode = #tpu.pipeline_mode<synchronous>, transform_indices = @transform_10, window_bounds = array<i64: 1, 128>}, {pipeline_mode = #tpu.pipeline_mode<synchronous>, transform_indices = @transform_11, window_bounds = array<i64: 128, 32>}, {pipeline_mode = #tpu.pipeline_mode<synchronous>, transform_indices = @transform_12, window_bounds = array<i64: 1, 32>}, {pipeline_mode = #tpu.pipeline_mode<synchronous>, transform_indices = @transform_13, window_bounds = array<i64: 1, 32>}, {pipeline_mode = #tpu.pipeline_mode<synchronous>, transform_indices = @transform_14, window_bounds = array<i64: 1, 32>}, {transform_indices = @transform_15, window_bounds = array<i64: 1, 8, 32>}]} {
    %c0_i32 = arith.constant 0 : i32
    %0 = arith.cmpi eq, %arg1, %c0_i32 : i32
    %1 = arith.extui %0 : i1 to i32
    %c0_i32_0 = arith.constant 0 : i32
    %2 = arith.cmpi ne, %1, %c0_i32_0 : i32
    scf.if %2 {
      %c0_80 = arith.constant 0 : index
      %c0_81 = arith.constant 0 : index
      %c0_82 = arith.constant 0 : index
      %157 = vector.load %arg2[%c0_80, %c0_81, %c0_82] : memref<1x8x32xf32, #tpu.memory_space<vmem>>, vector<1x8x32xf32>
      %158 = vector.shape_cast %157 : vector<1x8x32xf32> to vector<8x32xf32>
      %159 = arith.truncf %158 : vector<8x32xf32> to vector<8x32xbf16>
      %c0_83 = arith.constant 0 : index
      %c0_84 = arith.constant 0 : index
      %160 = vector.load %arg5[%c0_83, %c0_84] : memref<32x32xbf16, #tpu.memory_space<vmem>>, vector<32x32xbf16>
      %cst_85 = arith.constant dense<0.000000e+00> : vector<8x32xf32>
      %161 = tpu.matmul %159, %160, %cst_85 {dimension_numbers = #tpu.dot_dimension_numbers<[1], [0], [0], [1], [0, 0, 1, 1], [], []>} : vector<8x32xbf16>, vector<32x32xbf16>, vector<8x32xf32> -> vector<8x32xf32>
      %c0_86 = arith.constant 0 : index
      %c0_87 = arith.constant 0 : index
      %162 = vector.load %arg6[%c0_86, %c0_87] : memref<32x32xbf16, #tpu.memory_space<vmem>>, vector<32x32xbf16>
      %cst_88 = arith.constant dense<0.000000e+00> : vector<8x32xf32>
      %163 = tpu.matmul %159, %162, %cst_88 {dimension_numbers = #tpu.dot_dimension_numbers<[1], [0], [0], [1], [0, 0, 1, 1], [], []>} : vector<8x32xbf16>, vector<32x32xbf16>, vector<8x32xf32> -> vector<8x32xf32>
      %164 = arith.truncf %161 : vector<8x32xf32> to vector<8x32xbf16>
      %165 = arith.truncf %163 : vector<8x32xf32> to vector<8x32xbf16>
      %166 = vector.extract_strided_slice %164 {offsets = [0, 0], sizes = [8, 8], strides = [1, 1]} : vector<8x32xbf16> to vector<8x8xbf16>
      %c0_89 = arith.constant 0 : index
      %c0_90 = arith.constant 0 : index
      %c0_91 = arith.constant 0 : index
      %167 = vector.load %arg18[%c0_89, %c0_90, %c0_91] : memref<4x8x8xbf16, #tpu.memory_space<vmem>>, vector<1x8x8xbf16>
      %168 = vector.shape_cast %167 : vector<1x8x8xbf16> to vector<8x8xbf16>
      %169 = vector.shape_cast %166 : vector<8x8xbf16> to vector<1x8x8xbf16>
      tpu.vector_store %arg18[%c0_89, %c0_90, %c0_91], %169 {strides = array<i32>} : memref<4x8x8xbf16, #tpu.memory_space<vmem>>, vector<1x8x8xbf16>,
      %170 = vector.extract_strided_slice %165 {offsets = [0, 0], sizes = [8, 8], strides = [1, 1]} : vector<8x32xbf16> to vector<8x8xbf16>
      %c0_92 = arith.constant 0 : index
      %c0_93 = arith.constant 0 : index
      %c0_94 = arith.constant 0 : index
      %171 = vector.load %arg19[%c0_92, %c0_93, %c0_94] : memref<4x8x8xbf16, #tpu.memory_space<vmem>>, vector<1x8x8xbf16>
      %172 = vector.shape_cast %171 : vector<1x8x8xbf16> to vector<8x8xbf16>
      %173 = vector.shape_cast %170 : vector<8x8xbf16> to vector<1x8x8xbf16>
      tpu.vector_store %arg19[%c0_92, %c0_93, %c0_94], %173 {strides = array<i32>} : memref<4x8x8xbf16, #tpu.memory_space<vmem>>, vector<1x8x8xbf16>,
      %174 = vector.extract_strided_slice %164 {offsets = [0, 8], sizes = [8, 8], strides = [1, 1]} : vector<8x32xbf16> to vector<8x8xbf16>
      %c1_95 = arith.constant 1 : index
      %c0_96 = arith.constant 0 : index
      %c0_97 = arith.constant 0 : index
      %175 = vector.load %arg18[%c1_95, %c0_96, %c0_97] : memref<4x8x8xbf16, #tpu.memory_space<vmem>>, vector<1x8x8xbf16>
      %176 = vector.shape_cast %175 : vector<1x8x8xbf16> to vector<8x8xbf16>
      %177 = vector.shape_cast %174 : vector<8x8xbf16> to vector<1x8x8xbf16>
      tpu.vector_store %arg18[%c1_95, %c0_96, %c0_97], %177 {strides = array<i32>} : memref<4x8x8xbf16, #tpu.memory_space<vmem>>, vector<1x8x8xbf16>,
      %178 = vector.extract_strided_slice %165 {offsets = [0, 8], sizes = [8, 8], strides = [1, 1]} : vector<8x32xbf16> to vector<8x8xbf16>
      %c1_98 = arith.constant 1 : index
      %c0_99 = arith.constant 0 : index
      %c0_100 = arith.constant 0 : index
      %179 = vector.load %arg19[%c1_98, %c0_99, %c0_100] : memref<4x8x8xbf16, #tpu.memory_space<vmem>>, vector<1x8x8xbf16>
      %180 = vector.shape_cast %179 : vector<1x8x8xbf16> to vector<8x8xbf16>
      %181 = vector.shape_cast %178 : vector<8x8xbf16> to vector<1x8x8xbf16>
      tpu.vector_store %arg19[%c1_98, %c0_99, %c0_100], %181 {strides = array<i32>} : memref<4x8x8xbf16, #tpu.memory_space<vmem>>, vector<1x8x8xbf16>,
      %182 = vector.extract_strided_slice %164 {offsets = [0, 16], sizes = [8, 8], strides = [1, 1]} : vector<8x32xbf16> to vector<8x8xbf16>
      %c2_101 = arith.constant 2 : index
      %c0_102 = arith.constant 0 : index
      %c0_103 = arith.constant 0 : index
      %183 = vector.load %arg18[%c2_101, %c0_102, %c0_103] : memref<4x8x8xbf16, #tpu.memory_space<vmem>>, vector<1x8x8xbf16>
      %184 = vector.shape_cast %183 : vector<1x8x8xbf16> to vector<8x8xbf16>
      %185 = vector.shape_cast %182 : vector<8x8xbf16> to vector<1x8x8xbf16>
      tpu.vector_store %arg18[%c2_101, %c0_102, %c0_103], %185 {strides = array<i32>} : memref<4x8x8xbf16, #tpu.memory_space<vmem>>, vector<1x8x8xbf16>,
      %186 = vector.extract_strided_slice %165 {offsets = [0, 16], sizes = [8, 8], strides = [1, 1]} : vector<8x32xbf16> to vector<8x8xbf16>
      %c2_104 = arith.constant 2 : index
      %c0_105 = arith.constant 0 : index
      %c0_106 = arith.constant 0 : index
      %187 = vector.load %arg19[%c2_104, %c0_105, %c0_106] : memref<4x8x8xbf16, #tpu.memory_space<vmem>>, vector<1x8x8xbf16>
      %188 = vector.shape_cast %187 : vector<1x8x8xbf16> to vector<8x8xbf16>
      %189 = vector.shape_cast %186 : vector<8x8xbf16> to vector<1x8x8xbf16>
      tpu.vector_store %arg19[%c2_104, %c0_105, %c0_106], %189 {strides = array<i32>} : memref<4x8x8xbf16, #tpu.memory_space<vmem>>, vector<1x8x8xbf16>,
      %190 = vector.extract_strided_slice %164 {offsets = [0, 24], sizes = [8, 8], strides = [1, 1]} : vector<8x32xbf16> to vector<8x8xbf16>
      %c3_107 = arith.constant 3 : index
      %c0_108 = arith.constant 0 : index
      %c0_109 = arith.constant 0 : index
      %191 = vector.load %arg18[%c3_107, %c0_108, %c0_109] : memref<4x8x8xbf16, #tpu.memory_space<vmem>>, vector<1x8x8xbf16>
      %192 = vector.shape_cast %191 : vector<1x8x8xbf16> to vector<8x8xbf16>
      %193 = vector.shape_cast %190 : vector<8x8xbf16> to vector<1x8x8xbf16>
      tpu.vector_store %arg18[%c3_107, %c0_108, %c0_109], %193 {strides = array<i32>} : memref<4x8x8xbf16, #tpu.memory_space<vmem>>, vector<1x8x8xbf16>,
      %194 = vector.extract_strided_slice %165 {offsets = [0, 24], sizes = [8, 8], strides = [1, 1]} : vector<8x32xbf16> to vector<8x8xbf16>
      %c3_110 = arith.constant 3 : index
      %c0_111 = arith.constant 0 : index
      %c0_112 = arith.constant 0 : index
      %195 = vector.load %arg19[%c3_110, %c0_111, %c0_112] : memref<4x8x8xbf16, #tpu.memory_space<vmem>>, vector<1x8x8xbf16>
      %196 = vector.shape_cast %195 : vector<1x8x8xbf16> to vector<8x8xbf16>
      %197 = vector.shape_cast %194 : vector<8x8xbf16> to vector<1x8x8xbf16>
      tpu.vector_store %arg19[%c3_110, %c0_111, %c0_112], %197 {strides = array<i32>} : memref<4x8x8xbf16, #tpu.memory_space<vmem>>, vector<1x8x8xbf16>,
    } else {
    }
    %c0 = arith.constant 0 : index
    %c0_1 = arith.constant 0 : index
    %c0_2 = arith.constant 0 : index
    %3 = vector.load %arg3[%c0, %c0_1, %c0_2] : memref<1x8x32xf32, #tpu.memory_space<vmem>>, vector<1x8x32xf32>
    %4 = vector.shape_cast %3 : vector<1x8x32xf32> to vector<8x32xf32>
    %5 = arith.truncf %4 : vector<8x32xf32> to vector<8x32xbf16>
    %c0_3 = arith.constant 0 : index
    %c0_4 = arith.constant 0 : index
    %6 = vector.load %arg4[%c0_3, %c0_4] : memref<32x32xbf16, #tpu.memory_space<vmem>>, vector<32x32xbf16>
    %cst = arith.constant dense<0.000000e+00> : vector<8x32xf32>
    %7 = tpu.matmul %5, %6, %cst {dimension_numbers = #tpu.dot_dimension_numbers<[1], [0], [0], [1], [0, 0, 1, 1], [], []>} : vector<8x32xbf16>, vector<32x32xbf16>, vector<8x32xf32> -> vector<8x32xf32>
    %cst_5 = arith.constant 0.353553385 : f32
    %8 = vector.broadcast %cst_5 : f32 to vector<8x32xf32>
    %9 = arith.mulf %7, %8 : vector<8x32xf32>
    %10 = arith.truncf %9 : vector<8x32xf32> to vector<8x32xbf16>
    %11 = vector.extract_strided_slice %10 {offsets = [0, 0], sizes = [8, 8], strides = [1, 1]} : vector<8x32xbf16> to vector<8x8xbf16>
    %c0_6 = arith.constant 0 : index
    %c0_7 = arith.constant 0 : index
    %c0_8 = arith.constant 0 : index
    %12 = vector.load %arg18[%c0_6, %c0_7, %c0_8] : memref<4x8x8xbf16, #tpu.memory_space<vmem>>, vector<1x8x8xbf16>
    %13 = vector.shape_cast %12 : vector<1x8x8xbf16> to vector<8x8xbf16>
    %cst_9 = arith.constant dense<0.000000e+00> : vector<8x8xf32>
    %14 = tpu.matmul %11, %13, %cst_9 {dimension_numbers = #tpu.dot_dimension_numbers<[1], [1], [0], [0], [0, 0, 1, 0], [], []>} : vector<8x8xbf16>, vector<8x8xbf16>, vector<8x8xf32> -> vector<8x8xf32>
    %cst_10 = arith.constant dense<0xFF800000> : vector<8xf32>
    %15 = vector.multi_reduction <maximumf>, %14, %cst_10 [1] : vector<8x8xf32> to vector<8xf32>
    %16 = vector.shape_cast %15 : vector<8xf32> to vector<8x1xf32>
    %17 = vector.broadcast %16 : vector<8x1xf32> to vector<8x8xf32>
    %18 = arith.subf %14, %17 : vector<8x8xf32>
    %19 = math.exp %18 : vector<8x8xf32>
    %cst_11 = arith.constant dense<0.000000e+00> : vector<8xf32>
    %20 = vector.multi_reduction <add>, %19, %cst_11 [1] : vector<8x8xf32> to vector<8xf32>
    %21 = vector.shape_cast %20 : vector<8xf32> to vector<8x1xf32>
    %22 = tpu.reciprocal %21 {approx = true} : vector<8x1xf32> -> vector<8x1xf32>
    %23 = vector.broadcast %22 : vector<8x1xf32> to vector<8x8xf32>
    %24 = arith.mulf %19, %23 : vector<8x8xf32>
    %25 = arith.truncf %24 : vector<8x8xf32> to vector<8x8xbf16>
    %c0_12 = arith.constant 0 : index
    %c0_13 = arith.constant 0 : index
    %c0_14 = arith.constant 0 : index
    %26 = vector.load %arg19[%c0_12, %c0_13, %c0_14] : memref<4x8x8xbf16, #tpu.memory_space<vmem>>, vector<1x8x8xbf16>
    %27 = vector.shape_cast %26 : vector<1x8x8xbf16> to vector<8x8xbf16>
    %cst_15 = arith.constant dense<0.000000e+00> : vector<8x8xf32>
    %28 = tpu.matmul %25, %27, %cst_15 {dimension_numbers = #tpu.dot_dimension_numbers<[1], [0], [0], [1], [0, 0, 1, 1], [], []>} : vector<8x8xbf16>, vector<8x8xbf16>, vector<8x8xf32> -> vector<8x8xf32>
    %29 = vector.extract_strided_slice %10 {offsets = [0, 8], sizes = [8, 8], strides = [1, 1]} : vector<8x32xbf16> to vector<8x8xbf16>
    %c1 = arith.constant 1 : index
    %c0_16 = arith.constant 0 : index
    %c0_17 = arith.constant 0 : index
    %30 = vector.load %arg18[%c1, %c0_16, %c0_17] : memref<4x8x8xbf16, #tpu.memory_space<vmem>>, vector<1x8x8xbf16>
    %31 = vector.shape_cast %30 : vector<1x8x8xbf16> to vector<8x8xbf16>
    %cst_18 = arith.constant dense<0.000000e+00> : vector<8x8xf32>
    %32 = tpu.matmul %29, %31, %cst_18 {dimension_numbers = #tpu.dot_dimension_numbers<[1], [1], [0], [0], [0, 0, 1, 0], [], []>} : vector<8x8xbf16>, vector<8x8xbf16>, vector<8x8xf32> -> vector<8x8xf32>
    %cst_19 = arith.constant dense<0xFF800000> : vector<8xf32>
    %33 = vector.multi_reduction <maximumf>, %32, %cst_19 [1] : vector<8x8xf32> to vector<8xf32>
    %34 = vector.shape_cast %33 : vector<8xf32> to vector<8x1xf32>
    %35 = vector.broadcast %34 : vector<8x1xf32> to vector<8x8xf32>
    %36 = arith.subf %32, %35 : vector<8x8xf32>
    %37 = math.exp %36 : vector<8x8xf32>
    %cst_20 = arith.constant dense<0.000000e+00> : vector<8xf32>
    %38 = vector.multi_reduction <add>, %37, %cst_20 [1] : vector<8x8xf32> to vector<8xf32>
    %39 = vector.shape_cast %38 : vector<8xf32> to vector<8x1xf32>
    %40 = tpu.reciprocal %39 {approx = true} : vector<8x1xf32> -> vector<8x1xf32>
    %41 = vector.broadcast %40 : vector<8x1xf32> to vector<8x8xf32>
    %42 = arith.mulf %37, %41 : vector<8x8xf32>
    %43 = arith.truncf %42 : vector<8x8xf32> to vector<8x8xbf16>
    %c1_21 = arith.constant 1 : index
    %c0_22 = arith.constant 0 : index
    %c0_23 = arith.constant 0 : index
    %44 = vector.load %arg19[%c1_21, %c0_22, %c0_23] : memref<4x8x8xbf16, #tpu.memory_space<vmem>>, vector<1x8x8xbf16>
    %45 = vector.shape_cast %44 : vector<1x8x8xbf16> to vector<8x8xbf16>
    %cst_24 = arith.constant dense<0.000000e+00> : vector<8x8xf32>
    %46 = tpu.matmul %43, %45, %cst_24 {dimension_numbers = #tpu.dot_dimension_numbers<[1], [0], [0], [1], [0, 0, 1, 1], [], []>} : vector<8x8xbf16>, vector<8x8xbf16>, vector<8x8xf32> -> vector<8x8xf32>
    %47 = vector.extract_strided_slice %10 {offsets = [0, 16], sizes = [8, 8], strides = [1, 1]} : vector<8x32xbf16> to vector<8x8xbf16>
    %c2 = arith.constant 2 : index
    %c0_25 = arith.constant 0 : index
    %c0_26 = arith.constant 0 : index
    %48 = vector.load %arg18[%c2, %c0_25, %c0_26] : memref<4x8x8xbf16, #tpu.memory_space<vmem>>, vector<1x8x8xbf16>
    %49 = vector.shape_cast %48 : vector<1x8x8xbf16> to vector<8x8xbf16>
    %cst_27 = arith.constant dense<0.000000e+00> : vector<8x8xf32>
    %50 = tpu.matmul %47, %49, %cst_27 {dimension_numbers = #tpu.dot_dimension_numbers<[1], [1], [0], [0], [0, 0, 1, 0], [], []>} : vector<8x8xbf16>, vector<8x8xbf16>, vector<8x8xf32> -> vector<8x8xf32>
    %cst_28 = arith.constant dense<0xFF800000> : vector<8xf32>
    %51 = vector.multi_reduction <maximumf>, %50, %cst_28 [1] : vector<8x8xf32> to vector<8xf32>
    %52 = vector.shape_cast %51 : vector<8xf32> to vector<8x1xf32>
    %53 = vector.broadcast %52 : vector<8x1xf32> to vector<8x8xf32>
    %54 = arith.subf %50, %53 : vector<8x8xf32>
    %55 = math.exp %54 : vector<8x8xf32>
    %cst_29 = arith.constant dense<0.000000e+00> : vector<8xf32>
    %56 = vector.multi_reduction <add>, %55, %cst_29 [1] : vector<8x8xf32> to vector<8xf32>
    %57 = vector.shape_cast %56 : vector<8xf32> to vector<8x1xf32>
    %58 = tpu.reciprocal %57 {approx = true} : vector<8x1xf32> -> vector<8x1xf32>
    %59 = vector.broadcast %58 : vector<8x1xf32> to vector<8x8xf32>
    %60 = arith.mulf %55, %59 : vector<8x8xf32>
    %61 = arith.truncf %60 : vector<8x8xf32> to vector<8x8xbf16>
    %c2_30 = arith.constant 2 : index
    %c0_31 = arith.constant 0 : index
    %c0_32 = arith.constant 0 : index
    %62 = vector.load %arg19[%c2_30, %c0_31, %c0_32] : memref<4x8x8xbf16, #tpu.memory_space<vmem>>, vector<1x8x8xbf16>
    %63 = vector.shape_cast %62 : vector<1x8x8xbf16> to vector<8x8xbf16>
    %cst_33 = arith.constant dense<0.000000e+00> : vector<8x8xf32>
    %64 = tpu.matmul %61, %63, %cst_33 {dimension_numbers = #tpu.dot_dimension_numbers<[1], [0], [0], [1], [0, 0, 1, 1], [], []>} : vector<8x8xbf16>, vector<8x8xbf16>, vector<8x8xf32> -> vector<8x8xf32>
    %65 = vector.extract_strided_slice %10 {offsets = [0, 24], sizes = [8, 8], strides = [1, 1]} : vector<8x32xbf16> to vector<8x8xbf16>
    %c3 = arith.constant 3 : index
    %c0_34 = arith.constant 0 : index
    %c0_35 = arith.constant 0 : index
    %66 = vector.load %arg18[%c3, %c0_34, %c0_35] : memref<4x8x8xbf16, #tpu.memory_space<vmem>>, vector<1x8x8xbf16>
    %67 = vector.shape_cast %66 : vector<1x8x8xbf16> to vector<8x8xbf16>
    %cst_36 = arith.constant dense<0.000000e+00> : vector<8x8xf32>
    %68 = tpu.matmul %65, %67, %cst_36 {dimension_numbers = #tpu.dot_dimension_numbers<[1], [1], [0], [0], [0, 0, 1, 0], [], []>} : vector<8x8xbf16>, vector<8x8xbf16>, vector<8x8xf32> -> vector<8x8xf32>
    %cst_37 = arith.constant dense<0xFF800000> : vector<8xf32>
    %69 = vector.multi_reduction <maximumf>, %68, %cst_37 [1] : vector<8x8xf32> to vector<8xf32>
    %70 = vector.shape_cast %69 : vector<8xf32> to vector<8x1xf32>
    %71 = vector.broadcast %70 : vector<8x1xf32> to vector<8x8xf32>
    %72 = arith.subf %68, %71 : vector<8x8xf32>
    %73 = math.exp %72 : vector<8x8xf32>
    %cst_38 = arith.constant dense<0.000000e+00> : vector<8xf32>
    %74 = vector.multi_reduction <add>, %73, %cst_38 [1] : vector<8x8xf32> to vector<8xf32>
    %75 = vector.shape_cast %74 : vector<8xf32> to vector<8x1xf32>
    %76 = tpu.reciprocal %75 {approx = true} : vector<8x1xf32> -> vector<8x1xf32>
    %77 = vector.broadcast %76 : vector<8x1xf32> to vector<8x8xf32>
    %78 = arith.mulf %73, %77 : vector<8x8xf32>
    %79 = arith.truncf %78 : vector<8x8xf32> to vector<8x8xbf16>
    %c3_39 = arith.constant 3 : index
    %c0_40 = arith.constant 0 : index
    %c0_41 = arith.constant 0 : index
    %80 = vector.load %arg19[%c3_39, %c0_40, %c0_41] : memref<4x8x8xbf16, #tpu.memory_space<vmem>>, vector<1x8x8xbf16>
    %81 = vector.shape_cast %80 : vector<1x8x8xbf16> to vector<8x8xbf16>
    %cst_42 = arith.constant dense<0.000000e+00> : vector<8x8xf32>
    %82 = tpu.matmul %79, %81, %cst_42 {dimension_numbers = #tpu.dot_dimension_numbers<[1], [0], [0], [1], [0, 0, 1, 1], [], []>} : vector<8x8xbf16>, vector<8x8xbf16>, vector<8x8xf32> -> vector<8x8xf32>
    %83 = tpu.concatenate %28, %46, %64, %82 in 1 : vector<8x8xf32>, vector<8x8xf32>, vector<8x8xf32>, vector<8x8xf32> -> vector<8x32xf32>
    %84 = arith.truncf %83 : vector<8x32xf32> to vector<8x32xbf16>
    %c0_43 = arith.constant 0 : index
    %c0_44 = arith.constant 0 : index
    %85 = vector.load %arg7[%c0_43, %c0_44] : memref<32x32xbf16, #tpu.memory_space<vmem>>, vector<32x32xbf16>
    %cst_45 = arith.constant dense<0.000000e+00> : vector<8x32xf32>
    %86 = tpu.matmul %84, %85, %cst_45 {dimension_numbers = #tpu.dot_dimension_numbers<[1], [0], [0], [1], [0, 0, 1, 1], [], []>} : vector<8x32xbf16>, vector<32x32xbf16>, vector<8x32xf32> -> vector<8x32xf32>
    %c0_46 = arith.constant 0 : index
    %c0_47 = arith.constant 0 : index
    %87 = vector.load %arg8[%c0_46, %c0_47] : memref<1x32xf32, #tpu.memory_space<vmem>>, vector<1x32xf32>
    %88 = vector.broadcast %87 : vector<1x32xf32> to vector<8x32xf32>
    %89 = arith.addf %86, %88 : vector<8x32xf32>
    %90 = arith.addf %89, %4 : vector<8x32xf32>
    %c0_48 = arith.constant 0 : index
    %c0_49 = arith.constant 0 : index
    %91 = vector.load %arg9[%c0_48, %c0_49] : memref<1x32xf32, #tpu.memory_space<vmem>>, vector<1x32xf32>
    %c0_50 = arith.constant 0 : index
    %c0_51 = arith.constant 0 : index
    %92 = vector.load %arg10[%c0_50, %c0_51] : memref<1x32xf32, #tpu.memory_space<vmem>>, vector<1x32xf32>
    %cst_52 = arith.constant dense<0.000000e+00> : vector<8xf32>
    %93 = vector.multi_reduction <add>, %90, %cst_52 [1] : vector<8x32xf32> to vector<8xf32>
    %94 = vector.shape_cast %93 : vector<8xf32> to vector<8x1xf32>
    %cst_53 = arith.constant 3.200000e+01 : f32
    %95 = vector.broadcast %cst_53 : f32 to vector<8x1xf32>
    %96 = arith.divf %94, %95 : vector<8x1xf32>
    %97 = vector.broadcast %96 : vector<8x1xf32> to vector<8x32xf32>
    %98 = arith.subf %90, %97 : vector<8x32xf32>
    %99 = arith.mulf %98, %98 : vector<8x32xf32>
    %cst_54 = arith.constant dense<0.000000e+00> : vector<8xf32>
    %100 = vector.multi_reduction <add>, %99, %cst_54 [1] : vector<8x32xf32> to vector<8xf32>
    %101 = vector.shape_cast %100 : vector<8xf32> to vector<8x1xf32>
    %cst_55 = arith.constant 3.200000e+01 : f32
    %102 = vector.broadcast %cst_55 : f32 to vector<8x1xf32>
    %103 = arith.divf %101, %102 : vector<8x1xf32>
    %104 = vector.broadcast %96 : vector<8x1xf32> to vector<8x32xf32>
    %105 = arith.subf %90, %104 : vector<8x32xf32>
    %cst_56 = arith.constant 9.99999974E-6 : f32
    %106 = vector.broadcast %cst_56 : f32 to vector<8x1xf32>
    %107 = arith.addf %103, %106 : vector<8x1xf32>
    %108 = math.rsqrt %107 : vector<8x1xf32>
    %109 = vector.broadcast %108 : vector<8x1xf32> to vector<8x32xf32>
    %110 = arith.mulf %105, %109 : vector<8x32xf32>
    %111 = vector.broadcast %91 : vector<1x32xf32> to vector<8x32xf32>
    %112 = arith.mulf %110, %111 : vector<8x32xf32>
    %113 = vector.broadcast %92 : vector<1x32xf32> to vector<8x32xf32>
    %114 = arith.addf %112, %113 : vector<8x32xf32>
    %115 = arith.truncf %114 : vector<8x32xf32> to vector<8x32xbf16>
    %c0_57 = arith.constant 0 : index
    %c0_58 = arith.constant 0 : index
    %116 = vector.load %arg11[%c0_57, %c0_58] : memref<32x128xbf16, #tpu.memory_space<vmem>>, vector<32x128xbf16>
    %cst_59 = arith.constant dense<0.000000e+00> : vector<8x128xf32>
    %117 = tpu.matmul %115, %116, %cst_59 {dimension_numbers = #tpu.dot_dimension_numbers<[1], [0], [0], [1], [0, 0, 1, 1], [], []>} : vector<8x32xbf16>, vector<32x128xbf16>, vector<8x128xf32> -> vector<8x128xf32>
    %c0_60 = arith.constant 0 : index
    %c0_61 = arith.constant 0 : index
    %118 = vector.load %arg12[%c0_60, %c0_61] : memref<1x128xf32, #tpu.memory_space<vmem>>, vector<1x128xf32>
    %119 = vector.broadcast %118 : vector<1x128xf32> to vector<8x128xf32>
    %120 = arith.addf %117, %119 : vector<8x128xf32>
    %cst_62 = arith.constant 0.000000e+00 : f32
    %121 = vector.broadcast %cst_62 : f32 to vector<8x128xf32>
    %122 = arith.maximumf %120, %121 : vector<8x128xf32>
    %123 = arith.truncf %122 : vector<8x128xf32> to vector<8x128xbf16>
    %c0_63 = arith.constant 0 : index
    %c0_64 = arith.constant 0 : index
    %124 = vector.load %arg13[%c0_63, %c0_64] : memref<128x32xbf16, #tpu.memory_space<vmem>>, vector<128x32xbf16>
    %cst_65 = arith.constant dense<0.000000e+00> : vector<8x32xf32>
    %125 = tpu.matmul %123, %124, %cst_65 {dimension_numbers = #tpu.dot_dimension_numbers<[1], [0], [0], [1], [0, 0, 1, 1], [], []>} : vector<8x128xbf16>, vector<128x32xbf16>, vector<8x32xf32> -> vector<8x32xf32>
    %c0_66 = arith.constant 0 : index
    %c0_67 = arith.constant 0 : index
    %126 = vector.load %arg14[%c0_66, %c0_67] : memref<1x32xf32, #tpu.memory_space<vmem>>, vector<1x32xf32>
    %127 = vector.broadcast %126 : vector<1x32xf32> to vector<8x32xf32>
    %128 = arith.addf %125, %127 : vector<8x32xf32>
    %129 = arith.addf %128, %114 : vector<8x32xf32>
    %c0_68 = arith.constant 0 : index
    %c0_69 = arith.constant 0 : index
    %130 = vector.load %arg15[%c0_68, %c0_69] : memref<1x32xf32, #tpu.memory_space<vmem>>, vector<1x32xf32>
    %c0_70 = arith.constant 0 : index
    %c0_71 = arith.constant 0 : index
    %131 = vector.load %arg16[%c0_70, %c0_71] : memref<1x32xf32, #tpu.memory_space<vmem>>, vector<1x32xf32>
    %cst_72 = arith.constant dense<0.000000e+00> : vector<8xf32>
    %132 = vector.multi_reduction <add>, %129, %cst_72 [1] : vector<8x32xf32> to vector<8xf32>
    %133 = vector.shape_cast %132 : vector<8xf32> to vector<8x1xf32>
    %cst_73 = arith.constant 3.200000e+01 : f32
    %134 = vector.broadcast %cst_73 : f32 to vector<8x1xf32>
    %135 = arith.divf %133, %134 : vector<8x1xf32>
    %136 = vector.broadcast %135 : vector<8x1xf32> to vector<8x32xf32>
    %137 = arith.subf %129, %136 : vector<8x32xf32>
    %138 = arith.mulf %137, %137 : vector<8x32xf32>
    %cst_74 = arith.constant dense<0.000000e+00> : vector<8xf32>
    %139 = vector.multi_reduction <add>, %138, %cst_74 [1] : vector<8x32xf32> to vector<8xf32>
    %140 = vector.shape_cast %139 : vector<8xf32> to vector<8x1xf32>
    %cst_75 = arith.constant 3.200000e+01 : f32
    %141 = vector.broadcast %cst_75 : f32 to vector<8x1xf32>
    %142 = arith.divf %140, %141 : vector<8x1xf32>
    %143 = vector.broadcast %135 : vector<8x1xf32> to vector<8x32xf32>
    %144 = arith.subf %129, %143 : vector<8x32xf32>
    %cst_76 = arith.constant 9.99999974E-6 : f32
    %145 = vector.broadcast %cst_76 : f32 to vector<8x1xf32>
    %146 = arith.addf %142, %145 : vector<8x1xf32>
    %147 = math.rsqrt %146 : vector<8x1xf32>
    %148 = vector.broadcast %147 : vector<8x1xf32> to vector<8x32xf32>
    %149 = arith.mulf %144, %148 : vector<8x32xf32>
    %150 = vector.broadcast %130 : vector<1x32xf32> to vector<8x32xf32>
    %151 = arith.mulf %149, %150 : vector<8x32xf32>
    %152 = vector.broadcast %131 : vector<1x32xf32> to vector<8x32xf32>
    %153 = arith.addf %151, %152 : vector<8x32xf32>
    %c0_77 = arith.constant 0 : index
    %c0_78 = arith.constant 0 : index
    %c0_79 = arith.constant 0 : index
    %154 = vector.load %arg17[%c0_77, %c0_78, %c0_79] : memref<1x8x32xf32, #tpu.memory_space<vmem>>, vector<1x8x32xf32>
    %155 = vector.shape_cast %154 : vector<1x8x32xf32> to vector<8x32xf32>
    %156 = vector.shape_cast %153 : vector<8x32xf32> to vector<1x8x32xf32>
    tpu.vector_store %arg17[%c0_77, %c0_78, %c0_79], %156 {strides = array<i32>} : memref<1x8x32xf32, #tpu.memory_space<vmem>>, vector<1x8x32xf32>,
    return
  }
  func.func @transform_0(%arg0: i32, %arg1: i32) -> (i32, i32, i32) {
    %c0_i32 = arith.constant 0 : i32
    %c0_i32_0 = arith.constant 0 : i32
    %c0_i32_1 = arith.constant 0 : i32
    return %arg0, %c0_i32, %c0_i32_0 : i32, i32, i32
  }
  func.func @transform_1(%arg0: i32, %arg1: i32) -> (i32, i32, i32) {
    %c0_i32 = arith.constant 0 : i32
    %c0_i32_0 = arith.constant 0 : i32
    return %arg0, %arg1, %c0_i32 : i32, i32, i32
  }
  func.func @transform_2(%arg0: i32, %arg1: i32) -> (i32, i32) {
    %c0_i32 = arith.constant 0 : i32
    %c0_i32_0 = arith.constant 0 : i32
    %c0_i32_1 = arith.constant 0 : i32
    return %c0_i32, %c0_i32_0 : i32, i32
  }
  func.func @transform_3(%arg0: i32, %arg1: i32) -> (i32, i32) {
    %c0_i32 = arith.constant 0 : i32
    %c0_i32_0 = arith.constant 0 : i32
    %c0_i32_1 = arith.constant 0 : i32
    return %c0_i32, %c0_i32_0 : i32, i32
  }
  func.func @transform_4(%arg0: i32, %arg1: i32) -> (i32, i32) {
    %c0_i32 = arith.constant 0 : i32
    %c0_i32_0 = arith.constant 0 : i32
    %c0_i32_1 = arith.constant 0 : i32
    return %c0_i32, %c0_i32_0 : i32, i32
  }
  func.func @transform_5(%arg0: i32, %arg1: i32) -> (i32, i32) {
    %c0_i32 = arith.constant 0 : i32
    %c0_i32_0 = arith.constant 0 : i32
    %c0_i32_1 = arith.constant 0 : i32
    return %c0_i32, %c0_i32_0 : i32, i32
  }
  func.func @transform_6(%arg0: i32, %arg1: i32) -> (i32, i32) {
    %c0_i32 = arith.constant 0 : i32
    %c0_i32_0 = arith.constant 0 : i32
    %c0_i32_1 = arith.constant 0 : i32
    return %c0_i32, %c0_i32_0 : i32, i32
  }
  func.func @transform_7(%arg0: i32, %arg1: i32) -> (i32, i32) {
    %c0_i32 = arith.constant 0 : i32
    %c0_i32_0 = arith.constant 0 : i32
    %c0_i32_1 = arith.constant 0 : i32
    return %c0_i32, %c0_i32_0 : i32, i32
  }
  func.func @transform_8(%arg0: i32, %arg1: i32) -> (i32, i32) {
    %c0_i32 = arith.constant 0 : i32
    %c0_i32_0 = arith.constant 0 : i32
    %c0_i32_1 = arith.constant 0 : i32
    return %c0_i32, %c0_i32_0 : i32, i32
  }
  func.func @transform_9(%arg0: i32, %arg1: i32) -> (i32, i32) {
    %c0_i32 = arith.constant 0 : i32
    %c0_i32_0 = arith.constant 0 : i32
    %c0_i32_1 = arith.constant 0 : i32
    return %c0_i32, %c0_i32_0 : i32, i32
  }
  func.func @transform_10(%arg0: i32, %arg1: i32) -> (i32, i32) {
    %c0_i32 = arith.constant 0 : i32
    %c0_i32_0 = arith.constant 0 : i32
    %c0_i32_1 = arith.constant 0 : i32
    return %c0_i32, %c0_i32_0 : i32, i32
  }
  func.func @transform_11(%arg0: i32, %arg1: i32) -> (i32, i32) {
    %c0_i32 = arith.constant 0 : i32
    %c0_i32_0 = arith.constant 0 : i32
    %c0_i32_1 = arith.constant 0 : i32
    return %c0_i32, %c0_i32_0 : i32, i32
  }
  func.func @transform_12(%arg0: i32, %arg1: i32) -> (i32, i32) {
    %c0_i32 = arith.constant 0 : i32
    %c0_i32_0 = arith.constant 0 : i32
    %c0_i32_1 = arith.constant 0 : i32
    return %c0_i32, %c0_i32_0 : i32, i32
  }
  func.func @transform_13(%arg0: i32, %arg1: i32) -> (i32, i32) {
    %c0_i32 = arith.constant 0 : i32
    %c0_i32_0 = arith.constant 0 : i32
    %c0_i32_1 = arith.constant 0 : i32
    return %c0_i32, %c0_i32_0 : i32, i32
  }
  func.func @transform_14(%arg0: i32, %arg1: i32) -> (i32, i32) {
    %c0_i32 = arith.constant 0 : i32
    %c0_i32_0 = arith.constant 0 : i32
    %c0_i32_1 = arith.constant 0 : i32
    return %c0_i32, %c0_i32_0 : i32, i32
  }
  func.func @transform_15(%arg0: i32, %arg1: i32) -> (i32, i32, i32) {
    %c0_i32 = arith.constant 0 : i32
    %c0_i32_0 = arith.constant 0 : i32
    return %arg0, %arg1, %c0_i32 : i32, i32, i32
  }
}

module attributes {stable_mosaic.version = 11 : i64} {
  func.func @transformer_block_kernel(%arg0: i32, %arg1: i32, %arg2: memref<1x8x32xf32, #tpu.memory_space<vmem>>, %arg3: memref<1x8x32xf32, #tpu.memory_space<vmem>>, %arg4: memref<32x32xbf16, #tpu.memory_space<vmem>>, %arg5: memref<32x32xbf16, #tpu.memory_space<vmem>>, %arg6: memref<32x32xbf16, #tpu.memory_space<vmem>>, %arg7: memref<32x32xbf16, #tpu.memory_space<vmem>>, %arg8: memref<1x32xf32, #tpu.memory_space<vmem>>, %arg9: memref<1x32xf32, #tpu.memory_space<vmem>>, %arg10: memref<1x32xf32, #tpu.memory_space<vmem>>, %arg11: memref<32x128xbf16, #tpu.memory_space<vmem>>, %arg12: memref<1x128xf32, #tpu.memory_space<vmem>>, %arg13: memref<128x32xbf16, #tpu.memory_space<vmem>>, %arg14: memref<1x32xf32, #tpu.memory_space<vmem>>, %arg15: memref<1x32xf32, #tpu.memory_space<vmem>>, %arg16: memref<1x32xf32, #tpu.memory_space<vmem>>, %arg17: memref<1x8x32xf32, #tpu.memory_space<vmem>>, %arg18: memref<4x8x8xbf16, #tpu.memory_space<vmem>>, %arg19: memref<4x8x8xbf16, #tpu.memory_space<vmem>>) attributes {dimension_semantics = [#tpu.dimension_semantics<parallel>, #tpu.dimension_semantics<arbitrary>], iteration_bounds = array<i64: 2, 1>, scalar_prefetch = 0 : i64, scratch_operands = 2 : i64, tpu.core_type = #tpu.core_type<tc>, window_params = [{transform_indices = @transform_0, window_bounds = array<i64: 1, 8, 32>}, {transform_indices = @transform_1, window_bounds = array<i64: 1, 8, 32>}, {pipeline_mode = #tpu.pipeline_mode<synchronous>, transform_indices = @transform_2, window_bounds = array<i64: 32, 32>}, {pipeline_mode = #tpu.pipeline_mode<synchronous>, transform_indices = @transform_3, window_bounds = array<i64: 32, 32>}, {pipeline_mode = #tpu.pipeline_mode<synchronous>, transform_indices = @transform_4, window_bounds = array<i64: 32, 32>}, {pipeline_mode = #tpu.pipeline_mode<synchronous>, transform_indices = @transform_5, window_bounds = array<i64: 32, 32>}, {pipeline_mode = #tpu.pipeline_mode<synchronous>, transform_indices = @transform_6, window_bounds = array<i64: 1, 32>}, {pipeline_mode = #tpu.pipeline_mode<synchronous>, transform_indices = @transform_7, window_bounds = array<i64: 1, 32>}, {pipeline_mode = #tpu.pipeline_mode<synchronous>, transform_indices = @transform_8, window_bounds = array<i64: 1, 32>}, {pipeline_mode = #tpu.pipeline_mode<synchronous>, transform_indices = @transform_9, window_bounds = array<i64: 32, 128>}, {pipeline_mode = #tpu.pipeline_mode<synchronous>, transform_indices = @transform_10, window_bounds = array<i64: 1, 128>}, {pipeline_mode = #tpu.pipeline_mode<synchronous>, transform_indices = @transform_11, window_bounds = array<i64: 128, 32>}, {pipeline_mode = #tpu.pipeline_mode<synchronous>, transform_indices = @transform_12, window_bounds = array<i64: 1, 32>}, {pipeline_mode = #tpu.pipeline_mode<synchronous>, transform_indices = @transform_13, window_bounds = array<i64: 1, 32>}, {pipeline_mode = #tpu.pipeline_mode<synchronous>, transform_indices = @transform_14, window_bounds = array<i64: 1, 32>}, {transform_indices = @transform_15, window_bounds = array<i64: 1, 8, 32>}]} {
    %c0_i32 = arith.constant 0 : i32
    %0 = arith.cmpi eq, %arg1, %c0_i32 : i32
    %1 = arith.extui %0 : i1 to i32
    %c0_i32_0 = arith.constant 0 : i32
    %2 = arith.cmpi ne, %1, %c0_i32_0 : i32
    scf.if %2 {
      %c0_80 = arith.constant 0 : index
      %c0_81 = arith.constant 0 : index
      %c0_82 = arith.constant 0 : index
      %157 = vector.load %arg2[%c0_80, %c0_81, %c0_82] : memref<1x8x32xf32, #tpu.memory_space<vmem>>, vector<1x8x32xf32>
      %158 = vector.shape_cast %157 : vector<1x8x32xf32> to vector<8x32xf32>
      %159 = arith.truncf %158 : vector<8x32xf32> to vector<8x32xbf16>
      %c0_83 = arith.constant 0 : index
      %c0_84 = arith.constant 0 : index
      %160 = vector.load %arg5[%c0_83, %c0_84] : memref<32x32xbf16, #tpu.memory_space<vmem>>, vector<32x32xbf16>
      %cst_85 = arith.constant dense<0.000000e+00> : vector<8x32xf32>
      %161 = tpu.matmul %159, %160, %cst_85 {dimension_numbers = #tpu.dot_dimension_numbers<[1], [0], [0], [1], [0, 0, 1, 1], [], []>} : vector<8x32xbf16>, vector<32x32xbf16>, vector<8x32xf32> -> vector<8x32xf32>
      %c0_86 = arith.constant 0 : index
      %c0_87 = arith.constant 0 : index
      %162 = vector.load %arg6[%c0_86, %c0_87] : memref<32x32xbf16, #tpu.memory_space<vmem>>, vector<32x32xbf16>
      %cst_88 = arith.constant dense<0.000000e+00> : vector<8x32xf32>
      %163 = tpu.matmul %159, %162, %cst_88 {dimension_numbers = #tpu.dot_dimension_numbers<[1], [0], [0], [1], [0, 0, 1, 1], [], []>} : vector<8x32xbf16>, vector<32x32xbf16>, vector<8x32xf32> -> vector<8x32xf32>
      %164 = arith.truncf %161 : vector<8x32xf32> to vector<8x32xbf16>
      %165 = arith.truncf %163 : vector<8x32xf32> to vector<8x32xbf16>
      %166 = vector.extract_strided_slice %164 {offsets = [0, 0], sizes = [8, 8], strides = [1, 1]} : vector<8x32xbf16> to vector<8x8xbf16>
      %c0_89 = arith.constant 0 : index
      %c0_90 = arith.constant 0 : index
      %c0_91 = arith.constant 0 : index
      %167 = vector.load %arg18[%c0_89, %c0_90, %c0_91] : memref<4x8x8xbf16, #tpu.memory_space<vmem>>, vector<1x8x8xbf16>
      %168 = vector.shape_cast %167 : vector<1x8x8xbf16> to vector<8x8xbf16>
      %169 = vector.shape_cast %166 : vector<8x8xbf16> to vector<1x8x8xbf16>
      tpu.vector_store %arg18[%c0_89, %c0_90, %c0_91], %169 {strides = array<i32>} : memref<4x8x8xbf16, #tpu.memory_space<vmem>>, vector<1x8x8xbf16>,
      %170 = vector.extract_strided_slice %165 {offsets = [0, 0], sizes = [8, 8], strides = [1, 1]} : vector<8x32xbf16> to vector<8x8xbf16>
      %c0_92 = arith.constant 0 : index
      %c0_93 = arith.constant 0 : index
      %c0_94 = arith.constant 0 : index
      %171 = vector.load %arg19[%c0_92, %c0_93, %c0_94] : memref<4x8x8xbf16, #tpu.memory_space<vmem>>, vector<1x8x8xbf16>
      %172 = vector.shape_cast %171 : vector<1x8x8xbf16> to vector<8x8xbf16>
      %173 = vector.shape_cast %170 : vector<8x8xbf16> to vector<1x8x8xbf16>
      tpu.vector_store %arg19[%c0_92, %c0_93, %c0_94], %173 {strides = array<i32>} : memref<4x8x8xbf16, #tpu.memory_space<vmem>>, vector<1x8x8xbf16>,
      %174 = vector.extract_strided_slice %164 {offsets = [0, 8], sizes = [8, 8], strides = [1, 1]} : vector<8x32xbf16> to vector<8x8xbf16>
      %c1_95 = arith.constant 1 : index
      %c0_96 = arith.constant 0 : index
      %c0_97 = arith.constant 0 : index
      %175 = vector.load %arg18[%c1_95, %c0_96, %c0_97] : memref<4x8x8xbf16, #tpu.memory_space<vmem>>, vector<1x8x8xbf16>
      %176 = vector.shape_cast %175 : vector<1x8x8xbf16> to vector<8x8xbf16>
      %177 = vector.shape_cast %174 : vector<8x8xbf16> to vector<1x8x8xbf16>
      tpu.vector_store %arg18[%c1_95, %c0_96, %c0_97], %177 {strides = array<i32>} : memref<4x8x8xbf16, #tpu.memory_space<vmem>>, vector<1x8x8xbf16>,
      %178 = vector.extract_strided_slice %165 {offsets = [0, 8], sizes = [8, 8], strides = [1, 1]} : vector<8x32xbf16> to vector<8x8xbf16>
      %c1_98 = arith.constant 1 : index
      %c0_99 = arith.constant 0 : index
      %c0_100 = arith.constant 0 : index
      %179 = vector.load %arg19[%c1_98, %c0_99, %c0_100] : memref<4x8x8xbf16, #tpu.memory_space<vmem>>, vector<1x8x8xbf16>
      %180 = vector.shape_cast %179 : vector<1x8x8xbf16> to vector<8x8xbf16>
      %181 = vector.shape_cast %178 : vector<8x8xbf16> to vector<1x8x8xbf16>
      tpu.vector_store %arg19[%c1_98, %c0_99, %c0_100], %181 {strides = array<i32>} : memref<4x8x8xbf16, #tpu.memory_space<vmem>>, vector<1x8x8xbf16>,
      %182 = vector.extract_strided_slice %164 {offsets = [0, 16], sizes = [8, 8], strides = [1, 1]} : vector<8x32xbf16> to vector<8x8xbf16>
      %c2_101 = arith.constant 2 : index
      %c0_102 = arith.constant 0 : index
      %c0_103 = arith.constant 0 : index
      %183 = vector.load %arg18[%c2_101, %c0_102, %c0_103] : memref<4x8x8xbf16, #tpu.memory_space<vmem>>, vector<1x8x8xbf16>
      %184 = vector.shape_cast %183 : vector<1x8x8xbf16> to vector<8x8xbf16>
      %185 = vector.shape_cast %182 : vector<8x8xbf16> to vector<1x8x8xbf16>
      tpu.vector_store %arg18[%c2_101, %c0_102, %c0_103], %185 {strides = array<i32>} : memref<4x8x8xbf16, #tpu.memory_space<vmem>>, vector<1x8x8xbf16>,
      %186 = vector.extract_strided_slice %165 {offsets = [0, 16], sizes = [8, 8], strides = [1, 1]} : vector<8x32xbf16> to vector<8x8xbf16>
      %c2_104 = arith.constant 2 : index
      %c0_105 = arith.constant 0 : index
      %c0_106 = arith.constant 0 : index
      %187 = vector.load %arg19[%c2_104, %c0_105, %c0_106] : memref<4x8x8xbf16, #tpu.memory_space<vmem>>, vector<1x8x8xbf16>
      %188 = vector.shape_cast %187 : vector<1x8x8xbf16> to vector<8x8xbf16>
      %189 = vector.shape_cast %186 : vector<8x8xbf16> to vector<1x8x8xbf16>
      tpu.vector_store %arg19[%c2_104, %c0_105, %c0_106], %189 {strides = array<i32>} : memref<4x8x8xbf16, #tpu.memory_space<vmem>>, vector<1x8x8xbf16>,
      %190 = vector.extract_strided_slice %164 {offsets = [0, 24], sizes = [8, 8], strides = [1, 1]} : vector<8x32xbf16> to vector<8x8xbf16>
      %c3_107 = arith.constant 3 : index
      %c0_108 = arith.constant 0 : index
      %c0_109 = arith.constant 0 : index
      %191 = vector.load %arg18[%c3_107, %c0_108, %c0_109] : memref<4x8x8xbf16, #tpu.memory_space<vmem>>, vector<1x8x8xbf16>
      %192 = vector.shape_cast %191 : vector<1x8x8xbf16> to vector<8x8xbf16>
      %193 = vector.shape_cast %190 : vector<8x8xbf16> to vector<1x8x8xbf16>
      tpu.vector_store %arg18[%c3_107, %c0_108, %c0_109], %193 {strides = array<i32>} : memref<4x8x8xbf16, #tpu.memory_space<vmem>>, vector<1x8x8xbf16>,
      %194 = vector.extract_strided_slice %165 {offsets = [0, 24], sizes = [8, 8], strides = [1, 1]} : vector<8x32xbf16> to vector<8x8xbf16>
      %c3_110 = arith.constant 3 : index
      %c0_111 = arith.constant 0 : index
      %c0_112 = arith.constant 0 : index
      %195 = vector.load %arg19[%c3_110, %c0_111, %c0_112] : memref<4x8x8xbf16, #tpu.memory_space<vmem>>, vector<1x8x8xbf16>
      %196 = vector.shape_cast %195 : vector<1x8x8xbf16> to vector<8x8xbf16>
      %197 = vector.shape_cast %194 : vector<8x8xbf16> to vector<1x8x8xbf16>
      tpu.vector_store %arg19[%c3_110, %c0_111, %c0_112], %197 {strides = array<i32>} : memref<4x8x8xbf16, #tpu.memory_space<vmem>>, vector<1x8x8xbf16>,
    } else {
    }
    %c0 = arith.constant 0 : index
    %c0_1 = arith.constant 0 : index
    %c0_2 = arith.constant 0 : index
    %3 = vector.load %arg3[%c0, %c0_1, %c0_2] : memref<1x8x32xf32, #tpu.memory_space<vmem>>, vector<1x8x32xf32>
    %4 = vector.shape_cast %3 : vector<1x8x32xf32> to vector<8x32xf32>
    %5 = arith.truncf %4 : vector<8x32xf32> to vector<8x32xbf16>
    %c0_3 = arith.constant 0 : index
    %c0_4 = arith.constant 0 : index
    %6 = vector.load %arg4[%c0_3, %c0_4] : memref<32x32xbf16, #tpu.memory_space<vmem>>, vector<32x32xbf16>
    %cst = arith.constant dense<0.000000e+00> : vector<8x32xf32>
    %7 = tpu.matmul %5, %6, %cst {dimension_numbers = #tpu.dot_dimension_numbers<[1], [0], [0], [1], [0, 0, 1, 1], [], []>} : vector<8x32xbf16>, vector<32x32xbf16>, vector<8x32xf32> -> vector<8x32xf32>
    %cst_5 = arith.constant 0.353553385 : f32
    %8 = vector.broadcast %cst_5 : f32 to vector<8x32xf32>
    %9 = arith.mulf %7, %8 : vector<8x32xf32>
    %10 = arith.truncf %9 : vector<8x32xf32> to vector<8x32xbf16>
    %11 = vector.extract_strided_slice %10 {offsets = [0, 0], sizes = [8, 8], strides = [1, 1]} : vector<8x32xbf16> to vector<8x8xbf16>
    %c0_6 = arith.constant 0 : index
    %c0_7 = arith.constant 0 : index
    %c0_8 = arith.constant 0 : index
    %12 = vector.load %arg18[%c0_6, %c0_7, %c0_8] : memref<4x8x8xbf16, #tpu.memory_space<vmem>>, vector<1x8x8xbf16>
    %13 = vector.shape_cast %12 : vector<1x8x8xbf16> to vector<8x8xbf16>
    %cst_9 = arith.constant dense<0.000000e+00> : vector<8x8xf32>
    %14 = tpu.matmul %11, %13, %cst_9 {dimension_numbers = #tpu.dot_dimension_numbers<[1], [1], [0], [0], [0, 0, 1, 0], [], []>} : vector<8x8xbf16>, vector<8x8xbf16>, vector<8x8xf32> -> vector<8x8xf32>
    %cst_10 = arith.constant dense<0xFF800000> : vector<8xf32>
    %15 = vector.multi_reduction <maximumf>, %14, %cst_10 [1] : vector<8x8xf32> to vector<8xf32>
    %16 = vector.shape_cast %15 : vector<8xf32> to vector<8x1xf32>
    %17 = vector.broadcast %16 : vector<8x1xf32> to vector<8x8xf32>
    %18 = arith.subf %14, %17 : vector<8x8xf32>
    %19 = math.exp %18 : vector<8x8xf32>
    %cst_11 = arith.constant dense<0.000000e+00> : vector<8xf32>
    %20 = vector.multi_reduction <add>, %19, %cst_11 [1] : vector<8x8xf32> to vector<8xf32>
    %21 = vector.shape_cast %20 : vector<8xf32> to vector<8x1xf32>
    %22 = tpu.reciprocal %21 {approx = true} : vector<8x1xf32> -> vector<8x1xf32>
    %23 = vector.broadcast %22 : vector<8x1xf32> to vector<8x8xf32>
    %24 = arith.mulf %19, %23 : vector<8x8xf32>
    %25 = arith.truncf %24 : vector<8x8xf32> to vector<8x8xbf16>
    %c0_12 = arith.constant 0 : index
    %c0_13 = arith.constant 0 : index
    %c0_14 = arith.constant 0 : index
    %26 = vector.load %arg19[%c0_12, %c0_13, %c0_14] : memref<4x8x8xbf16, #tpu.memory_space<vmem>>, vector<1x8x8xbf16>
    %27 = vector.shape_cast %26 : vector<1x8x8xbf16> to vector<8x8xbf16>
    %cst_15 = arith.constant dense<0.000000e+00> : vector<8x8xf32>
    %28 = tpu.matmul %25, %27, %cst_15 {dimension_numbers = #tpu.dot_dimension_numbers<[1], [0], [0], [1], [0, 0, 1, 1], [], []>} : vector<8x8xbf16>, vector<8x8xbf16>, vector<8x8xf32> -> vector<8x8xf32>
    %29 = vector.extract_strided_slice %10 {offsets = [0, 8], sizes = [8, 8], strides = [1, 1]} : vector<8x32xbf16> to vector<8x8xbf16>
    %c1 = arith.constant 1 : index
    %c0_16 = arith.constant 0 : index
    %c0_17 = arith.constant 0 : index
    %30 = vector.load %arg18[%c1, %c0_16, %c0_17] : memref<4x8x8xbf16, #tpu.memory_space<vmem>>, vector<1x8x8xbf16>
    %31 = vector.shape_cast %30 : vector<1x8x8xbf16> to vector<8x8xbf16>
    %cst_18 = arith.constant dense<0.000000e+00> : vector<8x8xf32>
    %32 = tpu.matmul %29, %31, %cst_18 {dimension_numbers = #tpu.dot_dimension_numbers<[1], [1], [0], [0], [0, 0, 1, 0], [], []>} : vector<8x8xbf16>, vector<8x8xbf16>, vector<8x8xf32> -> vector<8x8xf32>
    %cst_19 = arith.constant dense<0xFF800000> : vector<8xf32>
    %33 = vector.multi_reduction <maximumf>, %32, %cst_19 [1] : vector<8x8xf32> to vector<8xf32>
    %34 = vector.shape_cast %33 : vector<8xf32> to vector<8x1xf32>
    %35 = vector.broadcast %34 : vector<8x1xf32> to vector<8x8xf32>
    %36 = arith.subf %32, %35 : vector<8x8xf32>
    %37 = math.exp %36 : vector<8x8xf32>
    %cst_20 = arith.constant dense<0.000000e+00> : vector<8xf32>
    %38 = vector.multi_reduction <add>, %37, %cst_20 [1] : vector<8x8xf32> to vector<8xf32>
    %39 = vector.shape_cast %38 : vector<8xf32> to vector<8x1xf32>
    %40 = tpu.reciprocal %39 {approx = true} : vector<8x1xf32> -> vector<8x1xf32>
    %41 = vector.broadcast %40 : vector<8x1xf32> to vector<8x8xf32>
    %42 = arith.mulf %37, %41 : vector<8x8xf32>
    %43 = arith.truncf %42 : vector<8x8xf32> to vector<8x8xbf16>
    %c1_21 = arith.constant 1 : index
    %c0_22 = arith.constant 0 : index
    %c0_23 = arith.constant 0 : index
    %44 = vector.load %arg19[%c1_21, %c0_22, %c0_23] : memref<4x8x8xbf16, #tpu.memory_space<vmem>>, vector<1x8x8xbf16>
    %45 = vector.shape_cast %44 : vector<1x8x8xbf16> to vector<8x8xbf16>
    %cst_24 = arith.constant dense<0.000000e+00> : vector<8x8xf32>
    %46 = tpu.matmul %43, %45, %cst_24 {dimension_numbers = #tpu.dot_dimension_numbers<[1], [0], [0], [1], [0, 0, 1, 1], [], []>} : vector<8x8xbf16>, vector<8x8xbf16>, vector<8x8xf32> -> vector<8x8xf32>
    %47 = vector.extract_strided_slice %10 {offsets = [0, 16], sizes = [8, 8], strides = [1, 1]} : vector<8x32xbf16> to vector<8x8xbf16>
    %c2 = arith.constant 2 : index
    %c0_25 = arith.constant 0 : index
    %c0_26 = arith.constant 0 : index
    %48 = vector.load %arg18[%c2, %c0_25, %c0_26] : memref<4x8x8xbf16, #tpu.memory_space<vmem>>, vector<1x8x8xbf16>
    %49 = vector.shape_cast %48 : vector<1x8x8xbf16> to vector<8x8xbf16>
    %cst_27 = arith.constant dense<0.000000e+00> : vector<8x8xf32>
    %50 = tpu.matmul %47, %49, %cst_27 {dimension_numbers = #tpu.dot_dimension_numbers<[1], [1], [0], [0], [0, 0, 1, 0], [], []>} : vector<8x8xbf16>, vector<8x8xbf16>, vector<8x8xf32> -> vector<8x8xf32>
    %cst_28 = arith.constant dense<0xFF800000> : vector<8xf32>
    %51 = vector.multi_reduction <maximumf>, %50, %cst_28 [1] : vector<8x8xf32> to vector<8xf32>
    %52 = vector.shape_cast %51 : vector<8xf32> to vector<8x1xf32>
    %53 = vector.broadcast %52 : vector<8x1xf32> to vector<8x8xf32>
    %54 = arith.subf %50, %53 : vector<8x8xf32>
    %55 = math.exp %54 : vector<8x8xf32>
    %cst_29 = arith.constant dense<0.000000e+00> : vector<8xf32>
    %56 = vector.multi_reduction <add>, %55, %cst_29 [1] : vector<8x8xf32> to vector<8xf32>
    %57 = vector.shape_cast %56 : vector<8xf32> to vector<8x1xf32>
    %58 = tpu.reciprocal %57 {approx = true} : vector<8x1xf32> -> vector<8x1xf32>
    %59 = vector.broadcast %58 : vector<8x1xf32> to vector<8x8xf32>
    %60 = arith.mulf %55, %59 : vector<8x8xf32>
    %61 = arith.truncf %60 : vector<8x8xf32> to vector<8x8xbf16>
    %c2_30 = arith.constant 2 : index
    %c0_31 = arith.constant 0 : index
    %c0_32 = arith.constant 0 : index
    %62 = vector.load %arg19[%c2_30, %c0_31, %c0_32] : memref<4x8x8xbf16, #tpu.memory_space<vmem>>, vector<1x8x8xbf16>
    %63 = vector.shape_cast %62 : vector<1x8x8xbf16> to vector<8x8xbf16>
    %cst_33 = arith.constant dense<0.000000e+00> : vector<8x8xf32>
    %64 = tpu.matmul %61, %63, %cst_33 {dimension_numbers = #tpu.dot_dimension_numbers<[1], [0], [0], [1], [0, 0, 1, 1], [], []>} : vector<8x8xbf16>, vector<8x8xbf16>, vector<8x8xf32> -> vector<8x8xf32>
    %65 = vector.extract_strided_slice %10 {offsets = [0, 24], sizes = [8, 8], strides = [1, 1]} : vector<8x32xbf16> to vector<8x8xbf16>
    %c3 = arith.constant 3 : index
    %c0_34 = arith.constant 0 : index
    %c0_35 = arith.constant 0 : index
    %66 = vector.load %arg18[%c3, %c0_34, %c0_35] : memref<4x8x8xbf16, #tpu.memory_space<vmem>>, vector<1x8x8xbf16>
    %67 = vector.shape_cast %66 : vector<1x8x8xbf16> to vector<8x8xbf16>
    %cst_36 = arith.constant dense<0.000000e+00> : vector<8x8xf32>
    %68 = tpu.matmul %65, %67, %cst_36 {dimension_numbers = #tpu.dot_dimension_numbers<[1], [1], [0], [0], [0, 0, 1, 0], [], []>} : vector<8x8xbf16>, vector<8x8xbf16>, vector<8x8xf32> -> vector<8x8xf32>
    %cst_37 = arith.constant dense<0xFF800000> : vector<8xf32>
    %69 = vector.multi_reduction <maximumf>, %68, %cst_37 [1] : vector<8x8xf32> to vector<8xf32>
    %70 = vector.shape_cast %69 : vector<8xf32> to vector<8x1xf32>
    %71 = vector.broadcast %70 : vector<8x1xf32> to vector<8x8xf32>
    %72 = arith.subf %68, %71 : vector<8x8xf32>
    %73 = math.exp %72 : vector<8x8xf32>
    %cst_38 = arith.constant dense<0.000000e+00> : vector<8xf32>
    %74 = vector.multi_reduction <add>, %73, %cst_38 [1] : vector<8x8xf32> to vector<8xf32>
    %75 = vector.shape_cast %74 : vector<8xf32> to vector<8x1xf32>
    %76 = tpu.reciprocal %75 {approx = true} : vector<8x1xf32> -> vector<8x1xf32>
    %77 = vector.broadcast %76 : vector<8x1xf32> to vector<8x8xf32>
    %78 = arith.mulf %73, %77 : vector<8x8xf32>
    %79 = arith.truncf %78 : vector<8x8xf32> to vector<8x8xbf16>
    %c3_39 = arith.constant 3 : index
    %c0_40 = arith.constant 0 : index
    %c0_41 = arith.constant 0 : index
    %80 = vector.load %arg19[%c3_39, %c0_40, %c0_41] : memref<4x8x8xbf16, #tpu.memory_space<vmem>>, vector<1x8x8xbf16>
    %81 = vector.shape_cast %80 : vector<1x8x8xbf16> to vector<8x8xbf16>
    %cst_42 = arith.constant dense<0.000000e+00> : vector<8x8xf32>
    %82 = tpu.matmul %79, %81, %cst_42 {dimension_numbers = #tpu.dot_dimension_numbers<[1], [0], [0], [1], [0, 0, 1, 1], [], []>} : vector<8x8xbf16>, vector<8x8xbf16>, vector<8x8xf32> -> vector<8x8xf32>
    %83 = tpu.concatenate %28, %46, %64, %82 in 1 : vector<8x8xf32>, vector<8x8xf32>, vector<8x8xf32>, vector<8x8xf32> -> vector<8x32xf32>
    %84 = arith.truncf %83 : vector<8x32xf32> to vector<8x32xbf16>
    %c0_43 = arith.constant 0 : index
    %c0_44 = arith.constant 0 : index
    %85 = vector.load %arg7[%c0_43, %c0_44] : memref<32x32xbf16, #tpu.memory_space<vmem>>, vector<32x32xbf16>
    %cst_45 = arith.constant dense<0.000000e+00> : vector<8x32xf32>
    %86 = tpu.matmul %84, %85, %cst_45 {dimension_numbers = #tpu.dot_dimension_numbers<[1], [0], [0], [1], [0, 0, 1, 1], [], []>} : vector<8x32xbf16>, vector<32x32xbf16>, vector<8x32xf32> -> vector<8x32xf32>
    %c0_46 = arith.constant 0 : index
    %c0_47 = arith.constant 0 : index
    %87 = vector.load %arg8[%c0_46, %c0_47] : memref<1x32xf32, #tpu.memory_space<vmem>>, vector<1x32xf32>
    %88 = vector.broadcast %87 : vector<1x32xf32> to vector<8x32xf32>
    %89 = arith.addf %86, %88 : vector<8x32xf32>
    %90 = arith.addf %89, %4 : vector<8x32xf32>
    %c0_48 = arith.constant 0 : index
    %c0_49 = arith.constant 0 : index
    %91 = vector.load %arg9[%c0_48, %c0_49] : memref<1x32xf32, #tpu.memory_space<vmem>>, vector<1x32xf32>
    %c0_50 = arith.constant 0 : index
    %c0_51 = arith.constant 0 : index
    %92 = vector.load %arg10[%c0_50, %c0_51] : memref<1x32xf32, #tpu.memory_space<vmem>>, vector<1x32xf32>
    %cst_52 = arith.constant dense<0.000000e+00> : vector<8xf32>
    %93 = vector.multi_reduction <add>, %90, %cst_52 [1] : vector<8x32xf32> to vector<8xf32>
    %94 = vector.shape_cast %93 : vector<8xf32> to vector<8x1xf32>
    %cst_53 = arith.constant 3.200000e+01 : f32
    %95 = vector.broadcast %cst_53 : f32 to vector<8x1xf32>
    %96 = arith.divf %94, %95 : vector<8x1xf32>
    %97 = vector.broadcast %96 : vector<8x1xf32> to vector<8x32xf32>
    %98 = arith.subf %90, %97 : vector<8x32xf32>
    %99 = arith.mulf %98, %98 : vector<8x32xf32>
    %cst_54 = arith.constant dense<0.000000e+00> : vector<8xf32>
    %100 = vector.multi_reduction <add>, %99, %cst_54 [1] : vector<8x32xf32> to vector<8xf32>
    %101 = vector.shape_cast %100 : vector<8xf32> to vector<8x1xf32>
    %cst_55 = arith.constant 3.200000e+01 : f32
    %102 = vector.broadcast %cst_55 : f32 to vector<8x1xf32>
    %103 = arith.divf %101, %102 : vector<8x1xf32>
    %104 = vector.broadcast %96 : vector<8x1xf32> to vector<8x32xf32>
    %105 = arith.subf %90, %104 : vector<8x32xf32>
    %cst_56 = arith.constant 9.99999974E-6 : f32
    %106 = vector.broadcast %cst_56 : f32 to vector<8x1xf32>
    %107 = arith.addf %103, %106 : vector<8x1xf32>
    %108 = math.rsqrt %107 : vector<8x1xf32>
    %109 = vector.broadcast %108 : vector<8x1xf32> to vector<8x32xf32>
    %110 = arith.mulf %105, %109 : vector<8x32xf32>
    %111 = vector.broadcast %91 : vector<1x32xf32> to vector<8x32xf32>
    %112 = arith.mulf %110, %111 : vector<8x32xf32>
    %113 = vector.broadcast %92 : vector<1x32xf32> to vector<8x32xf32>
    %114 = arith.addf %112, %113 : vector<8x32xf32>
    %115 = arith.truncf %114 : vector<8x32xf32> to vector<8x32xbf16>
    %c0_57 = arith.constant 0 : index
    %c0_58 = arith.constant 0 : index
    %116 = vector.load %arg11[%c0_57, %c0_58] : memref<32x128xbf16, #tpu.memory_space<vmem>>, vector<32x128xbf16>
    %cst_59 = arith.constant dense<0.000000e+00> : vector<8x128xf32>
    %117 = tpu.matmul %115, %116, %cst_59 {dimension_numbers = #tpu.dot_dimension_numbers<[1], [0], [0], [1], [0, 0, 1, 1], [], []>} : vector<8x32xbf16>, vector<32x128xbf16>, vector<8x128xf32> -> vector<8x128xf32>
    %c0_60 = arith.constant 0 : index
    %c0_61 = arith.constant 0 : index
    %118 = vector.load %arg12[%c0_60, %c0_61] : memref<1x128xf32, #tpu.memory_space<vmem>>, vector<1x128xf32>
    %119 = vector.broadcast %118 : vector<1x128xf32> to vector<8x128xf32>
    %120 = arith.addf %117, %119 : vector<8x128xf32>
    %cst_62 = arith.constant 0.000000e+00 : f32
    %121 = vector.broadcast %cst_62 : f32 to vector<8x128xf32>
    %122 = arith.maximumf %120, %121 : vector<8x128xf32>
    %123 = arith.truncf %122 : vector<8x128xf32> to vector<8x128xbf16>
    %c0_63 = arith.constant 0 : index
    %c0_64 = arith.constant 0 : index
    %124 = vector.load %arg13[%c0_63, %c0_64] : memref<128x32xbf16, #tpu.memory_space<vmem>>, vector<128x32xbf16>
    %cst_65 = arith.constant dense<0.000000e+00> : vector<8x32xf32>
    %125 = tpu.matmul %123, %124, %cst_65 {dimension_numbers = #tpu.dot_dimension_numbers<[1], [0], [0], [1], [0, 0, 1, 1], [], []>} : vector<8x128xbf16>, vector<128x32xbf16>, vector<8x32xf32> -> vector<8x32xf32>
    %c0_66 = arith.constant 0 : index
    %c0_67 = arith.constant 0 : index
    %126 = vector.load %arg14[%c0_66, %c0_67] : memref<1x32xf32, #tpu.memory_space<vmem>>, vector<1x32xf32>
    %127 = vector.broadcast %126 : vector<1x32xf32> to vector<8x32xf32>
    %128 = arith.addf %125, %127 : vector<8x32xf32>
    %129 = arith.addf %128, %114 : vector<8x32xf32>
    %c0_68 = arith.constant 0 : index
    %c0_69 = arith.constant 0 : index
    %130 = vector.load %arg15[%c0_68, %c0_69] : memref<1x32xf32, #tpu.memory_space<vmem>>, vector<1x32xf32>
    %c0_70 = arith.constant 0 : index
    %c0_71 = arith.constant 0 : index
    %131 = vector.load %arg16[%c0_70, %c0_71] : memref<1x32xf32, #tpu.memory_space<vmem>>, vector<1x32xf32>
    %cst_72 = arith.constant dense<0.000000e+00> : vector<8xf32>
    %132 = vector.multi_reduction <add>, %129, %cst_72 [1] : vector<8x32xf32> to vector<8xf32>
    %133 = vector.shape_cast %132 : vector<8xf32> to vector<8x1xf32>
    %cst_73 = arith.constant 3.200000e+01 : f32
    %134 = vector.broadcast %cst_73 : f32 to vector<8x1xf32>
    %135 = arith.divf %133, %134 : vector<8x1xf32>
    %136 = vector.broadcast %135 : vector<8x1xf32> to vector<8x32xf32>
    %137 = arith.subf %129, %136 : vector<8x32xf32>
    %138 = arith.mulf %137, %137 : vector<8x32xf32>
    %cst_74 = arith.constant dense<0.000000e+00> : vector<8xf32>
    %139 = vector.multi_reduction <add>, %138, %cst_74 [1] : vector<8x32xf32> to vector<8xf32>
    %140 = vector.shape_cast %139 : vector<8xf32> to vector<8x1xf32>
    %cst_75 = arith.constant 3.200000e+01 : f32
    %141 = vector.broadcast %cst_75 : f32 to vector<8x1xf32>
    %142 = arith.divf %140, %141 : vector<8x1xf32>
    %143 = vector.broadcast %135 : vector<8x1xf32> to vector<8x32xf32>
    %144 = arith.subf %129, %143 : vector<8x32xf32>
    %cst_76 = arith.constant 9.99999974E-6 : f32
    %145 = vector.broadcast %cst_76 : f32 to vector<8x1xf32>
    %146 = arith.addf %142, %145 : vector<8x1xf32>
    %147 = math.rsqrt %146 : vector<8x1xf32>
    %148 = vector.broadcast %147 : vector<8x1xf32> to vector<8x32xf32>
    %149 = arith.mulf %144, %148 : vector<8x32xf32>
    %150 = vector.broadcast %130 : vector<1x32xf32> to vector<8x32xf32>
    %151 = arith.mulf %149, %150 : vector<8x32xf32>
    %152 = vector.broadcast %131 : vector<1x32xf32> to vector<8x32xf32>
    %153 = arith.addf %151, %152 : vector<8x32xf32>
    %c0_77 = arith.constant 0 : index
    %c0_78 = arith.constant 0 : index
    %c0_79 = arith.constant 0 : index
    %154 = vector.load %arg17[%c0_77, %c0_78, %c0_79] : memref<1x8x32xf32, #tpu.memory_space<vmem>>, vector<1x8x32xf32>
    %155 = vector.shape_cast %154 : vector<1x8x32xf32> to vector<8x32xf32>
    %156 = vector.shape_cast %153 : vector<8x32xf32> to vector<1x8x32xf32>
    tpu.vector_store %arg17[%c0_77, %c0_78, %c0_79], %156 {strides = array<i32>} : memref<1x8x32xf32, #tpu.memory_space<vmem>>, vector<1x8x32xf32>,
    return
  }
  func.func @transform_0(%arg0: i32, %arg1: i32) -> (i32, i32, i32) {
    %c0_i32 = arith.constant 0 : i32
    %c0_i32_0 = arith.constant 0 : i32
    %c0_i32_1 = arith.constant 0 : i32
    return %arg0, %c0_i32, %c0_i32_0 : i32, i32, i32
  }
  func.func @transform_1(%arg0: i32, %arg1: i32) -> (i32, i32, i32) {
    %c0_i32 = arith.constant 0 : i32
    %c0_i32_0 = arith.constant 0 : i32
    return %arg0, %arg1, %c0_i32 : i32, i32, i32
  }
  func.func @transform_2(%arg0: i32, %arg1: i32) -> (i32, i32) {
    %c0_i32 = arith.constant 0 : i32
    %c0_i32_0 = arith.constant 0 : i32
    %c0_i32_1 = arith.constant 0 : i32
    return %c0_i32, %c0_i32_0 : i32, i32
  }
  func.func @transform_3(%arg0: i32, %arg1: i32) -> (i32, i32) {
    %c0_i32 = arith.constant 0 : i32
    %c0_i32_0 = arith.constant 0 : i32
    %c0_i32_1 = arith.constant 0 : i32
    return %c0_i32, %c0_i32_0 : i32, i32
  }
  func.func @transform_4(%arg0: i32, %arg1: i32) -> (i32, i32) {
    %c0_i32 = arith.constant 0 : i32
    %c0_i32_0 = arith.constant 0 : i32
    %c0_i32_1 = arith.constant 0 : i32
    return %c0_i32, %c0_i32_0 : i32, i32
  }
  func.func @transform_5(%arg0: i32, %arg1: i32) -> (i32, i32) {
    %c0_i32 = arith.constant 0 : i32
    %c0_i32_0 = arith.constant 0 : i32
    %c0_i32_1 = arith.constant 0 : i32
    return %c0_i32, %c0_i32_0 : i32, i32
  }
  func.func @transform_6(%arg0: i32, %arg1: i32) -> (i32, i32) {
    %c0_i32 = arith.constant 0 : i32
    %c0_i32_0 = arith.constant 0 : i32
    %c0_i32_1 = arith.constant 0 : i32
    return %c0_i32, %c0_i32_0 : i32, i32
  }
  func.func @transform_7(%arg0: i32, %arg1: i32) -> (i32, i32) {
    %c0_i32 = arith.constant 0 : i32
    %c0_i32_0 = arith.constant 0 : i32
    %c0_i32_1 = arith.constant 0 : i32
    return %c0_i32, %c0_i32_0 : i32, i32
  }
  func.func @transform_8(%arg0: i32, %arg1: i32) -> (i32, i32) {
    %c0_i32 = arith.constant 0 : i32
    %c0_i32_0 = arith.constant 0 : i32
    %c0_i32_1 = arith.constant 0 : i32
    return %c0_i32, %c0_i32_0 : i32, i32
  }
  func.func @transform_9(%arg0: i32, %arg1: i32) -> (i32, i32) {
    %c0_i32 = arith.constant 0 : i32
    %c0_i32_0 = arith.constant 0 : i32
    %c0_i32_1 = arith.constant 0 : i32
    return %c0_i32, %c0_i32_0 : i32, i32
  }
  func.func @transform_10(%arg0: i32, %arg1: i32) -> (i32, i32) {
    %c0_i32 = arith.constant 0 : i32
    %c0_i32_0 = arith.constant 0 : i32
    %c0_i32_1 = arith.constant 0 : i32
    return %c0_i32, %c0_i32_0 : i32, i32
  }
  func.func @transform_11(%arg0: i32, %arg1: i32) -> (i32, i32) {
    %c0_i32 = arith.constant 0 : i32
    %c0_i32_0 = arith.constant 0 : i32
    %c0_i32_1 = arith.constant 0 : i32
    return %c0_i32, %c0_i32_0 : i32, i32
  }
  func.func @transform_12(%arg0: i32, %arg1: i32) -> (i32, i32) {
    %c0_i32 = arith.constant 0 : i32
    %c0_i32_0 = arith.constant 0 : i32
    %c0_i32_1 = arith.constant 0 : i32
    return %c0_i32, %c0_i32_0 : i32, i32
  }
  func.func @transform_13(%arg0: i32, %arg1: i32) -> (i32, i32) {
    %c0_i32 = arith.constant 0 : i32
    %c0_i32_0 = arith.constant 0 : i32
    %c0_i32_1 = arith.constant 0 : i32
    return %c0_i32, %c0_i32_0 : i32, i32
  }
  func.func @transform_14(%arg0: i32, %arg1: i32) -> (i32, i32) {
    %c0_i32 = arith.constant 0 : i32
    %c0_i32_0 = arith.constant 0 : i32
    %c0_i32_1 = arith.constant 0 : i32
    return %c0_i32, %c0_i32_0 : i32, i32
  }
  func.func @transform_15(%arg0: i32, %arg1: i32) -> (i32, i32, i32) {
    %c0_i32 = arith.constant 0 : i32
    %c0_i32_0 = arith.constant 0 : i32
    return %arg0, %arg1, %c0_i32 : i32, i32, i32
  }
}

</mosaic_0001>

<llo_original>
// kernel: tpu_custom_call.1
$region0: #{tpu_custom_call.1}
  #allocation0 [shape = 'u32[]', space=smem, size = 0x4, offset = 0x4, fixed_abs, tag = 'smem constant byte address 0x4 - core index']
  #allocation1 [shape = 'u32[144,128]{1,0:T(1,128)}', space=vmem, size = 0x12000, scoped, tag = 'internal scratch']
  #allocation2 [shape = 'bf16[4,8,8]{2,1,0:T(8,128)(2,1)}', space=vmem, size = 0x2000, scoped, tag = 'scratch operand']
  #allocation3 [shape = 'bf16[4,8,8]{2,1,0:T(8,128)(2,1)}', space=vmem, size = 0x2000, scoped, tag = 'scratch operand']
  %s0 = inlined_call_operand.vmem [shape: f32[2,8,32], index: 0, kind: input, shape index: {}]
  %s1 = inlined_call_operand.vmem [shape: f32[2,8,32], index: 1, kind: input, shape index: {}]
  %s2 = inlined_call_operand.vmem [shape: bf16[32,32], index: 2, kind: input, shape index: {}]
  %s3 = inlined_call_operand.vmem [shape: bf16[32,32], index: 3, kind: input, shape index: {}]
  %s4 = inlined_call_operand.vmem [shape: bf16[32,32], index: 4, kind: input, shape index: {}]
  %s5 = inlined_call_operand.hbm [shape: bf16[32,32], index: 5, kind: input, shape index: {}]
  %s6 = inlined_call_operand.hbm [shape: f32[1,32], index: 6, kind: input, shape index: {}]
  %s7 = inlined_call_operand.hbm [shape: f32[1,32], index: 7, kind: input, shape index: {}]
  %s8 = inlined_call_operand.hbm [shape: f32[1,32], index: 8, kind: input, shape index: {}]
  %s9 = inlined_call_operand.vmem [shape: bf16[32,128], index: 9, kind: input, shape index: {}]
  %s10 = inlined_call_operand.vmem [shape: f32[1,128], index: 10, kind: input, shape index: {}]
  %s11 = inlined_call_operand.vmem [shape: bf16[128,32], index: 11, kind: input, shape index: {}]
  %s12 = inlined_call_operand.vmem [shape: f32[1,32], index: 12, kind: input, shape index: {}]
  %s13 = inlined_call_operand.vmem [shape: f32[1,32], index: 13, kind: input, shape index: {}]
  %s14 = inlined_call_operand.vmem [shape: f32[1,32], index: 14, kind: input, shape index: {}]
  %s15 = inlined_call_operand.hbm [shape: f32[2,8,32], index: 15, kind: output, shape index: {}]
  %s16 = sld [smem:[#allocation0]]
  $region113: #{tpu_custom_call.1} parent=0
    _
  %s18 = ssub.s32 1, %s16
  %s19 = scalar_select 0, %s18, %s16
  $region1: #{tpu_custom_call.1} parent=0
    #allocation4 [shape = 'u8[8192]{0}', space=vmem, size = 0x2000, scoped, tag = 'input window, operand 5, single buffered']
    #allocation5 [shape = 's32[2]{0}', space=sflag, size = 0x8, scoped, tag = 'scoped memory for tpu_custom_call.1']
    #allocation6 [shape = 's32[2]{0}', space=sflag, size = 0x8, scoped, tag = 'scoped memory for tpu_custom_call.1']
    #allocation7 [shape = 'u8[512]{0}', space=vmem, size = 0x400, scoped, tag = 'input window, operand 6, single buffered']
    #allocation8 [shape = 's32[1]{0}', space=sflag, size = 0x4, scoped, tag = 'scoped memory for tpu_custom_call.1']
    #allocation9 [shape = 'u8[512]{0}', space=vmem, size = 0x400, scoped, tag = 'input window, operand 7, single buffered']
    #allocation10 [shape = 'u8[512]{0}', space=vmem, size = 0x400, scoped, tag = 'input window, operand 8, single buffered']
    #allocation11 [shape = 's32[1]{0}', space=sflag, size = 0x4, scoped, tag = 'scoped memory for tpu_custom_call.1']
    #allocation12 [shape = 'u8[8192]{0}', space=vmem, size = 0x2000, scoped, tag = 'output window, operand 0']
    %20 = vsyncpa [#allocation5], 0
    %21 = vsyncpa [#allocation8], 0
    %22 = vsyncpa [#allocation11], 0
    %23 = vsyncpa [#allocation6], 0
    %s24 = scalar_lea.sflag [#allocation6], 1
    %25 = vsyncpa %s24, 0
    loop: start=0, step=1, limit=4
    $region2: #{tpu_custom_call.1} parent=1 // loop_pre_header
      _
    $region3: #{tpu_custom_call.1} parent=1 // loop_header
      %s27 = sphi 0, %s31
      %p28 = scmp.ge.s32.totalorder %s27, 4
      %s34 = sphi 0, %s46
      %s35 = sphi 0, %s42
      %s36 = sphi 0, %s34
      %s37 = sphi 0, %s35
      %s38 = sphi 0, %s36
      %s39 = sphi 0, %s37
      %s49 = sphi 0, %s51
      %s52 = sphi 0, %s49
      %s53 = sphi 0, %s52
      %s69 = sphi 0, %s53
      %s77 = sphi 0, %s79
      %s80 = sphi 0, %s77
      %s81 = sphi 0, %s80
      %s97 = sphi 0, %s81
      %s101 = sphi 0, %s101
      %s103 = sphi 0, %s101
      %s104 = sphi 0, %s103
      %s118 = sphi 0, %s104
      %s122 = sphi 0, %s122
      %s124 = sphi 0, %s122
      %s125 = sphi 0, %s124
      %s139 = sphi 0, %s125
      %s143 = sphi 0, %s143
      %s145 = sphi 0, %s143
      %s146 = sphi 0, %s145
      %s160 = sphi 0, %s146
      %s164 = sphi 0, %s164
      %s166 = sphi 0, %s164
      %s167 = sphi 0, %s166
      %s181 = sphi 0, %s167
      %s185 = sphi 0, %s185
      %s187 = sphi 0, %s185
      %s188 = sphi 0, %s187
      %s202 = sphi 0, %s188
      %s206 = sphi 0, %s206
      %s208 = sphi 0, %s206
      %s209 = sphi 0, %s208
      %s223 = sphi 0, %s209
      %s227 = sphi 0, %s227
      %s229 = sphi 0, %s227
      %s230 = sphi 0, %s229
      %s244 = sphi 0, %s230
      %s248 = sphi 0, %s248
      %s250 = sphi 0, %s248
      %s251 = sphi 0, %s250
      %s265 = sphi 0, %s251
      %s269 = sphi 0, %s269
      %s271 = sphi 0, %s269
      %s272 = sphi 0, %s271
      %s286 = sphi 0, %s272
      %s290 = sphi 0, %s290
      %s292 = sphi 0, %s290
      %s293 = sphi 0, %s292
      %s307 = sphi 0, %s293
      %s311 = sphi 0, %s311
      %s313 = sphi 0, %s311
      %s314 = sphi 0, %s313
      %s328 = sphi 0, %s314
      %s332 = sphi 0, %s332
      %s334 = sphi 0, %s332
      %s335 = sphi 0, %s334
      %s349 = sphi 0, %s335
      %s353 = sphi 0, %s353
      %s355 = sphi 0, %s353
      %s356 = sphi 0, %s355
      %s370 = sphi 0, %s356
      %s378 = sphi 0, %s380
      %s381 = sphi 0, %s378
      %s382 = sphi 0, %s381
      %s398 = sphi 0, %s382
    $region4: #{tpu_custom_call.1} parent=1 // loop_header_branch
      %30 = sbr.rel (%p28) target = $region8
    $region5: #{tpu_custom_call.1} parent=1 // loop_body
      %s32 = ssub.s32 %s27, 1
      %s33 = ssub.s32 %s27, 2
      %s40 = sadd.s32 1, %s35
      %p41 = scmp.ge.s32.totalorder %s40, 1
      %s42 = scalar_select %p41, 0, %s40
      %s43 = sadd.s32 1, %s34
      %s44 = scalar_select %p41, %s43, %s34
      %p45 = scmp.ge.s32.totalorder %s44, 2
      %s46 = scalar_select %p45, 0, %s44
      %s47 = ssub.s32 %s34, %s46
      %p48 = scmp.eq.s32.totalorder %s47, 0
      %s50 = sadd.s32 %s49, 1
      %s51 = scalar_select %p48, %s49, %s50
      %p54 = pneg %p48
      %p55 = scmp.eq.s32.totalorder %s27, 1
      %p56 = por %p54, %p55
      %p57 = scmp.ne.s32.totalorder %s49, %s52
      %p58 = scmp.eq.s32.totalorder %s27, 0
      %p59 = por %p57, %p58
      %p60 = scmp.ne.s32.totalorder %s49, %s52
      %p61 = scmp.eq.s32.totalorder %s32, 1
      %p62 = por %p60, %p61
      %p63 = scmp.ne.s32.totalorder %s52, %s53
      %p64 = scmp.eq.s32.totalorder %s32, 0
      %p65 = por %p63, %p64
      %p66 = scmp.ne.s32.totalorder %s52, %s53
      %p67 = scmp.eq.s32.totalorder %s33, 1
      %p68 = por %p66, %p67
      %p70 = scmp.ne.s32.totalorder %s53, %s69
      %p71 = scmp.eq.s32.totalorder %s33, 0
      %p72 = por %p70, %p71
      %s73 = ssub.s32 %s34, %s46
      %s74 = ssub.s32 %s35, %s42
      %s75 = sor.u32 %s73, %s74
      %p76 = scmp.eq.s32.totalorder %s75, 0
      %s78 = sadd.s32 %s77, 1
      %s79 = scalar_select %p76, %s77, %s78
      %p82 = pneg %p76
      %p83 = scmp.eq.s32.totalorder %s27, 1
      %p84 = por %p82, %p83
      %p85 = scmp.ne.s32.totalorder %s77, %s80
      %p86 = scmp.eq.s32.totalorder %s27, 0
      %p87 = por %p85, %p86
      %p88 = scmp.ne.s32.totalorder %s77, %s80
      %p89 = scmp.eq.s32.totalorder %s32, 1
      %p90 = por %p88, %p89
      %p91 = scmp.ne.s32.totalorder %s80, %s81
      %p92 = scmp.eq.s32.totalorder %s32, 0
      %p93 = por %p91, %p92
      %p94 = scmp.ne.s32.totalorder %s80, %s81
      %p95 = scmp.eq.s32.totalorder %s33, 1
      %p96 = por %p94, %p95
      %p98 = scmp.ne.s32.totalorder %s81, %s97
      %p99 = scmp.eq.s32.totalorder %s33, 0
      %p100 = por %p98, %p99
      %s102 = sadd.s32 %s101, 1
      %p105 = scmp.eq.s32.totalorder %s27, 1
      %p106 = scmp.ne.s32.totalorder %s101, %s103
      %p107 = scmp.eq.s32.totalorder %s27, 0
      %p108 = por %p106, %p107
      %p109 = scmp.ne.s32.totalorder %s101, %s103
      %p110 = scmp.eq.s32.totalorder %s32, 1
      %p111 = por %p109, %p110
      %p112 = scmp.ne.s32.totalorder %s103, %s104
      %p113 = scmp.eq.s32.totalorder %s32, 0
      %p114 = por %p112, %p113
      %p115 = scmp.ne.s32.totalorder %s103, %s104
      %p116 = scmp.eq.s32.totalorder %s33, 1
      %p117 = por %p115, %p116
      %p119 = scmp.ne.s32.totalorder %s104, %s118
      %p120 = scmp.eq.s32.totalorder %s33, 0
      %p121 = por %p119, %p120
      %s123 = sadd.s32 %s122, 1
      %p126 = scmp.eq.s32.totalorder %s27, 1
      %p127 = scmp.ne.s32.totalorder %s122, %s124
      %p128 = scmp.eq.s32.totalorder %s27, 0
      %p129 = por %p127, %p128
      %p130 = scmp.ne.s32.totalorder %s122, %s124
      %p131 = scmp.eq.s32.totalorder %s32, 1
      %p132 = por %p130, %p131
      %p133 = scmp.ne.s32.totalorder %s124, %s125
      %p134 = scmp.eq.s32.totalorder %s32, 0
      %p135 = por %p133, %p134
      %p136 = scmp.ne.s32.totalorder %s124, %s125
      %p137 = scmp.eq.s32.totalorder %s33, 1
      %p138 = por %p136, %p137
      %p140 = scmp.ne.s32.totalorder %s125, %s139
      %p141 = scmp.eq.s32.totalorder %s33, 0
      %p142 = por %p140, %p141
      %s144 = sadd.s32 %s143, 1
      %p147 = scmp.eq.s32.totalorder %s27, 1
      %p148 = scmp.ne.s32.totalorder %s143, %s145
      %p149 = scmp.eq.s32.totalorder %s27, 0
      %p150 = por %p148, %p149
      %p151 = scmp.ne.s32.totalorder %s143, %s145
      %p152 = scmp.eq.s32.totalorder %s32, 1
      %p153 = por %p151, %p152
      %p154 = scmp.ne.s32.totalorder %s145, %s146
      %p155 = scmp.eq.s32.totalorder %s32, 0
      %p156 = por %p154, %p155
      %p157 = scmp.ne.s32.totalorder %s145, %s146
      %p158 = scmp.eq.s32.totalorder %s33, 1
      %p159 = por %p157, %p158
      %p161 = scmp.ne.s32.totalorder %s146, %s160
      %p162 = scmp.eq.s32.totalorder %s33, 0
      %p163 = por %p161, %p162
      %s165 = sadd.s32 %s164, 1
      %p168 = scmp.eq.s32.totalorder %s27, 1
      %p169 = scmp.ne.s32.totalorder %s164, %s166
      %p170 = scmp.eq.s32.totalorder %s27, 0
      %p171 = por %p169, %p170
      %p172 = scmp.ne.s32.totalorder %s164, %s166
      %p173 = scmp.eq.s32.totalorder %s32, 1
      %p174 = por %p172, %p173
      %p175 = scmp.ne.s32.totalorder %s166, %s167
      %p176 = scmp.eq.s32.totalorder %s32, 0
      %p177 = por %p175, %p176
      %p178 = scmp.ne.s32.totalorder %s166, %s167
      %p179 = scmp.eq.s32.totalorder %s33, 1
      %p180 = por %p178, %p179
      %p182 = scmp.ne.s32.totalorder %s167, %s181
      %p183 = scmp.eq.s32.totalorder %s33, 0
      %p184 = por %p182, %p183
      %s186 = sadd.s32 %s185, 1
      %p189 = scmp.eq.s32.totalorder %s27, 1
      %p190 = scmp.ne.s32.totalorder %s185, %s187
      %p191 = scmp.eq.s32.totalorder %s27, 0
      %p192 = por %p190, %p191
      %p193 = scmp.ne.s32.totalorder %s185, %s187
      %p194 = scmp.eq.s32.totalorder %s32, 1
      %p195 = por %p193, %p194
      %p196 = scmp.ne.s32.totalorder %s187, %s188
      %p197 = scmp.eq.s32.totalorder %s32, 0
      %p198 = por %p196, %p197
      %p199 = scmp.ne.s32.totalorder %s187, %s188
      %p200 = scmp.eq.s32.totalorder %s33, 1
      %p201 = por %p199, %p200
      %p203 = scmp.ne.s32.totalorder %s188, %s202
      %p204 = scmp.eq.s32.totalorder %s33, 0
      %p205 = por %p203, %p204
      %s207 = sadd.s32 %s206, 1
      %p210 = scmp.eq.s32.totalorder %s27, 1
      %p211 = scmp.ne.s32.totalorder %s206, %s208
      %p212 = scmp.eq.s32.totalorder %s27, 0
      %p213 = por %p211, %p212
      %p214 = scmp.ne.s32.totalorder %s206, %s208
      %p215 = scmp.eq.s32.totalorder %s32, 1
      %p216 = por %p214, %p215
      %p217 = scmp.ne.s32.totalorder %s208, %s209
      %p218 = scmp.eq.s32.totalorder %s32, 0
      %p219 = por %p217, %p218
      %p220 = scmp.ne.s32.totalorder %s208, %s209
      %p221 = scmp.eq.s32.totalorder %s33, 1
      %p222 = por %p220, %p221
      %p224 = scmp.ne.s32.totalorder %s209, %s223
      %p225 = scmp.eq.s32.totalorder %s33, 0
      %p226 = por %p224, %p225
      %s228 = sadd.s32 %s227, 1
      %p231 = scmp.eq.s32.totalorder %s27, 1
      %p232 = scmp.ne.s32.totalorder %s227, %s229
      %p233 = scmp.eq.s32.totalorder %s27, 0
      %p234 = por %p232, %p233
      %p235 = scmp.ne.s32.totalorder %s227, %s229
      %p236 = scmp.eq.s32.totalorder %s32, 1
      %p237 = por %p235, %p236
      %p238 = scmp.ne.s32.totalorder %s229, %s230
      %p239 = scmp.eq.s32.totalorder %s32, 0
      %p240 = por %p238, %p239
      %p241 = scmp.ne.s32.totalorder %s229, %s230
      %p242 = scmp.eq.s32.totalorder %s33, 1
      %p243 = por %p241, %p242
      %p245 = scmp.ne.s32.totalorder %s230, %s244
      %p246 = scmp.eq.s32.totalorder %s33, 0
      %p247 = por %p245, %p246
      %s249 = sadd.s32 %s248, 1
      %p252 = scmp.eq.s32.totalorder %s27, 1
      %p253 = scmp.ne.s32.totalorder %s248, %s250
      %p254 = scmp.eq.s32.totalorder %s27, 0
      %p255 = por %p253, %p254
      %p256 = scmp.ne.s32.totalorder %s248, %s250
      %p257 = scmp.eq.s32.totalorder %s32, 1
      %p258 = por %p256, %p257
      %p259 = scmp.ne.s32.totalorder %s250, %s251
      %p260 = scmp.eq.s32.totalorder %s32, 0
      %p261 = por %p259, %p260
      %p262 = scmp.ne.s32.totalorder %s250, %s251
      %p263 = scmp.eq.s32.totalorder %s33, 1
      %p264 = por %p262, %p263
      %p266 = scmp.ne.s32.totalorder %s251, %s265
      %p267 = scmp.eq.s32.totalorder %s33, 0
      %p268 = por %p266, %p267
      %s270 = sadd.s32 %s269, 1
      %p273 = scmp.eq.s32.totalorder %s27, 1
      %p274 = scmp.ne.s32.totalorder %s269, %s271
      %p275 = scmp.eq.s32.totalorder %s27, 0
      %p276 = por %p274, %p275
      %p277 = scmp.ne.s32.totalorder %s269, %s271
      %p278 = scmp.eq.s32.totalorder %s32, 1
      %p279 = por %p277, %p278
      %p280 = scmp.ne.s32.totalorder %s271, %s272
      %p281 = scmp.eq.s32.totalorder %s32, 0
      %p282 = por %p280, %p281
      %p283 = scmp.ne.s32.totalorder %s271, %s272
      %p284 = scmp.eq.s32.totalorder %s33, 1
      %p285 = por %p283, %p284
      %p287 = scmp.ne.s32.totalorder %s272, %s286
      %p288 = scmp.eq.s32.totalorder %s33, 0
      %p289 = por %p287, %p288
      %s291 = sadd.s32 %s290, 1
      %p294 = scmp.eq.s32.totalorder %s27, 1
      %p295 = scmp.ne.s32.totalorder %s290, %s292
      %p296 = scmp.eq.s32.totalorder %s27, 0
      %p297 = por %p295, %p296
      %p298 = scmp.ne.s32.totalorder %s290, %s292
      %p299 = scmp.eq.s32.totalorder %s32, 1
      %p300 = por %p298, %p299
      %p301 = scmp.ne.s32.totalorder %s292, %s293
      %p302 = scmp.eq.s32.totalorder %s32, 0
      %p303 = por %p301, %p302
      %p304 = scmp.ne.s32.totalorder %s292, %s293
      %p305 = scmp.eq.s32.totalorder %s33, 1
      %p306 = por %p304, %p305
      %p308 = scmp.ne.s32.totalorder %s293, %s307
      %p309 = scmp.eq.s32.totalorder %s33, 0
      %p310 = por %p308, %p309
      %s312 = sadd.s32 %s311, 1
      %p315 = scmp.eq.s32.totalorder %s27, 1
      %p316 = scmp.ne.s32.totalorder %s311, %s313
      %p317 = scmp.eq.s32.totalorder %s27, 0
      %p318 = por %p316, %p317
      %p319 = scmp.ne.s32.totalorder %s311, %s313
      %p320 = scmp.eq.s32.totalorder %s32, 1
      %p321 = por %p319, %p320
      %p322 = scmp.ne.s32.totalorder %s313, %s314
      %p323 = scmp.eq.s32.totalorder %s32, 0
      %p324 = por %p322, %p323
      %p325 = scmp.ne.s32.totalorder %s313, %s314
      %p326 = scmp.eq.s32.totalorder %s33, 1
      %p327 = por %p325, %p326
      %p329 = scmp.ne.s32.totalorder %s314, %s328
      %p330 = scmp.eq.s32.totalorder %s33, 0
      %p331 = por %p329, %p330
      %s333 = sadd.s32 %s332, 1
      %p336 = scmp.eq.s32.totalorder %s27, 1
      %p337 = scmp.ne.s32.totalorder %s332, %s334
      %p338 = scmp.eq.s32.totalorder %s27, 0
      %p339 = por %p337, %p338
      %p340 = scmp.ne.s32.totalorder %s332, %s334
      %p341 = scmp.eq.s32.totalorder %s32, 1
      %p342 = por %p340, %p341
      %p343 = scmp.ne.s32.totalorder %s334, %s335
      %p344 = scmp.eq.s32.totalorder %s32, 0
      %p345 = por %p343, %p344
      %p346 = scmp.ne.s32.totalorder %s334, %s335
      %p347 = scmp.eq.s32.totalorder %s33, 1
      %p348 = por %p346, %p347
      %p350 = scmp.ne.s32.totalorder %s335, %s349
      %p351 = scmp.eq.s32.totalorder %s33, 0
      %p352 = por %p350, %p351
      %s354 = sadd.s32 %s353, 1
      %p357 = scmp.eq.s32.totalorder %s27, 1
      %p358 = scmp.ne.s32.totalorder %s353, %s355
      %p359 = scmp.eq.s32.totalorder %s27, 0
      %p360 = por %p358, %p359
      %p361 = scmp.ne.s32.totalorder %s353, %s355
      %p362 = scmp.eq.s32.totalorder %s32, 1
      %p363 = por %p361, %p362
      %p364 = scmp.ne.s32.totalorder %s355, %s356
      %p365 = scmp.eq.s32.totalorder %s32, 0
      %p366 = por %p364, %p365
      %p367 = scmp.ne.s32.totalorder %s355, %s356
      %p368 = scmp.eq.s32.totalorder %s33, 1
      %p369 = por %p367, %p368
      %p371 = scmp.ne.s32.totalorder %s356, %s370
      %p372 = scmp.eq.s32.totalorder %s33, 0
      %p373 = por %p371, %p372
      %s374 = ssub.s32 %s34, %s46
      %s375 = ssub.s32 %s35, %s42
      %s376 = sor.u32 %s374, %s375
      %p377 = scmp.eq.s32.totalorder %s376, 0
      %s379 = sadd.s32 %s378, 1
      %s380 = scalar_select %p377, %s378, %s379
      %p383 = pneg %p377
      %p384 = scmp.eq.s32.totalorder %s27, 1
      %p385 = por %p383, %p384
      %p386 = scmp.ne.s32.totalorder %s378, %s381
      %p387 = scmp.eq.s32.totalorder %s27, 0
      %p388 = por %p386, %p387
      %p389 = scmp.ne.s32.totalorder %s378, %s381
      %p390 = scmp.eq.s32.totalorder %s32, 1
      %p391 = por %p389, %p390
      %p392 = scmp.ne.s32.totalorder %s381, %s382
      %p393 = scmp.eq.s32.totalorder %s32, 0
      %p394 = por %p392, %p393
      %p395 = scmp.ne.s32.totalorder %s381, %s382
      %p396 = scmp.eq.s32.totalorder %s33, 1
      %p397 = por %p395, %p396
      %p399 = scmp.ne.s32.totalorder %s382, %s398
      %p400 = scmp.eq.s32.totalorder %s33, 0
      %p401 = por %p399, %p400
      %p402 = scmp.le.s32.totalorder 1, %s27
      %p403 = scmp.lt.s32.totalorder %s27, 3
      %p404 = pnand %p402, %p403
      %p405 = pneg %p404
      // Predicated region
      $region9: #{tpu_custom_call.1} parent=5 // pred_check
        _
      $region10: #{tpu_custom_call.1} parent=5 // pred_check_branch
        %407 = sbr.rel (%p404) target = $region12
      $region11: #{tpu_custom_call.1} parent=5 // pred_region
        %s408 = ssub.s32 %s27, 1
        // Predicated region
        $region13: #{tpu_custom_call.1} parent=11 // pred_check
          %p409 = pneg %p65
        $region14: #{tpu_custom_call.1} parent=11 // pred_check_branch
          %411 = sbr.rel (%p409) target = $region16
        $region15: #{tpu_custom_call.1} parent=11 // pred_region
          %p412 = scmp.lt.s32.totalorder %s36, 1
          %s413 = scalar_select %p412, %s36, 1
          %s414 = smul.addr %s413, 8
          %s415 = scalar_lea.vmem %s0, %s414
        $region16: #{tpu_custom_call.1} parent=11 // pred_fallthru
          _
        // Predicated region
        $region17: #{tpu_custom_call.1} parent=11 // pred_check
          %p416 = pneg %p114
        $region18: #{tpu_custom_call.1} parent=11 // pred_check_branch
          %418 = sbr.rel (%p416) target = $region20
        $region19: #{tpu_custom_call.1} parent=11 // pred_region
          _
        $region20: #{tpu_custom_call.1} parent=11 // pred_fallthru
          _
        // Predicated region
        $region21: #{tpu_custom_call.1} parent=11 // pred_check
          %p419 = pneg %p135
        $region22: #{tpu_custom_call.1} parent=11 // pred_check_branch
          %421 = sbr.rel (%p419) target = $region24
        $region23: #{tpu_custom_call.1} parent=11 // pred_region
          _
        $region24: #{tpu_custom_call.1} parent=11 // pred_fallthru
          _
        // Predicated region
        $region25: #{tpu_custom_call.1} parent=11 // pred_check
          %p422 = pneg %p156
        $region26: #{tpu_custom_call.1} parent=11 // pred_check_branch
          %424 = sbr.rel (%p422) target = $region28
        $region27: #{tpu_custom_call.1} parent=11 // pred_region
          _
        $region28: #{tpu_custom_call.1} parent=11 // pred_fallthru
          _
        // Predicated region
        $region29: #{tpu_custom_call.1} parent=11 // pred_check
          %p425 = pneg %p177
        $region30: #{tpu_custom_call.1} parent=11 // pred_check_branch
          %427 = sbr.rel (%p425) target = $region32
        $region31: #{tpu_custom_call.1} parent=11 // pred_region
          %s429 = ssub.s32 256, 256
          %430 = vsyncadd [#allocation5], %s429
          %s431 = sshll.u32 [#allocation4], 4
          %s432 = int_to_ptr.vmem [resolvable:$true] %s431
          %437 = dma.hbm_to_vmem [thread:$0]  %s5, 256, %s432, [#allocation5], 64, 64, 4
        $region32: #{tpu_custom_call.1} parent=11 // pred_fallthru
          _
        // Predicated region
        $region33: #{tpu_custom_call.1} parent=11 // pred_check
          %p438 = pneg %p198
        $region34: #{tpu_custom_call.1} parent=11 // pred_check_branch
          %440 = sbr.rel (%p438) target = $region36
        $region35: #{tpu_custom_call.1} parent=11 // pred_region
          %s442 = ssub.s32 16, 16
          %443 = vsyncadd [#allocation8], %s442
          %s445 = sshll.u32 [#allocation7], 4
          %s446 = int_to_ptr.vmem [resolvable:$true] %s445
          %448 = dma.hbm_to_vmem [thread:$0]  %s6, 16, %s446, [#allocation8]
        $region36: #{tpu_custom_call.1} parent=11 // pred_fallthru
          _
        // Predicated region
        $region37: #{tpu_custom_call.1} parent=11 // pred_check
          %p449 = pneg %p219
        $region38: #{tpu_custom_call.1} parent=11 // pred_check_branch
          %451 = sbr.rel (%p449) target = $region40
        $region39: #{tpu_custom_call.1} parent=11 // pred_region
          %s453 = ssub.s32 16, 16
          %454 = vsyncadd [#allocation8], %s453
          %s456 = sshll.u32 [#allocation9], 4
          %s457 = int_to_ptr.vmem [resolvable:$true] %s456
          %459 = dma.hbm_to_vmem [thread:$0]  %s7, 16, %s457, [#allocation8]
        $region40: #{tpu_custom_call.1} parent=11 // pred_fallthru
          _
        // Predicated region
        $region41: #{tpu_custom_call.1} parent=11 // pred_check
          %p460 = pneg %p240
        $region42: #{tpu_custom_call.1} parent=11 // pred_check_branch
          %462 = sbr.rel (%p460) target = $region44
        $region43: #{tpu_custom_call.1} parent=11 // pred_region
          %s464 = ssub.s32 16, 16
          %465 = vsyncadd [#allocation11], %s464
          %s467 = sshll.u32 [#allocation10], 4
          %s468 = int_to_ptr.vmem [resolvable:$true] %s467
          %470 = dma.hbm_to_vmem [thread:$0]  %s8, 16, %s468, [#allocation11]
        $region44: #{tpu_custom_call.1} parent=11 // pred_fallthru
          _
        // Predicated region
        $region45: #{tpu_custom_call.1} parent=11 // pred_check
          %p471 = pneg %p261
        $region46: #{tpu_custom_call.1} parent=11 // pred_check_branch
          %473 = sbr.rel (%p471) target = $region48
        $region47: #{tpu_custom_call.1} parent=11 // pred_region
          _
        $region48: #{tpu_custom_call.1} parent=11 // pred_fallthru
          _
        // Predicated region
        $region49: #{tpu_custom_call.1} parent=11 // pred_check
          %p474 = pneg %p282
        $region50: #{tpu_custom_call.1} parent=11 // pred_check_branch
          %476 = sbr.rel (%p474) target = $region52
        $region51: #{tpu_custom_call.1} parent=11 // pred_region
          _
        $region52: #{tpu_custom_call.1} parent=11 // pred_fallthru
          _
        // Predicated region
        $region53: #{tpu_custom_call.1} parent=11 // pred_check
          %p477 = pneg %p303
        $region54: #{tpu_custom_call.1} parent=11 // pred_check_branch
          %479 = sbr.rel (%p477) target = $region56
        $region55: #{tpu_custom_call.1} parent=11 // pred_region
          _
        $region56: #{tpu_custom_call.1} parent=11 // pred_fallthru
          _
        // Predicated region
        $region57: #{tpu_custom_call.1} parent=11 // pred_check
          %p480 = pneg %p324
        $region58: #{tpu_custom_call.1} parent=11 // pred_check_branch
          %482 = sbr.rel (%p480) target = $region60
        $region59: #{tpu_custom_call.1} parent=11 // pred_region
          _
        $region60: #{tpu_custom_call.1} parent=11 // pred_fallthru
          _
        // Predicated region
        $region61: #{tpu_custom_call.1} parent=11 // pred_check
          %p483 = pneg %p345
        $region62: #{tpu_custom_call.1} parent=11 // pred_check_branch
          %485 = sbr.rel (%p483) target = $region64
        $region63: #{tpu_custom_call.1} parent=11 // pred_region
          _
        $region64: #{tpu_custom_call.1} parent=11 // pred_fallthru
          _
        // Predicated region
        $region65: #{tpu_custom_call.1} parent=11 // pred_check
          %p486 = pneg %p366
        $region66: #{tpu_custom_call.1} parent=11 // pred_check_branch
          %488 = sbr.rel (%p486) target = $region68
        $region67: #{tpu_custom_call.1} parent=11 // pred_region
          _
        $region68: #{tpu_custom_call.1} parent=11 // pred_fallthru
          _
      $region12: #{tpu_custom_call.1} parent=5 // pred_fallthru
        _
      %p489 = scmp.lt.s32.totalorder %s27, 2
      // Predicated region
      $region69: #{tpu_custom_call.1} parent=5 // pred_check
        %p490 = pneg %p489
      $region70: #{tpu_custom_call.1} parent=5 // pred_check_branch
        %492 = sbr.rel (%p490) target = $region72
      $region71: #{tpu_custom_call.1} parent=5 // pred_region
        // Predicated region
        $region73: #{tpu_custom_call.1} parent=71 // pred_check
          %p493 = pneg %p87
        $region74: #{tpu_custom_call.1} parent=71 // pred_check_branch
          %495 = sbr.rel (%p493) target = $region76
        $region75: #{tpu_custom_call.1} parent=71 // pred_region
          %p496 = scmp.lt.s32.totalorder %s34, 1
          %s497 = scalar_select %p496, %s34, 1
          %p498 = scmp.lt.s32.totalorder %s35, 0
          %s499 = scalar_select %p498, %s35, 0
          %s500 = sadd.s32 %s499, %s497
          %s501 = smul.addr %s500, 8
          %s502 = scalar_lea.vmem %s1, %s501
        $region76: #{tpu_custom_call.1} parent=71 // pred_fallthru
          _
      $region72: #{tpu_custom_call.1} parent=5 // pred_fallthru
        _
      %p503 = scmp.le.s32.totalorder 1, %s27
      %p504 = scmp.lt.s32.totalorder %s27, 3
      %p505 = pnand %p503, %p504
      %p506 = pneg %p505
      // Predicated region
      $region77: #{tpu_custom_call.1} parent=5 // pred_check
        _
      $region78: #{tpu_custom_call.1} parent=5 // pred_check_branch
        %508 = sbr.rel (%p505) target = $region80
      $region79: #{tpu_custom_call.1} parent=5 // pred_region
        %s509 = ssub.s32 %s27, 1
        // Predicated region
        $region81: #{tpu_custom_call.1} parent=79 // pred_check
          %p510 = pneg %p177
        $region82: #{tpu_custom_call.1} parent=79 // pred_check_branch
          %512 = sbr.rel (%p510) target = $region84
        $region83: #{tpu_custom_call.1} parent=79 // pred_region
          %513 = dma.done [#allocation5], 256
        $region84: #{tpu_custom_call.1} parent=79 // pred_fallthru
          _
        // Predicated region
        $region85: #{tpu_custom_call.1} parent=79 // pred_check
          %p514 = pneg %p198
        $region86: #{tpu_custom_call.1} parent=79 // pred_check_branch
          %516 = sbr.rel (%p514) target = $region88
        $region87: #{tpu_custom_call.1} parent=79 // pred_region
          %517 = dma.done [#allocation8], 16
        $region88: #{tpu_custom_call.1} parent=79 // pred_fallthru
          _
        // Predicated region
        $region89: #{tpu_custom_call.1} parent=79 // pred_check
          %p518 = pneg %p219
        $region90: #{tpu_custom_call.1} parent=79 // pred_check_branch
          %520 = sbr.rel (%p518) target = $region92
        $region91: #{tpu_custom_call.1} parent=79 // pred_region
          %521 = dma.done [#allocation8], 16
        $region92: #{tpu_custom_call.1} parent=79 // pred_fallthru
          _
        // Predicated region
        $region93: #{tpu_custom_call.1} parent=79 // pred_check
          %p522 = pneg %p240
        $region94: #{tpu_custom_call.1} parent=79 // pred_check_branch
          %524 = sbr.rel (%p522) target = $region96
        $region95: #{tpu_custom_call.1} parent=79 // pred_region
          %525 = dma.done [#allocation11], 16
        $region96: #{tpu_custom_call.1} parent=79 // pred_fallthru
          _
        %p526 = scmp.lt.s32.totalorder %s36, 1
        %s527 = scalar_select %p526, %s36, 1
        %s528 = smul.addr %s527, 8
        %s529 = scalar_lea.vmem %s0, %s528
        %p530 = pneg %p65
        %p531 = pneg %p62
        %p532 = scmp.lt.s32.totalorder %s36, 1
        %s533 = scalar_select %p532, %s36, 1
        %p534 = scmp.lt.s32.totalorder %s37, 0
        %s535 = scalar_select %p534, %s37, 0
        %s536 = sadd.s32 %s535, %s533
        %s537 = smul.addr %s536, 8
        %s538 = scalar_lea.vmem %s1, %s537
        %p539 = pneg %p93
        %p540 = pneg %p90
        %p541 = pneg %p114
        %p542 = pneg %p111
        %p543 = pneg %p135
        %p544 = pneg %p132
        %p545 = pneg %p156
        %p546 = pneg %p153
        %p547 = pneg %p177
        %p548 = pneg %p174
        %p549 = pneg %p198
        %p550 = pneg %p195
        %p551 = pneg %p219
        %p552 = pneg %p216
        %p553 = pneg %p240
        %p554 = pneg %p237
        %p555 = pneg %p261
        %p556 = pneg %p258
        %p557 = pneg %p282
        %p558 = pneg %p279
        %p559 = pneg %p303
        %p560 = pneg %p300
        %p561 = pneg %p324
        %p562 = pneg %p321
        %p563 = pneg %p345
        %p564 = pneg %p342
        %p565 = pneg %p366
        %p566 = pneg %p363
        %p567 = pneg %p394
        %p568 = pneg %p391
        %s569 = sand.u32 %s381, 1
        %s570 = scalar_lea.sflag [#allocation6], %s569
        %s571 = sand.u32 %s381, 1
        %s572 = smul.addr %s571, 8
        %s573 = scalar_lea.vmem [#allocation12], %s572
        %p574 = scmp.lt.s32.totalorder %s36, 1
        %s575 = scalar_select %p574, %s36, 1
        %s576 = smul.addr %s575, 8
        %s577 = scalar_lea.vmem %s0, %s576
        %p578 = scmp.lt.s32.totalorder %s36, 1
        %s579 = scalar_select %p578, %s36, 1
        %p580 = scmp.lt.s32.totalorder %s37, 0
        %s581 = scalar_select %p580, %s37, 0
        %s582 = sadd.s32 %s581, %s579
        %s583 = smul.addr %s582, 8
        %s584 = scalar_lea.vmem %s1, %s583
        %p586 = scmp.eq.s32.totalorder %s37, 0
        // Predicated region
        $region97: #{tpu_custom_call.1} parent=79 // pred_check
          %p587 = pneg %p586
        $region98: #{tpu_custom_call.1} parent=79 // pred_check_branch
          %589 = sbr.rel (%p587) target = $region100
        $region99: #{tpu_custom_call.1} parent=79 // pred_region
          %v590 = vld [vmem:[%s577] sm:$0xff]
          %v591 = vpack.c.bf16 %v590, %v590
          %v592 = vld [vmem:[%s3] sm:$0xf]
          %v593 = vld [vmem:[%s3 + $0x4] sm:$0xf]
          %v594 = vld [vmem:[%s3 + $0x8] sm:$0xf]
          %v595 = vld [vmem:[%s3 + $0xc] sm:$0xf]
          %v600 = vunpack.c.l.b16 %v592
          %v601 = vunpack.c.l.b16 %v593
          %v602 = vunpack.c.l.b16 %v594
          %v603 = vunpack.c.l.b16 %v595
          %v604 = vpack.c.b16 %v601, %v600
          %v605 = vpack.c.b16 %v603, %v602
          %vm608 = vcmask 261120
          %v610 = vsel %vm608, %v591, 0
          %612 = vmatprep.subr.bf16.mxu0 0
          %613 = vmatpush1.bf16.msra.mxu0 0
          %614 = vmatprep.subr.bf16.mxu0 0
          %615 = vmatpush1.bf16.msra.mxu0 0
          %616 = vmatprep.subr.bf16.mxu0 0
          %617 = vmatpush1.bf16.msra.mxu0 0
          %618 = vmatprep.subr.bf16.mxu0 0
          %619 = vmatpush1.bf16.msra.mxu0 0
          %620 = vmatprep.subr.bf16.mxu0 0
          %621 = vmatpush1.bf16.msra.mxu0 0
          %622 = vmatprep.subr.bf16.mxu0 0
          %623 = vmatpush1.bf16.msra.mxu0 0
          %624 = vmatprep.subr.bf16.mxu0 0
          %625 = vmatpush1.bf16.msra.mxu0 %v605
          %626 = vmatprep.subr.bf16.mxu0 0
          %627 = vmatpush1.bf16.msra.mxu0 %v604
          %628 = vmatprep.subr.bf16.mxu0 0
          %629 = vmatpush2.bf16.msra.mxu0 0
          %630 = vmatprep.subr.bf16.mxu0 0
          %631 = vmatpush2.bf16.msra.mxu0 0
          %632 = vmatprep.subr.bf16.mxu0 0
          %633 = vmatpush2.bf16.msra.mxu0 0
          %634 = vmatprep.subr.bf16.mxu0 0
          %635 = vmatpush2.bf16.msra.mxu0 0
          %636 = vmatprep.subr.bf16.mxu0 0
          %637 = vmatpush2.bf16.msra.mxu0 0
          %638 = vmatprep.subr.bf16.mxu0 0
          %639 = vmatpush2.bf16.msra.mxu0 0
          %640 = vmatprep.subr.bf16.mxu0 0
          %641 = vmatpush2.bf16.msra.mxu0 0
          %642 = vmatprep.subr.bf16.mxu0 0
          %643 = vmatpush2.bf16.msra.mxu0 0
          %644 = vmatprep.mubr.bf16.mxu0 0
          %645 = vmatmul.mubr.bf16.gmra.mxu0 %v610
          %v646 = vpop.f32.mrf.mxu0
          %v647 = vadd.f32 0.0, %v646
          %v648 = vpop.f32.mrf.mxu0
          %v649 = vpop.f32.mrf.mxu0
          %v650 = vpop.f32.mrf.mxu0
          %651 = vdwg.mxu0
          %v652 = vld [vmem:[%s4] sm:$0xf]
          %v653 = vld [vmem:[%s4 + $0x4] sm:$0xf]
          %v654 = vld [vmem:[%s4 + $0x8] sm:$0xf]
          %v655 = vld [vmem:[%s4 + $0xc] sm:$0xf]
          %v660 = vunpack.c.l.b16 %v652
          %v661 = vunpack.c.l.b16 %v653
          %v662 = vunpack.c.l.b16 %v654
          %v663 = vunpack.c.l.b16 %v655
          %v664 = vpack.c.b16 %v661, %v660
          %v665 = vpack.c.b16 %v663, %v662
          %668 = vmatprep.subr.bf16.mxu0 0
          %669 = vmatpush1.bf16.msra.mxu0 0
          %670 = vmatprep.subr.bf16.mxu0 0
          %671 = vmatpush1.bf16.msra.mxu0 0
          %672 = vmatprep.subr.bf16.mxu0 0
          %673 = vmatpush1.bf16.msra.mxu0 0
          %674 = vmatprep.subr.bf16.mxu0 0
          %675 = vmatpush1.bf16.msra.mxu0 0
          %676 = vmatprep.subr.bf16.mxu0 0
          %677 = vmatpush1.bf16.msra.mxu0 0
          %678 = vmatprep.subr.bf16.mxu0 0
          %679 = vmatpush1.bf16.msra.mxu0 0
          %680 = vmatprep.subr.bf16.mxu0 0
          %681 = vmatpush1.bf16.msra.mxu0 %v665
          %682 = vmatprep.subr.bf16.mxu0 0
          %683 = vmatpush1.bf16.msra.mxu0 %v664
          %684 = vmatprep.subr.bf16.mxu0 0
          %685 = vmatpush2.bf16.msra.mxu0 0
          %686 = vmatprep.subr.bf16.mxu0 0
          %687 = vmatpush2.bf16.msra.mxu0 0
          %688 = vmatprep.subr.bf16.mxu0 0
          %689 = vmatpush2.bf16.msra.mxu0 0
          %690 = vmatprep.subr.bf16.mxu0 0
          %691 = vmatpush2.bf16.msra.mxu0 0
          %692 = vmatprep.subr.bf16.mxu0 0
          %693 = vmatpush2.bf16.msra.mxu0 0
          %694 = vmatprep.subr.bf16.mxu0 0
          %695 = vmatpush2.bf16.msra.mxu0 0
          %696 = vmatprep.subr.bf16.mxu0 0
          %697 = vmatpush2.bf16.msra.mxu0 0
          %698 = vmatprep.subr.bf16.mxu0 0
          %699 = vmatpush2.bf16.msra.mxu0 0
          %700 = vmatprep.mubr.bf16.mxu0 0
          %701 = vmatmul.mubr.bf16.gmra.mxu0 %v610
          %v702 = vpop.f32.mrf.mxu0
          %v703 = vadd.f32 0.0, %v702
          %v704 = vpop.f32.mrf.mxu0
          %v705 = vpop.f32.mrf.mxu0
          %v706 = vpop.f32.mrf.mxu0
          %707 = vdwg.mxu0
          %v708 = vpack.c.bf16 %v647, %v647
          %v709 = vpack.c.bf16 %v703, %v703
          %vm710 = vcmask 60416
          %711 = vst.msk [vmem:[#allocation2] sm:$0xf] %vm710, %v708
          %712 = vst.msk [vmem:[#allocation3] sm:$0xf] %vm710, %v709
          %v714 = vunpack.c.l.b16 %v708
          %v715 = vpack.c.b16 %v714, %v714
          %716 = vrot.lane.b32.xlu0 %v715, 120
          %v717 = vpop.permute.xlu0 %716
          %s719 = scalar_lea.vmem [#allocation2], 4
          %720 = vst.msk [vmem:[%s719] sm:$0xf] %vm710, %v717
          %v722 = vunpack.c.l.b16 %v709
          %v723 = vpack.c.b16 %v722, %v722
          %724 = vrot.lane.b32.xlu0 %v723, 120
          %v725 = vpop.permute.xlu0 %724
          %s727 = scalar_lea.vmem [#allocation3], 4
          %728 = vst.msk [vmem:[%s727] sm:$0xf] %vm710, %v725
          %729 = vrot.lane.b32.xlu0 %v715, 112
          %v730 = vpop.permute.xlu0 %729
          %s732 = scalar_lea.vmem [#allocation2], 8
          %733 = vst.msk [vmem:[%s732] sm:$0xf] %vm710, %v730
          %734 = vrot.lane.b32.xlu0 %v723, 112
          %v735 = vpop.permute.xlu0 %734
          %s737 = scalar_lea.vmem [#allocation3], 8
          %738 = vst.msk [vmem:[%s737] sm:$0xf] %vm710, %v735
          %739 = vrot.lane.b32.xlu0 %v715, 104
          %v740 = vpop.permute.xlu0 %739
          %s742 = scalar_lea.vmem [#allocation2], 12
          %743 = vst.msk [vmem:[%s742] sm:$0xf] %vm710, %v740
          %744 = vrot.lane.b32.xlu0 %v723, 104
          %v745 = vpop.permute.xlu0 %744
          %s747 = scalar_lea.vmem [#allocation3], 12
          %748 = vst.msk [vmem:[%s747] sm:$0xf] %vm710, %v745
        $region100: #{tpu_custom_call.1} parent=79 // pred_fallthru
          _
        %v749 = vld [vmem:[%s584] sm:$0xff]
        %v750 = vpack.c.bf16 %v749, %v749
        %v751 = vld [vmem:[%s2] sm:$0xf]
        %v752 = vld [vmem:[%s2 + $0x4] sm:$0xf]
        %v753 = vld [vmem:[%s2 + $0x8] sm:$0xf]
        %v754 = vld [vmem:[%s2 + $0xc] sm:$0xf]
        %v759 = vunpack.c.l.b16 %v751
        %v760 = vunpack.c.l.b16 %v752
        %v761 = vunpack.c.l.b16 %v753
        %v762 = vunpack.c.l.b16 %v754
        %v763 = vpack.c.b16 %v760, %v759
        %v764 = vpack.c.b16 %v762, %v761
        %vm767 = vcmask 261120
        %v769 = vsel %vm767, %v750, 0
        %771 = vmatprep.subr.bf16.mxu0 0
        %772 = vmatpush1.bf16.msra.mxu0 0
        %773 = vmatprep.subr.bf16.mxu0 0
        %774 = vmatpush1.bf16.msra.mxu0 0
        %775 = vmatprep.subr.bf16.mxu0 0
        %776 = vmatpush1.bf16.msra.mxu0 0
        %777 = vmatprep.subr.bf16.mxu0 0
        %778 = vmatpush1.bf16.msra.mxu0 0
        %779 = vmatprep.subr.bf16.mxu0 0
        %780 = vmatpush1.bf16.msra.mxu0 0
        %781 = vmatprep.subr.bf16.mxu0 0
        %782 = vmatpush1.bf16.msra.mxu0 0
        %783 = vmatprep.subr.bf16.mxu0 0
        %784 = vmatpush1.bf16.msra.mxu0 %v764
        %785 = vmatprep.subr.bf16.mxu0 0
        %786 = vmatpush1.bf16.msra.mxu0 %v763
        %787 = vmatprep.subr.bf16.mxu0 0
        %788 = vmatpush2.bf16.msra.mxu0 0
        %789 = vmatprep.subr.bf16.mxu0 0
        %790 = vmatpush2.bf16.msra.mxu0 0
        %791 = vmatprep.subr.bf16.mxu0 0
        %792 = vmatpush2.bf16.msra.mxu0 0
        %793 = vmatprep.subr.bf16.mxu0 0
        %794 = vmatpush2.bf16.msra.mxu0 0
        %795 = vmatprep.subr.bf16.mxu0 0
        %796 = vmatpush2.bf16.msra.mxu0 0
        %797 = vmatprep.subr.bf16.mxu0 0
        %798 = vmatpush2.bf16.msra.mxu0 0
        %799 = vmatprep.subr.bf16.mxu0 0
        %800 = vmatpush2.bf16.msra.mxu0 0
        %801 = vmatprep.subr.bf16.mxu0 0
        %802 = vmatpush2.bf16.msra.mxu0 0
        %803 = vmatprep.mubr.bf16.mxu0 0
        %804 = vmatmul.mubr.bf16.gmra.mxu0 %v769
        %v805 = vpop.f32.mrf.mxu0
        %v806 = vadd.f32 0.0, %v805
        %v807 = vpop.f32.mrf.mxu0
        %v808 = vpop.f32.mrf.mxu0
        %v809 = vpop.f32.mrf.mxu0
        %810 = vdwg.mxu0
        %v811 = vmul.f32 %v806, 0.35355338
        %v812 = vpack.c.bf16 %v811, %v811
        %v813 = vld [vmem:[#allocation2] sm:$0xf]
        %vm814 = vcmask 64512
        %v816 = vsel %vm814, %v812, 0
        %v819 = vsel %vm814, %v813, 0
        %821 = vmatprep.subr.bf16.mxu0 0
        %822 = vmatpush1.bf16.xpose.msra.mxu0 0
        %823 = vmatprep.subr.bf16.mxu0 0
        %824 = vmatpush1.bf16.xpose.msra.mxu0 0
        %825 = vmatprep.subr.bf16.mxu0 0
        %826 = vmatpush1.bf16.xpose.msra.mxu0 0
        %827 = vmatprep.subr.bf16.mxu0 0
        %828 = vmatpush1.bf16.xpose.msra.mxu0 0
        %829 = vmatprep.subr.bf16.mxu0 0
        %830 = vmatpush1.bf16.xpose.msra.mxu0 0
        %831 = vmatprep.subr.bf16.mxu0 0
        %832 = vmatpush1.bf16.xpose.msra.mxu0 0
        %833 = vmatprep.subr.bf16.mxu0 0
        %834 = vmatpush1.bf16.xpose.msra.mxu0 0
        %835 = vmatprep.subr.bf16.mxu0 0
        %836 = vmatpush1.bf16.xpose.msra.mxu0 %v819
        %837 = vmatprep.subr.bf16.mxu0 0
        %838 = vmatpush2.bf16.xpose.msra.mxu0 0
        %839 = vmatprep.subr.bf16.mxu0 0
        %840 = vmatpush2.bf16.xpose.msra.mxu0 0
        %841 = vmatprep.subr.bf16.mxu0 0
        %842 = vmatpush2.bf16.xpose.msra.mxu0 0
        %843 = vmatprep.subr.bf16.mxu0 0
        %844 = vmatpush2.bf16.xpose.msra.mxu0 0
        %845 = vmatprep.subr.bf16.mxu0 0
        %846 = vmatpush2.bf16.xpose.msra.mxu0 0
        %847 = vmatprep.subr.bf16.mxu0 0
        %848 = vmatpush2.bf16.xpose.msra.mxu0 0
        %849 = vmatprep.subr.bf16.mxu0 0
        %850 = vmatpush2.bf16.xpose.msra.mxu0 0
        %851 = vmatprep.subr.bf16.mxu0 0
        %852 = vmatpush2.bf16.xpose.msra.mxu0 0
        %853 = vmatprep.mubr.bf16.mxu0 0
        %854 = vmatmul.mubr.bf16.gmra.mxu0 %v816
        %v855 = vpop.f32.mrf.mxu0
        %v856 = vadd.f32 0.0, %v855
        %v857 = vpop.f32.mrf.mxu0
        %v858 = vpop.f32.mrf.mxu0
        %v859 = vpop.f32.mrf.mxu0
        %860 = vdwg.mxu0
        %v861 = vsel %vm814, %v856, -inf
        %862 = vmax.xlane.f32.xlu0 %v861
        %v863 = vpop.xlane.xlu0 %862
        %v864 = vsub.f32 %v856, %v863
        %v865 = vmul.f32 %v864, 1.442695
        %v866 = vpow.pop %v865
        %v867 = vsel %vm814, %v866, 0.0
        %868 = vadd.xlane.f32.xlu0 %v867
        %v869 = vpop.xlane.xlu0 %868
        %v870 = vrcp.pop %v869
        %v871 = vmul.f32 %v866, %v870
        %v872 = vpack.c.bf16 %v871, %v871
        %v873 = vld [vmem:[#allocation3] sm:$0xf]
        %v875 = vsel %vm814, %v872, 0
        %vm877 = vcmask 1043456
        %v879 = vsel %vm877, %v873, 0
        %881 = vmatprep.subr.bf16.mxu0 0
        %882 = vmatpush1.bf16.msra.mxu0 0
        %883 = vmatprep.subr.bf16.mxu0 0
        %884 = vmatpush1.bf16.msra.mxu0 0
        %885 = vmatprep.subr.bf16.mxu0 0
        %886 = vmatpush1.bf16.msra.mxu0 0
        %887 = vmatprep.subr.bf16.mxu0 0
        %888 = vmatpush1.bf16.msra.mxu0 0
        %889 = vmatprep.subr.bf16.mxu0 0
        %890 = vmatpush1.bf16.msra.mxu0 0
        %891 = vmatprep.subr.bf16.mxu0 0
        %892 = vmatpush1.bf16.msra.mxu0 0
        %893 = vmatprep.subr.bf16.mxu0 0
        %894 = vmatpush1.bf16.msra.mxu0 0
        %895 = vmatprep.subr.bf16.mxu0 0
        %896 = vmatpush1.bf16.msra.mxu0 %v879
        %897 = vmatprep.subr.bf16.mxu0 0
        %898 = vmatpush2.bf16.msra.mxu0 0
        %899 = vmatprep.subr.bf16.mxu0 0
        %900 = vmatpush2.bf16.msra.mxu0 0
        %901 = vmatprep.subr.bf16.mxu0 0
        %902 = vmatpush2.bf16.msra.mxu0 0
        %903 = vmatprep.subr.bf16.mxu0 0
        %904 = vmatpush2.bf16.msra.mxu0 0
        %905 = vmatprep.subr.bf16.mxu0 0
        %906 = vmatpush2.bf16.msra.mxu0 0
        %907 = vmatprep.subr.bf16.mxu0 0
        %908 = vmatpush2.bf16.msra.mxu0 0
        %909 = vmatprep.subr.bf16.mxu0 0
        %910 = vmatpush2.bf16.msra.mxu0 0
        %911 = vmatprep.subr.bf16.mxu0 0
        %912 = vmatpush2.bf16.msra.mxu0 0
        %913 = vmatprep.mubr.bf16.mxu0 0
        %914 = vmatmul.mubr.bf16.gmra.mxu0 %v875
        %v915 = vpop.f32.mrf.mxu0
        %v916 = vadd.f32 0.0, %v915
        %v917 = vpop.f32.mrf.mxu0
        %v918 = vpop.f32.mrf.mxu0
        %v919 = vpop.f32.mrf.mxu0
        %920 = vdwg.mxu0
        %s921 = scalar_lea.vmem [#allocation2], 4
        %v922 = vld [vmem:[%s921] sm:$0xf]
        %924 = vrot.lane.b32.xlu0 %v812, 120
        %v925 = vpop.permute.xlu0 %924
        %v927 = vsel %vm814, %v925, 0
        %v930 = vsel %vm814, %v922, 0
        %932 = vmatprep.subr.bf16.mxu0 0
        %933 = vmatpush1.bf16.xpose.msra.mxu0 0
        %934 = vmatprep.subr.bf16.mxu0 0
        %935 = vmatpush1.bf16.xpose.msra.mxu0 0
        %936 = vmatprep.subr.bf16.mxu0 0
        %937 = vmatpush1.bf16.xpose.msra.mxu0 0
        %938 = vmatprep.subr.bf16.mxu0 0
        %939 = vmatpush1.bf16.xpose.msra.mxu0 0
        %940 = vmatprep.subr.bf16.mxu0 0
        %941 = vmatpush1.bf16.xpose.msra.mxu0 0
        %942 = vmatprep.subr.bf16.mxu0 0
        %943 = vmatpush1.bf16.xpose.msra.mxu0 0
        %944 = vmatprep.subr.bf16.mxu0 0
        %945 = vmatpush1.bf16.xpose.msra.mxu0 0
        %946 = vmatprep.subr.bf16.mxu0 0
        %947 = vmatpush1.bf16.xpose.msra.mxu0 %v930
        %948 = vmatprep.subr.bf16.mxu0 0
        %949 = vmatpush2.bf16.xpose.msra.mxu0 0
        %950 = vmatprep.subr.bf16.mxu0 0
        %951 = vmatpush2.bf16.xpose.msra.mxu0 0
        %952 = vmatprep.subr.bf16.mxu0 0
        %953 = vmatpush2.bf16.xpose.msra.mxu0 0
        %954 = vmatprep.subr.bf16.mxu0 0
        %955 = vmatpush2.bf16.xpose.msra.mxu0 0
        %956 = vmatprep.subr.bf16.mxu0 0
        %957 = vmatpush2.bf16.xpose.msra.mxu0 0
        %958 = vmatprep.subr.bf16.mxu0 0
        %959 = vmatpush2.bf16.xpose.msra.mxu0 0
        %960 = vmatprep.subr.bf16.mxu0 0
        %961 = vmatpush2.bf16.xpose.msra.mxu0 0
        %962 = vmatprep.subr.bf16.mxu0 0
        %963 = vmatpush2.bf16.xpose.msra.mxu0 0
        %964 = vmatprep.mubr.bf16.mxu0 0
        %965 = vmatmul.mubr.bf16.gmra.mxu0 %v927
        %v966 = vpop.f32.mrf.mxu0
        %v967 = vadd.f32 0.0, %v966
        %v968 = vpop.f32.mrf.mxu0
        %v969 = vpop.f32.mrf.mxu0
        %v970 = vpop.f32.mrf.mxu0
        %971 = vdwg.mxu0
        %v972 = vsel %vm814, %v967, -inf
        %973 = vmax.xlane.f32.xlu0 %v972
        %v974 = vpop.xlane.xlu0 %973
        %v975 = vsub.f32 %v967, %v974
        %v976 = vmul.f32 %v975, 1.442695
        %v977 = vpow.pop %v976
        %v978 = vsel %vm814, %v977, 0.0
        %979 = vadd.xlane.f32.xlu0 %v978
        %v980 = vpop.xlane.xlu0 %979
        %v981 = vrcp.pop %v980
        %v982 = vmul.f32 %v977, %v981
        %v983 = vpack.c.bf16 %v982, %v982
        %s984 = scalar_lea.vmem [#allocation3], 4
        %v985 = vld [vmem:[%s984] sm:$0xf]
        %v987 = vsel %vm814, %v983, 0
        %v990 = vsel %vm877, %v985, 0
        %992 = vmatprep.subr.bf16.mxu0 0
        %993 = vmatpush1.bf16.msra.mxu0 0
        %994 = vmatprep.subr.bf16.mxu0 0
        %995 = vmatpush1.bf16.msra.mxu0 0
        %996 = vmatprep.subr.bf16.mxu0 0
        %997 = vmatpush1.bf16.msra.mxu0 0
        %998 = vmatprep.subr.bf16.mxu0 0
        %999 = vmatpush1.bf16.msra.mxu0 0
        %1000 = vmatprep.subr.bf16.mxu0 0
        %1001 = vmatpush1.bf16.msra.mxu0 0
        %1002 = vmatprep.subr.bf16.mxu0 0
        %1003 = vmatpush1.bf16.msra.mxu0 0
        %1004 = vmatprep.subr.bf16.mxu0 0
        %1005 = vmatpush1.bf16.msra.mxu0 0
        %1006 = vmatprep.subr.bf16.mxu0 0
        %1007 = vmatpush1.bf16.msra.mxu0 %v990
        %1008 = vmatprep.subr.bf16.mxu0 0
        %1009 = vmatpush2.bf16.msra.mxu0 0
        %1010 = vmatprep.subr.bf16.mxu0 0
        %1011 = vmatpush2.bf16.msra.mxu0 0
        %1012 = vmatprep.subr.bf16.mxu0 0
        %1013 = vmatpush2.bf16.msra.mxu0 0
        %1014 = vmatprep.subr.bf16.mxu0 0
        %1015 = vmatpush2.bf16.msra.mxu0 0
        %1016 = vmatprep.subr.bf16.mxu0 0
        %1017 = vmatpush2.bf16.msra.mxu0 0
        %1018 = vmatprep.subr.bf16.mxu0 0
        %1019 = vmatpush2.bf16.msra.mxu0 0
        %1020 = vmatprep.subr.bf16.mxu0 0
        %1021 = vmatpush2.bf16.msra.mxu0 0
        %1022 = vmatprep.subr.bf16.mxu0 0
        %1023 = vmatpush2.bf16.msra.mxu0 0
        %1024 = vmatprep.mubr.bf16.mxu0 0
        %1025 = vmatmul.mubr.bf16.gmra.mxu0 %v987
        %v1026 = vpop.f32.mrf.mxu0
        %v1027 = vadd.f32 0.0, %v1026
        %v1028 = vpop.f32.mrf.mxu0
        %v1029 = vpop.f32.mrf.mxu0
        %v1030 = vpop.f32.mrf.mxu0
        %1031 = vdwg.mxu0
        %s1032 = scalar_lea.vmem [#allocation2], 8
        %v1033 = vld [vmem:[%s1032] sm:$0xf]
        %1034 = vrot.lane.b32.xlu0 %v812, 112
        %v1035 = vpop.permute.xlu0 %1034
        %v1037 = vsel %vm814, %v1035, 0
        %v1040 = vsel %vm814, %v1033, 0
        %1042 = vmatprep.subr.bf16.mxu0 0
        %1043 = vmatpush1.bf16.xpose.msra.mxu0 0
        %1044 = vmatprep.subr.bf16.mxu0 0
        %1045 = vmatpush1.bf16.xpose.msra.mxu0 0
        %1046 = vmatprep.subr.bf16.mxu0 0
        %1047 = vmatpush1.bf16.xpose.msra.mxu0 0
        %1048 = vmatprep.subr.bf16.mxu0 0
        %1049 = vmatpush1.bf16.xpose.msra.mxu0 0
        %1050 = vmatprep.subr.bf16.mxu0 0
        %1051 = vmatpush1.bf16.xpose.msra.mxu0 0
        %1052 = vmatprep.subr.bf16.mxu0 0
        %1053 = vmatpush1.bf16.xpose.msra.mxu0 0
        %1054 = vmatprep.subr.bf16.mxu0 0
        %1055 = vmatpush1.bf16.xpose.msra.mxu0 0
        %1056 = vmatprep.subr.bf16.mxu0 0
        %1057 = vmatpush1.bf16.xpose.msra.mxu0 %v1040
        %1058 = vmatprep.subr.bf16.mxu0 0
        %1059 = vmatpush2.bf16.xpose.msra.mxu0 0
        %1060 = vmatprep.subr.bf16.mxu0 0
        %1061 = vmatpush2.bf16.xpose.msra.mxu0 0
        %1062 = vmatprep.subr.bf16.mxu0 0
        %1063 = vmatpush2.bf16.xpose.msra.mxu0 0
        %1064 = vmatprep.subr.bf16.mxu0 0
        %1065 = vmatpush2.bf16.xpose.msra.mxu0 0
        %1066 = vmatprep.subr.bf16.mxu0 0
        %1067 = vmatpush2.bf16.xpose.msra.mxu0 0
        %1068 = vmatprep.subr.bf16.mxu0 0
        %1069 = vmatpush2.bf16.xpose.msra.mxu0 0
        %1070 = vmatprep.subr.bf16.mxu0 0
        %1071 = vmatpush2.bf16.xpose.msra.mxu0 0
        %1072 = vmatprep.subr.bf16.mxu0 0
        %1073 = vmatpush2.bf16.xpose.msra.mxu0 0
        %1074 = vmatprep.mubr.bf16.mxu0 0
        %1075 = vmatmul.mubr.bf16.gmra.mxu0 %v1037
        %v1076 = vpop.f32.mrf.mxu0
        %v1077 = vadd.f32 0.0, %v1076
        %v1078 = vpop.f32.mrf.mxu0
        %v1079 = vpop.f32.mrf.mxu0
        %v1080 = vpop.f32.mrf.mxu0
        %1081 = vdwg.mxu0
        %v1082 = vsel %vm814, %v1077, -inf
        %1083 = vmax.xlane.f32.xlu0 %v1082
        %v1084 = vpop.xlane.xlu0 %1083
        %v1085 = vsub.f32 %v1077, %v1084
        %v1086 = vmul.f32 %v1085, 1.442695
        %v1087 = vpow.pop %v1086
        %v1088 = vsel %vm814, %v1087, 0.0
        %1089 = vadd.xlane.f32.xlu0 %v1088
        %v1090 = vpop.xlane.xlu0 %1089
        %v1091 = vrcp.pop %v1090
        %v1092 = vmul.f32 %v1087, %v1091
        %v1093 = vpack.c.bf16 %v1092, %v1092
        %s1094 = scalar_lea.vmem [#allocation3], 8
        %v1095 = vld [vmem:[%s1094] sm:$0xf]
        %v1097 = vsel %vm814, %v1093, 0
        %v1100 = vsel %vm877, %v1095, 0
        %1102 = vmatprep.subr.bf16.mxu0 0
        %1103 = vmatpush1.bf16.msra.mxu0 0
        %1104 = vmatprep.subr.bf16.mxu0 0
        %1105 = vmatpush1.bf16.msra.mxu0 0
        %1106 = vmatprep.subr.bf16.mxu0 0
        %1107 = vmatpush1.bf16.msra.mxu0 0
        %1108 = vmatprep.subr.bf16.mxu0 0
        %1109 = vmatpush1.bf16.msra.mxu0 0
        %1110 = vmatprep.subr.bf16.mxu0 0
        %1111 = vmatpush1.bf16.msra.mxu0 0
        %1112 = vmatprep.subr.bf16.mxu0 0
        %1113 = vmatpush1.bf16.msra.mxu0 0
        %1114 = vmatprep.subr.bf16.mxu0 0
        %1115 = vmatpush1.bf16.msra.mxu0 0
        %1116 = vmatprep.subr.bf16.mxu0 0
        %1117 = vmatpush1.bf16.msra.mxu0 %v1100
        %1118 = vmatprep.subr.bf16.mxu0 0
        %1119 = vmatpush2.bf16.msra.mxu0 0
        %1120 = vmatprep.subr.bf16.mxu0 0
        %1121 = vmatpush2.bf16.msra.mxu0 0
        %1122 = vmatprep.subr.bf16.mxu0 0
        %1123 = vmatpush2.bf16.msra.mxu0 0
        %1124 = vmatprep.subr.bf16.mxu0 0
        %1125 = vmatpush2.bf16.msra.mxu0 0
        %1126 = vmatprep.subr.bf16.mxu0 0
        %1127 = vmatpush2.bf16.msra.mxu0 0
        %1128 = vmatprep.subr.bf16.mxu0 0
        %1129 = vmatpush2.bf16.msra.mxu0 0
        %1130 = vmatprep.subr.bf16.mxu0 0
        %1131 = vmatpush2.bf16.msra.mxu0 0
        %1132 = vmatprep.subr.bf16.mxu0 0
        %1133 = vmatpush2.bf16.msra.mxu0 0
        %1134 = vmatprep.mubr.bf16.mxu0 0
        %1135 = vmatmul.mubr.bf16.gmra.mxu0 %v1097
        %v1136 = vpop.f32.mrf.mxu0
        %v1137 = vadd.f32 0.0, %v1136
        %v1138 = vpop.f32.mrf.mxu0
        %v1139 = vpop.f32.mrf.mxu0
        %v1140 = vpop.f32.mrf.mxu0
        %1141 = vdwg.mxu0
        %s1142 = scalar_lea.vmem [#allocation2], 12
        %v1143 = vld [vmem:[%s1142] sm:$0xf]
        %1144 = vrot.lane.b32.xlu0 %v812, 104
        %v1145 = vpop.permute.xlu0 %1144
        %v1147 = vsel %vm814, %v1145, 0
        %v1150 = vsel %vm814, %v1143, 0
        %1152 = vmatprep.subr.bf16.mxu0 0
        %1153 = vmatpush1.bf16.xpose.msra.mxu0 0
        %1154 = vmatprep.subr.bf16.mxu0 0
        %1155 = vmatpush1.bf16.xpose.msra.mxu0 0
        %1156 = vmatprep.subr.bf16.mxu0 0
        %1157 = vmatpush1.bf16.xpose.msra.mxu0 0
        %1158 = vmatprep.subr.bf16.mxu0 0
        %1159 = vmatpush1.bf16.xpose.msra.mxu0 0
        %1160 = vmatprep.subr.bf16.mxu0 0
        %1161 = vmatpush1.bf16.xpose.msra.mxu0 0
        %1162 = vmatprep.subr.bf16.mxu0 0
        %1163 = vmatpush1.bf16.xpose.msra.mxu0 0
        %1164 = vmatprep.subr.bf16.mxu0 0
        %1165 = vmatpush1.bf16.xpose.msra.mxu0 0
        %1166 = vmatprep.subr.bf16.mxu0 0
        %1167 = vmatpush1.bf16.xpose.msra.mxu0 %v1150
        %1168 = vmatprep.subr.bf16.mxu0 0
        %1169 = vmatpush2.bf16.xpose.msra.mxu0 0
        %1170 = vmatprep.subr.bf16.mxu0 0
        %1171 = vmatpush2.bf16.xpose.msra.mxu0 0
        %1172 = vmatprep.subr.bf16.mxu0 0
        %1173 = vmatpush2.bf16.xpose.msra.mxu0 0
        %1174 = vmatprep.subr.bf16.mxu0 0
        %1175 = vmatpush2.bf16.xpose.msra.mxu0 0
        %1176 = vmatprep.subr.bf16.mxu0 0
        %1177 = vmatpush2.bf16.xpose.msra.mxu0 0
        %1178 = vmatprep.subr.bf16.mxu0 0
        %1179 = vmatpush2.bf16.xpose.msra.mxu0 0
        %1180 = vmatprep.subr.bf16.mxu0 0
        %1181 = vmatpush2.bf16.xpose.msra.mxu0 0
        %1182 = vmatprep.subr.bf16.mxu0 0
        %1183 = vmatpush2.bf16.xpose.msra.mxu0 0
        %1184 = vmatprep.mubr.bf16.mxu0 0
        %1185 = vmatmul.mubr.bf16.gmra.mxu0 %v1147
        %v1186 = vpop.f32.mrf.mxu0
        %v1187 = vadd.f32 0.0, %v1186
        %v1188 = vpop.f32.mrf.mxu0
        %v1189 = vpop.f32.mrf.mxu0
        %v1190 = vpop.f32.mrf.mxu0
        %1191 = vdwg.mxu0
        %v1192 = vsel %vm814, %v1187, -inf
        %1193 = vmax.xlane.f32.xlu0 %v1192
        %v1194 = vpop.xlane.xlu0 %1193
        %v1195 = vsub.f32 %v1187, %v1194
        %v1196 = vmul.f32 %v1195, 1.442695
        %v1197 = vpow.pop %v1196
        %v1198 = vsel %vm814, %v1197, 0.0
        %1199 = vadd.xlane.f32.xlu0 %v1198
        %v1200 = vpop.xlane.xlu0 %1199
        %v1201 = vrcp.pop %v1200
        %v1202 = vmul.f32 %v1197, %v1201
        %v1203 = vpack.c.bf16 %v1202, %v1202
        %s1204 = scalar_lea.vmem [#allocation3], 12
        %v1205 = vld [vmem:[%s1204] sm:$0xf]
        %v1207 = vsel %vm814, %v1203, 0
        %v1210 = vsel %vm877, %v1205, 0
        %1212 = vmatprep.subr.bf16.mxu0 0
        %1213 = vmatpush1.bf16.msra.mxu0 0
        %1214 = vmatprep.subr.bf16.mxu0 0
        %1215 = vmatpush1.bf16.msra.mxu0 0
        %1216 = vmatprep.subr.bf16.mxu0 0
        %1217 = vmatpush1.bf16.msra.mxu0 0
        %1218 = vmatprep.subr.bf16.mxu0 0
        %1219 = vmatpush1.bf16.msra.mxu0 0
        %1220 = vmatprep.subr.bf16.mxu0 0
        %1221 = vmatpush1.bf16.msra.mxu0 0
        %1222 = vmatprep.subr.bf16.mxu0 0
        %1223 = vmatpush1.bf16.msra.mxu0 0
        %1224 = vmatprep.subr.bf16.mxu0 0
        %1225 = vmatpush1.bf16.msra.mxu0 0
        %1226 = vmatprep.subr.bf16.mxu0 0
        %1227 = vmatpush1.bf16.msra.mxu0 %v1210
        %1228 = vmatprep.subr.bf16.mxu0 0
        %1229 = vmatpush2.bf16.msra.mxu0 0
        %1230 = vmatprep.subr.bf16.mxu0 0
        %1231 = vmatpush2.bf16.msra.mxu0 0
        %1232 = vmatprep.subr.bf16.mxu0 0
        %1233 = vmatpush2.bf16.msra.mxu0 0
        %1234 = vmatprep.subr.bf16.mxu0 0
        %1235 = vmatpush2.bf16.msra.mxu0 0
        %1236 = vmatprep.subr.bf16.mxu0 0
        %1237 = vmatpush2.bf16.msra.mxu0 0
        %1238 = vmatprep.subr.bf16.mxu0 0
        %1239 = vmatpush2.bf16.msra.mxu0 0
        %1240 = vmatprep.subr.bf16.mxu0 0
        %1241 = vmatpush2.bf16.msra.mxu0 0
        %1242 = vmatprep.subr.bf16.mxu0 0
        %1243 = vmatpush2.bf16.msra.mxu0 0
        %1244 = vmatprep.mubr.bf16.mxu0 0
        %1245 = vmatmul.mubr.bf16.gmra.mxu0 %v1207
        %v1246 = vpop.f32.mrf.mxu0
        %v1247 = vadd.f32 0.0, %v1246
        %v1248 = vpop.f32.mrf.mxu0
        %v1249 = vpop.f32.mrf.mxu0
        %v1250 = vpop.f32.mrf.mxu0
        %1251 = vdwg.mxu0
        %1253 = vrot.lane.b32.xlu0 %v1027, 8
        %v1254 = vpop.permute.xlu0 %1253
        %1257 = vrot.lane.b32.xlu0 %v1137, 16
        %v1258 = vpop.permute.xlu0 %1257
        %1261 = vrot.lane.b32.xlu0 %v1247, 24
        %v1262 = vpop.permute.xlu0 %1261
        %v1264 = vsel %vm814, %v916, %v1254
        %vm1265 = vcmask 130048
        %v1266 = vsel %vm1265, %v1264, %v1258
        %vm1267 = vcmask 195584
        %v1268 = vsel %vm1267, %v1266, %v1262
        %v1269 = vpack.c.bf16 %v1268, %v1268
        %v1270 = vld [vmem:[#allocation4] sm:$0xf]
        %v1271 = vld [vmem:[#allocation4 + $0x4] sm:$0xf]
        %v1272 = vld [vmem:[#allocation4 + $0x8] sm:$0xf]
        %v1273 = vld [vmem:[#allocation4 + $0xc] sm:$0xf]
        %v1274 = vld [vmem:[#allocation7] sm:$0x1]
        %v1276 = vlaneseq
        %v1277 = vshrl.u32 %v1276, 7
        %v1278 = vsub.s32 0, %v1277
        %v1279 = vrot.slane %v1274, %v1278
        %v1285 = vunpack.c.l.b16 %v1270
        %v1286 = vunpack.c.l.b16 %v1271
        %v1287 = vunpack.c.l.b16 %v1272
        %v1288 = vunpack.c.l.b16 %v1273
        %v1289 = vpack.c.b16 %v1286, %v1285
        %v1290 = vpack.c.b16 %v1288, %v1287
        %v1294 = vsel %vm767, %v1269, 0
        %1296 = vmatprep.subr.bf16.mxu0 0
        %1297 = vmatpush1.bf16.msra.mxu0 0
        %1298 = vmatprep.subr.bf16.mxu0 0
        %1299 = vmatpush1.bf16.msra.mxu0 0
        %1300 = vmatprep.subr.bf16.mxu0 0
        %1301 = vmatpush1.bf16.msra.mxu0 0
        %1302 = vmatprep.subr.bf16.mxu0 0
        %1303 = vmatpush1.bf16.msra.mxu0 0
        %1304 = vmatprep.subr.bf16.mxu0 0
        %1305 = vmatpush1.bf16.msra.mxu0 0
        %1306 = vmatprep.subr.bf16.mxu0 0
        %1307 = vmatpush1.bf16.msra.mxu0 0
        %1308 = vmatprep.subr.bf16.mxu0 0
        %1309 = vmatpush1.bf16.msra.mxu0 %v1290
        %1310 = vmatprep.subr.bf16.mxu0 0
        %1311 = vmatpush1.bf16.msra.mxu0 %v1289
        %1312 = vmatprep.subr.bf16.mxu0 0
        %1313 = vmatpush2.bf16.msra.mxu0 0
        %1314 = vmatprep.subr.bf16.mxu0 0
        %1315 = vmatpush2.bf16.msra.mxu0 0
        %1316 = vmatprep.subr.bf16.mxu0 0
        %1317 = vmatpush2.bf16.msra.mxu0 0
        %1318 = vmatprep.subr.bf16.mxu0 0
        %1319 = vmatpush2.bf16.msra.mxu0 0
        %1320 = vmatprep.subr.bf16.mxu0 0
        %1321 = vmatpush2.bf16.msra.mxu0 0
        %1322 = vmatprep.subr.bf16.mxu0 0
        %1323 = vmatpush2.bf16.msra.mxu0 0
        %1324 = vmatprep.subr.bf16.mxu0 0
        %1325 = vmatpush2.bf16.msra.mxu0 0
        %1326 = vmatprep.subr.bf16.mxu0 0
        %1327 = vmatpush2.bf16.msra.mxu0 0
        %1328 = vmatprep.mubr.bf16.mxu0 0
        %1329 = vmatmul.mubr.bf16.gmra.mxu0 %v1294
        %v1330 = vpop.f32.mrf.mxu0
        %v1331 = vadd.f32 %v1279, %v1330
        %v1332 = vpop.f32.mrf.mxu0
        %v1333 = vpop.f32.mrf.mxu0
        %v1334 = vpop.f32.mrf.mxu0
        %1335 = vdwg.mxu0
        %v1336 = vadd.f32 %v1331, %v749
        %v1337 = vld [vmem:[#allocation9] sm:$0x1]
        %v1338 = vld [vmem:[#allocation10] sm:$0x1]
        %v1339 = vsel %vm767, %v1336, 0.0
        %1340 = vadd.xlane.f32.xlu0 %v1339
        %v1341 = vpop.xlane.xlu0 %1340
        %v1342 = vrcp.pop 32.0
        %v1343 = vmul.f32 %v1341, %v1342
        %v1344 = vsub.f32 %v1336, %v1343
        %v1345 = vmul.f32 %v1344, %v1344
        %v1346 = vsel %vm767, %v1345, 0.0
        %1347 = vadd.xlane.f32.xlu0 %v1346
        %v1348 = vpop.xlane.xlu0 %1347
        %v1349 = vmul.f32 %v1348, %v1342
        %v1350 = vadd.f32 %v1349, 1e-05
        %v1351 = vrsqrt.pop %v1350
        %v1352 = vmul.f32 %v1344, %v1351
        %v1354 = vlaneseq
        %v1355 = vshrl.u32 %v1354, 7
        %v1356 = vsub.s32 0, %v1355
        %v1357 = vrot.slane %v1337, %v1356
        %v1359 = vmul.f32 %v1352, %v1357
        %v1361 = vlaneseq
        %v1362 = vshrl.u32 %v1361, 7
        %v1363 = vsub.s32 0, %v1362
        %v1364 = vrot.slane %v1338, %v1363
        %v1366 = vadd.f32 %v1359, %v1364
        %v1367 = vpack.c.bf16 %v1366, %v1366
        %v1368 = vld [vmem:[%s9] sm:$0xf]
        %v1369 = vld [vmem:[%s9 + $0x4] sm:$0xf]
        %v1370 = vld [vmem:[%s9 + $0x8] sm:$0xf]
        %v1371 = vld [vmem:[%s9 + $0xc] sm:$0xf]
        %v1372 = vld [vmem:[%s10] sm:$0x1]
        %v1374 = vlaneseq
        %v1375 = vshrl.u32 %v1374, 7
        %v1376 = vsub.s32 0, %v1375
        %v1377 = vrot.slane %v1372, %v1376
        %v1383 = vunpack.c.l.b16 %v1368
        %v1384 = vunpack.c.l.b16 %v1369
        %v1385 = vunpack.c.l.b16 %v1370
        %v1386 = vunpack.c.l.b16 %v1371
        %v1387 = vpack.c.b16 %v1384, %v1383
        %v1388 = vpack.c.b16 %v1386, %v1385
        %v1392 = vsel %vm767, %v1367, 0
        %1394 = vmatprep.subr.bf16.mxu0 0
        %1395 = vmatpush1.bf16.msra.mxu0 0
        %1396 = vmatprep.subr.bf16.mxu0 0
        %1397 = vmatpush1.bf16.msra.mxu0 0
        %1398 = vmatprep.subr.bf16.mxu0 0
        %1399 = vmatpush1.bf16.msra.mxu0 0
        %1400 = vmatprep.subr.bf16.mxu0 0
        %1401 = vmatpush1.bf16.msra.mxu0 0
        %1402 = vmatprep.subr.bf16.mxu0 0
        %1403 = vmatpush1.bf16.msra.mxu0 0
        %1404 = vmatprep.subr.bf16.mxu0 0
        %1405 = vmatpush1.bf16.msra.mxu0 0
        %1406 = vmatprep.subr.bf16.mxu0 0
        %1407 = vmatpush1.bf16.msra.mxu0 %v1388
        %1408 = vmatprep.subr.bf16.mxu0 0
        %1409 = vmatpush1.bf16.msra.mxu0 %v1387
        %1410 = vmatprep.subr.bf16.mxu0 0
        %1411 = vmatpush2.bf16.msra.mxu0 0
        %1412 = vmatprep.subr.bf16.mxu0 0
        %1413 = vmatpush2.bf16.msra.mxu0 0
        %1414 = vmatprep.subr.bf16.mxu0 0
        %1415 = vmatpush2.bf16.msra.mxu0 0
        %1416 = vmatprep.subr.bf16.mxu0 0
        %1417 = vmatpush2.bf16.msra.mxu0 0
        %1418 = vmatprep.subr.bf16.mxu0 0
        %1419 = vmatpush2.bf16.msra.mxu0 0
        %1420 = vmatprep.subr.bf16.mxu0 0
        %1421 = vmatpush2.bf16.msra.mxu0 0
        %1422 = vmatprep.subr.bf16.mxu0 0
        %1423 = vmatpush2.bf16.msra.mxu0 0
        %1424 = vmatprep.subr.bf16.mxu0 0
        %1425 = vmatpush2.bf16.msra.mxu0 0
        %1426 = vmatprep.mubr.bf16.mxu0 0
        %1427 = vmatmul.mubr.bf16.gmra.mxu0 %v1392
        %v1428 = vpop.f32.mrf.mxu0
        %v1429 = vadd.f32 %v1377, %v1428
        %v1430 = vpop.f32.mrf.mxu0
        %v1431 = vpop.f32.mrf.mxu0
        %v1432 = vpop.f32.mrf.mxu0
        %1433 = vdwg.mxu0
        %v1434 = vmax.f32 %v1429, 0.0
        %v1435 = vpack.c.bf16 %v1434, %v1434
        %v1436 = vld [vmem:[%s11] sm:$0xf]
        %v1437 = vld [vmem:[%s11 + $0x4] sm:$0xf]
        %v1438 = vld [vmem:[%s11 + $0x8] sm:$0xf]
        %v1439 = vld [vmem:[%s11 + $0xc] sm:$0xf]
        %v1440 = vld [vmem:[%s11 + $0x10] sm:$0xf]
        %v1441 = vld [vmem:[%s11 + $0x14] sm:$0xf]
        %v1442 = vld [vmem:[%s11 + $0x18] sm:$0xf]
        %v1443 = vld [vmem:[%s11 + $0x1c] sm:$0xf]
        %v1444 = vld [vmem:[%s11 + $0x20] sm:$0xf]
        %v1445 = vld [vmem:[%s11 + $0x24] sm:$0xf]
        %v1446 = vld [vmem:[%s11 + $0x28] sm:$0xf]
        %v1447 = vld [vmem:[%s11 + $0x2c] sm:$0xf]
        %v1448 = vld [vmem:[%s11 + $0x30] sm:$0xf]
        %v1449 = vld [vmem:[%s11 + $0x34] sm:$0xf]
        %v1450 = vld [vmem:[%s11 + $0x38] sm:$0xf]
        %v1451 = vld [vmem:[%s11 + $0x3c] sm:$0xf]
        %v1452 = vld [vmem:[%s12] sm:$0x1]
        %v1454 = vlaneseq
        %v1455 = vshrl.u32 %v1454, 7
        %v1456 = vsub.s32 0, %v1455
        %v1457 = vrot.slane %v1452, %v1456
        %v1475 = vunpack.c.l.b16 %v1436
        %v1476 = vunpack.c.l.b16 %v1437
        %v1477 = vunpack.c.l.b16 %v1438
        %v1478 = vunpack.c.l.b16 %v1439
        %v1479 = vunpack.c.l.b16 %v1440
        %v1480 = vunpack.c.l.b16 %v1441
        %v1481 = vunpack.c.l.b16 %v1442
        %v1482 = vunpack.c.l.b16 %v1443
        %v1483 = vunpack.c.l.b16 %v1444
        %v1484 = vunpack.c.l.b16 %v1445
        %v1485 = vunpack.c.l.b16 %v1446
        %v1486 = vunpack.c.l.b16 %v1447
        %v1487 = vunpack.c.l.b16 %v1448
        %v1488 = vunpack.c.l.b16 %v1449
        %v1489 = vunpack.c.l.b16 %v1450
        %v1490 = vunpack.c.l.b16 %v1451
        %v1491 = vpack.c.b16 %v1476, %v1475
        %v1492 = vpack.c.b16 %v1478, %v1477
        %v1493 = vpack.c.b16 %v1480, %v1479
        %v1494 = vpack.c.b16 %v1482, %v1481
        %v1495 = vpack.c.b16 %v1484, %v1483
        %v1496 = vpack.c.b16 %v1486, %v1485
        %v1497 = vpack.c.b16 %v1488, %v1487
        %v1498 = vpack.c.b16 %v1490, %v1489
        %1507 = vmatprep.subr.bf16.mxu0 0
        %1508 = vmatpush1.bf16.msra.mxu0 %v1498
        %1509 = vmatprep.subr.bf16.mxu0 0
        %1510 = vmatpush1.bf16.msra.mxu0 %v1497
        %1511 = vmatprep.subr.bf16.mxu0 0
        %1512 = vmatpush1.bf16.msra.mxu0 %v1496
        %1513 = vmatprep.subr.bf16.mxu0 0
        %1514 = vmatpush1.bf16.msra.mxu0 %v1495
        %1515 = vmatprep.subr.bf16.mxu0 0
        %1516 = vmatpush1.bf16.msra.mxu0 %v1494
        %1517 = vmatprep.subr.bf16.mxu0 0
        %1518 = vmatpush1.bf16.msra.mxu0 %v1493
        %1519 = vmatprep.subr.bf16.mxu0 0
        %1520 = vmatpush1.bf16.msra.mxu0 %v1492
        %1521 = vmatprep.subr.bf16.mxu0 0
        %1522 = vmatpush1.bf16.msra.mxu0 %v1491
        %1523 = vmatprep.subr.bf16.mxu0 0
        %1524 = vmatpush2.bf16.msra.mxu0 0
        %1525 = vmatprep.subr.bf16.mxu0 0
        %1526 = vmatpush2.bf16.msra.mxu0 0
        %1527 = vmatprep.subr.bf16.mxu0 0
        %1528 = vmatpush2.bf16.msra.mxu0 0
        %1529 = vmatprep.subr.bf16.mxu0 0
        %1530 = vmatpush2.bf16.msra.mxu0 0
        %1531 = vmatprep.subr.bf16.mxu0 0
        %1532 = vmatpush2.bf16.msra.mxu0 0
        %1533 = vmatprep.subr.bf16.mxu0 0
        %1534 = vmatpush2.bf16.msra.mxu0 0
        %1535 = vmatprep.subr.bf16.mxu0 0
        %1536 = vmatpush2.bf16.msra.mxu0 0
        %1537 = vmatprep.subr.bf16.mxu0 0
        %1538 = vmatpush2.bf16.msra.mxu0 0
        %1539 = vmatprep.mubr.bf16.mxu0 0
        %1540 = vmatmul.mubr.bf16.gmra.mxu0 %v1435
        %v1541 = vpop.f32.mrf.mxu0
        %v1542 = vadd.f32 %v1457, %v1541
        %v1543 = vpop.f32.mrf.mxu0
        %v1544 = vpop.f32.mrf.mxu0
        %v1545 = vpop.f32.mrf.mxu0
        %1546 = vdwg.mxu0
        %v1547 = vadd.f32 %v1542, %v1366
        %v1548 = vld [vmem:[%s13] sm:$0x1]
        %v1549 = vld [vmem:[%s14] sm:$0x1]
        %v1550 = vsel %vm767, %v1547, 0.0
        %1551 = vadd.xlane.f32.xlu0 %v1550
        %v1552 = vpop.xlane.xlu0 %1551
        %v1553 = vmul.f32 %v1552, %v1342
        %v1554 = vsub.f32 %v1547, %v1553
        %v1555 = vmul.f32 %v1554, %v1554
        %v1556 = vsel %vm767, %v1555, 0.0
        %1557 = vadd.xlane.f32.xlu0 %v1556
        %v1558 = vpop.xlane.xlu0 %1557
        %v1559 = vmul.f32 %v1558, %v1342
        %v1560 = vadd.f32 %v1559, 1e-05
        %v1561 = vrsqrt.pop %v1560
        %v1562 = vmul.f32 %v1554, %v1561
        %v1564 = vlaneseq
        %v1565 = vshrl.u32 %v1564, 7
        %v1566 = vsub.s32 0, %v1565
        %v1567 = vrot.slane %v1548, %v1566
        %v1569 = vmul.f32 %v1562, %v1567
        %v1571 = vlaneseq
        %v1572 = vshrl.u32 %v1571, 7
        %v1573 = vsub.s32 0, %v1572
        %v1574 = vrot.slane %v1549, %v1573
        %v1576 = vadd.f32 %v1569, %v1574
        %1577 = vst.msk [vmem:[%s573] sm:$0xff] %vm767, %v1576
        %s1578 = sand.u32 %s381, 1
        %s1579 = scalar_lea.sflag [#allocation6], %s1578
        %s1580 = sand.u32 %s381, 1
        %s1581 = smul.addr %s1580, 8
        %s1582 = scalar_lea.vmem [#allocation12], %s1581
        // Predicated region
        $region101: #{tpu_custom_call.1} parent=79 // pred_check
          %p1583 = pneg %p391
        $region102: #{tpu_custom_call.1} parent=79 // pred_check_branch
          %1585 = sbr.rel (%p1583) target = $region104
        $region103: #{tpu_custom_call.1} parent=79 // pred_region
          %s1587 = ssub.s32 128, 128
          %1588 = vsyncadd %s1579, %s1587
          %s1589 = sadd.s32 %s37, %s36
          %s1590 = smul.addr %s1589, 128
          %s1591 = scalar_lea.hbm %s15, %s1590
          %s1593 = sshll.u32 %s1582, 4
          %s1594 = int_to_ptr.vmem [resolvable:$true] %s1593
          %1596 = dma.vmem_to_hbm [thread:$0]  %s1594, 128, %s1591, %s1579
        $region104: #{tpu_custom_call.1} parent=79 // pred_fallthru
          _
      $region80: #{tpu_custom_call.1} parent=5 // pred_fallthru
        _
      %p1597 = scmp.le.s32.totalorder 2, %s27
      // Predicated region
      $region105: #{tpu_custom_call.1} parent=5 // pred_check
        %p1598 = pneg %p1597
      $region106: #{tpu_custom_call.1} parent=5 // pred_check_branch
        %1600 = sbr.rel (%p1598) target = $region108
      $region107: #{tpu_custom_call.1} parent=5 // pred_region
        %s1601 = ssub.s32 %s27, 2
        // Predicated region
        $region109: #{tpu_custom_call.1} parent=107 // pred_check
          %p1602 = pneg %p397
        $region110: #{tpu_custom_call.1} parent=107 // pred_check_branch
          %1604 = sbr.rel (%p1602) target = $region112
        $region111: #{tpu_custom_call.1} parent=107 // pred_region
          %s1605 = sand.u32 %s382, 1
          %s1606 = scalar_lea.sflag [#allocation6], %s1605
          %s1607 = sand.u32 %s382, 1
          %s1608 = smul.addr %s1607, 8
          %s1609 = scalar_lea.vmem [#allocation12], %s1608
          %1610 = dma.done %s1606, 128
        $region112: #{tpu_custom_call.1} parent=107 // pred_fallthru
          _
      $region108: #{tpu_custom_call.1} parent=5 // pred_fallthru
        _
    $region6: #{tpu_custom_call.1} parent=1 // loop_footer
      %s31 = sadd.s32 1, %s27
    $region7: #{tpu_custom_call.1} parent=1 // loop_footer_branch
      %26 = sbr.rel target = $region3
    $region8: #{tpu_custom_call.1} parent=1 // loop_exit
      _
    %1611 = vsyncpa [#allocation5], 1
    %s1612 = scalar_lea.sflag [#allocation5], 1
    %1613 = vsyncpa %s1612, 1
    %1614 = vsyncpa [#allocation8], 1
    %1615 = vsyncpa [#allocation11], 1
    %1616 = vsyncpa [#allocation6], 1
    %s1617 = scalar_lea.sflag [#allocation6], 1
    %1618 = vsyncpa %s1617, 1

// kernel: tpu_custom_call.1
$region0: #{tpu_custom_call.1}
  #allocation0 [shape = 'u32[]', space=smem, size = 0x4, offset = 0x4, fixed_abs, tag = 'smem constant byte address 0x4 - core index']
  #allocation1 [shape = 'u32[144,128]{1,0:T(1,128)}', space=vmem, size = 0x12000, scoped, tag = 'internal scratch']
  #allocation2 [shape = 'bf16[4,8,8]{2,1,0:T(8,128)(2,1)}', space=vmem, size = 0x2000, scoped, tag = 'scratch operand']
  #allocation3 [shape = 'bf16[4,8,8]{2,1,0:T(8,128)(2,1)}', space=vmem, size = 0x2000, scoped, tag = 'scratch operand']
  %s0 = inlined_call_operand.vmem [shape: f32[2,8,32], index: 0, kind: input, shape index: {}]
  %s1 = inlined_call_operand.vmem [shape: f32[2,8,32], index: 1, kind: input, shape index: {}]
  %s2 = inlined_call_operand.vmem [shape: bf16[32,32], index: 2, kind: input, shape index: {}]
  %s3 = inlined_call_operand.vmem [shape: bf16[32,32], index: 3, kind: input, shape index: {}]
  %s4 = inlined_call_operand.vmem [shape: bf16[32,32], index: 4, kind: input, shape index: {}]
  %s5 = inlined_call_operand.hbm [shape: bf16[32,32], index: 5, kind: input, shape index: {}]
  %s6 = inlined_call_operand.hbm [shape: f32[1,32], index: 6, kind: input, shape index: {}]
  %s7 = inlined_call_operand.hbm [shape: f32[1,32], index: 7, kind: input, shape index: {}]
  %s8 = inlined_call_operand.hbm [shape: f32[1,32], index: 8, kind: input, shape index: {}]
  %s9 = inlined_call_operand.vmem [shape: bf16[32,128], index: 9, kind: input, shape index: {}]
  %s10 = inlined_call_operand.vmem [shape: f32[1,128], index: 10, kind: input, shape index: {}]
  %s11 = inlined_call_operand.vmem [shape: bf16[128,32], index: 11, kind: input, shape index: {}]
  %s12 = inlined_call_operand.vmem [shape: f32[1,32], index: 12, kind: input, shape index: {}]
  %s13 = inlined_call_operand.vmem [shape: f32[1,32], index: 13, kind: input, shape index: {}]
  %s14 = inlined_call_operand.vmem [shape: f32[1,32], index: 14, kind: input, shape index: {}]
  %s15 = inlined_call_operand.hbm [shape: f32[2,8,32], index: 15, kind: output, shape index: {}]
  %s16 = sld [smem:[#allocation0]]
  $region113: #{tpu_custom_call.1} parent=0
    _
  %s18 = ssub.s32 1, %s16
  %s19 = scalar_select 0, %s18, %s16
  $region1: #{tpu_custom_call.1} parent=0
    #allocation4 [shape = 'u8[8192]{0}', space=vmem, size = 0x2000, scoped, tag = 'input window, operand 5, single buffered']
    #allocation5 [shape = 's32[2]{0}', space=sflag, size = 0x8, scoped, tag = 'scoped memory for tpu_custom_call.1']
    #allocation6 [shape = 's32[2]{0}', space=sflag, size = 0x8, scoped, tag = 'scoped memory for tpu_custom_call.1']
    #allocation7 [shape = 'u8[512]{0}', space=vmem, size = 0x400, scoped, tag = 'input window, operand 6, single buffered']
    #allocation8 [shape = 's32[1]{0}', space=sflag, size = 0x4, scoped, tag = 'scoped memory for tpu_custom_call.1']
    #allocation9 [shape = 'u8[512]{0}', space=vmem, size = 0x400, scoped, tag = 'input window, operand 7, single buffered']
    #allocation10 [shape = 'u8[512]{0}', space=vmem, size = 0x400, scoped, tag = 'input window, operand 8, single buffered']
    #allocation11 [shape = 's32[1]{0}', space=sflag, size = 0x4, scoped, tag = 'scoped memory for tpu_custom_call.1']
    #allocation12 [shape = 'u8[8192]{0}', space=vmem, size = 0x2000, scoped, tag = 'output window, operand 0']
    %20 = vsyncpa [#allocation5], 0
    %21 = vsyncpa [#allocation8], 0
    %22 = vsyncpa [#allocation11], 0
    %23 = vsyncpa [#allocation6], 0
    %s24 = scalar_lea.sflag [#allocation6], 1
    %25 = vsyncpa %s24, 0
    loop: start=0, step=1, limit=4
    $region2: #{tpu_custom_call.1} parent=1 // loop_pre_header
      _
    $region3: #{tpu_custom_call.1} parent=1 // loop_header
      %s27 = sphi 0, %s31
      %p28 = scmp.ge.s32.totalorder %s27, 4
      %s34 = sphi 0, %s46
      %s35 = sphi 0, %s42
      %s36 = sphi 0, %s34
      %s37 = sphi 0, %s35
      %s38 = sphi 0, %s36
      %s39 = sphi 0, %s37
      %s49 = sphi 0, %s51
      %s52 = sphi 0, %s49
      %s53 = sphi 0, %s52
      %s69 = sphi 0, %s53
      %s77 = sphi 0, %s79
      %s80 = sphi 0, %s77
      %s81 = sphi 0, %s80
      %s97 = sphi 0, %s81
      %s101 = sphi 0, %s101
      %s103 = sphi 0, %s101
      %s104 = sphi 0, %s103
      %s118 = sphi 0, %s104
      %s122 = sphi 0, %s122
      %s124 = sphi 0, %s122
      %s125 = sphi 0, %s124
      %s139 = sphi 0, %s125
      %s143 = sphi 0, %s143
      %s145 = sphi 0, %s143
      %s146 = sphi 0, %s145
      %s160 = sphi 0, %s146
      %s164 = sphi 0, %s164
      %s166 = sphi 0, %s164
      %s167 = sphi 0, %s166
      %s181 = sphi 0, %s167
      %s185 = sphi 0, %s185
      %s187 = sphi 0, %s185
      %s188 = sphi 0, %s187
      %s202 = sphi 0, %s188
      %s206 = sphi 0, %s206
      %s208 = sphi 0, %s206
      %s209 = sphi 0, %s208
      %s223 = sphi 0, %s209
      %s227 = sphi 0, %s227
      %s229 = sphi 0, %s227
      %s230 = sphi 0, %s229
      %s244 = sphi 0, %s230
      %s248 = sphi 0, %s248
      %s250 = sphi 0, %s248
      %s251 = sphi 0, %s250
      %s265 = sphi 0, %s251
      %s269 = sphi 0, %s269
      %s271 = sphi 0, %s269
      %s272 = sphi 0, %s271
      %s286 = sphi 0, %s272
      %s290 = sphi 0, %s290
      %s292 = sphi 0, %s290
      %s293 = sphi 0, %s292
      %s307 = sphi 0, %s293
      %s311 = sphi 0, %s311
      %s313 = sphi 0, %s311
      %s314 = sphi 0, %s313
      %s328 = sphi 0, %s314
      %s332 = sphi 0, %s332
      %s334 = sphi 0, %s332
      %s335 = sphi 0, %s334
      %s349 = sphi 0, %s335
      %s353 = sphi 0, %s353
      %s355 = sphi 0, %s353
      %s356 = sphi 0, %s355
      %s370 = sphi 0, %s356
      %s378 = sphi 0, %s380
      %s381 = sphi 0, %s378
      %s382 = sphi 0, %s381
      %s398 = sphi 0, %s382
    $region4: #{tpu_custom_call.1} parent=1 // loop_header_branch
      %30 = sbr.rel (%p28) target = $region8
    $region5: #{tpu_custom_call.1} parent=1 // loop_body
      %s32 = ssub.s32 %s27, 1
      %s33 = ssub.s32 %s27, 2
      %s40 = sadd.s32 1, %s35
      %p41 = scmp.ge.s32.totalorder %s40, 1
      %s42 = scalar_select %p41, 0, %s40
      %s43 = sadd.s32 1, %s34
      %s44 = scalar_select %p41, %s43, %s34
      %p45 = scmp.ge.s32.totalorder %s44, 2
      %s46 = scalar_select %p45, 0, %s44
      %s47 = ssub.s32 %s34, %s46
      %p48 = scmp.eq.s32.totalorder %s47, 0
      %s50 = sadd.s32 %s49, 1
      %s51 = scalar_select %p48, %s49, %s50
      %p54 = pneg %p48
      %p55 = scmp.eq.s32.totalorder %s27, 1
      %p56 = por %p54, %p55
      %p57 = scmp.ne.s32.totalorder %s49, %s52
      %p58 = scmp.eq.s32.totalorder %s27, 0
      %p59 = por %p57, %p58
      %p60 = scmp.ne.s32.totalorder %s49, %s52
      %p61 = scmp.eq.s32.totalorder %s32, 1
      %p62 = por %p60, %p61
      %p63 = scmp.ne.s32.totalorder %s52, %s53
      %p64 = scmp.eq.s32.totalorder %s32, 0
      %p65 = por %p63, %p64
      %p66 = scmp.ne.s32.totalorder %s52, %s53
      %p67 = scmp.eq.s32.totalorder %s33, 1
      %p68 = por %p66, %p67
      %p70 = scmp.ne.s32.totalorder %s53, %s69
      %p71 = scmp.eq.s32.totalorder %s33, 0
      %p72 = por %p70, %p71
      %s73 = ssub.s32 %s34, %s46
      %s74 = ssub.s32 %s35, %s42
      %s75 = sor.u32 %s73, %s74
      %p76 = scmp.eq.s32.totalorder %s75, 0
      %s78 = sadd.s32 %s77, 1
      %s79 = scalar_select %p76, %s77, %s78
      %p82 = pneg %p76
      %p83 = scmp.eq.s32.totalorder %s27, 1
      %p84 = por %p82, %p83
      %p85 = scmp.ne.s32.totalorder %s77, %s80
      %p86 = scmp.eq.s32.totalorder %s27, 0
      %p87 = por %p85, %p86
      %p88 = scmp.ne.s32.totalorder %s77, %s80
      %p89 = scmp.eq.s32.totalorder %s32, 1
      %p90 = por %p88, %p89
      %p91 = scmp.ne.s32.totalorder %s80, %s81
      %p92 = scmp.eq.s32.totalorder %s32, 0
      %p93 = por %p91, %p92
      %p94 = scmp.ne.s32.totalorder %s80, %s81
      %p95 = scmp.eq.s32.totalorder %s33, 1
      %p96 = por %p94, %p95
      %p98 = scmp.ne.s32.totalorder %s81, %s97
      %p99 = scmp.eq.s32.totalorder %s33, 0
      %p100 = por %p98, %p99
      %s102 = sadd.s32 %s101, 1
      %p105 = scmp.eq.s32.totalorder %s27, 1
      %p106 = scmp.ne.s32.totalorder %s101, %s103
      %p107 = scmp.eq.s32.totalorder %s27, 0
      %p108 = por %p106, %p107
      %p109 = scmp.ne.s32.totalorder %s101, %s103
      %p110 = scmp.eq.s32.totalorder %s32, 1
      %p111 = por %p109, %p110
      %p112 = scmp.ne.s32.totalorder %s103, %s104
      %p113 = scmp.eq.s32.totalorder %s32, 0
      %p114 = por %p112, %p113
      %p115 = scmp.ne.s32.totalorder %s103, %s104
      %p116 = scmp.eq.s32.totalorder %s33, 1
      %p117 = por %p115, %p116
      %p119 = scmp.ne.s32.totalorder %s104, %s118
      %p120 = scmp.eq.s32.totalorder %s33, 0
      %p121 = por %p119, %p120
      %s123 = sadd.s32 %s122, 1
      %p126 = scmp.eq.s32.totalorder %s27, 1
      %p127 = scmp.ne.s32.totalorder %s122, %s124
      %p128 = scmp.eq.s32.totalorder %s27, 0
      %p129 = por %p127, %p128
      %p130 = scmp.ne.s32.totalorder %s122, %s124
      %p131 = scmp.eq.s32.totalorder %s32, 1
      %p132 = por %p130, %p131
      %p133 = scmp.ne.s32.totalorder %s124, %s125
      %p134 = scmp.eq.s32.totalorder %s32, 0
      %p135 = por %p133, %p134
      %p136 = scmp.ne.s32.totalorder %s124, %s125
      %p137 = scmp.eq.s32.totalorder %s33, 1
      %p138 = por %p136, %p137
      %p140 = scmp.ne.s32.totalorder %s125, %s139
      %p141 = scmp.eq.s32.totalorder %s33, 0
      %p142 = por %p140, %p141
      %s144 = sadd.s32 %s143, 1
      %p147 = scmp.eq.s32.totalorder %s27, 1
      %p148 = scmp.ne.s32.totalorder %s143, %s145
      %p149 = scmp.eq.s32.totalorder %s27, 0
      %p150 = por %p148, %p149
      %p151 = scmp.ne.s32.totalorder %s143, %s145
      %p152 = scmp.eq.s32.totalorder %s32, 1
      %p153 = por %p151, %p152
      %p154 = scmp.ne.s32.totalorder %s145, %s146
      %p155 = scmp.eq.s32.totalorder %s32, 0
      %p156 = por %p154, %p155
      %p157 = scmp.ne.s32.totalorder %s145, %s146
      %p158 = scmp.eq.s32.totalorder %s33, 1
      %p159 = por %p157, %p158
      %p161 = scmp.ne.s32.totalorder %s146, %s160
      %p162 = scmp.eq.s32.totalorder %s33, 0
      %p163 = por %p161, %p162
      %s165 = sadd.s32 %s164, 1
      %p168 = scmp.eq.s32.totalorder %s27, 1
      %p169 = scmp.ne.s32.totalorder %s164, %s166
      %p170 = scmp.eq.s32.totalorder %s27, 0
      %p171 = por %p169, %p170
      %p172 = scmp.ne.s32.totalorder %s164, %s166
      %p173 = scmp.eq.s32.totalorder %s32, 1
      %p174 = por %p172, %p173
      %p175 = scmp.ne.s32.totalorder %s166, %s167
      %p176 = scmp.eq.s32.totalorder %s32, 0
      %p177 = por %p175, %p176
      %p178 = scmp.ne.s32.totalorder %s166, %s167
      %p179 = scmp.eq.s32.totalorder %s33, 1
      %p180 = por %p178, %p179
      %p182 = scmp.ne.s32.totalorder %s167, %s181
      %p183 = scmp.eq.s32.totalorder %s33, 0
      %p184 = por %p182, %p183
      %s186 = sadd.s32 %s185, 1
      %p189 = scmp.eq.s32.totalorder %s27, 1
      %p190 = scmp.ne.s32.totalorder %s185, %s187
      %p191 = scmp.eq.s32.totalorder %s27, 0
      %p192 = por %p190, %p191
      %p193 = scmp.ne.s32.totalorder %s185, %s187
      %p194 = scmp.eq.s32.totalorder %s32, 1
      %p195 = por %p193, %p194
      %p196 = scmp.ne.s32.totalorder %s187, %s188
      %p197 = scmp.eq.s32.totalorder %s32, 0
      %p198 = por %p196, %p197
      %p199 = scmp.ne.s32.totalorder %s187, %s188
      %p200 = scmp.eq.s32.totalorder %s33, 1
      %p201 = por %p199, %p200
      %p203 = scmp.ne.s32.totalorder %s188, %s202
      %p204 = scmp.eq.s32.totalorder %s33, 0
      %p205 = por %p203, %p204
      %s207 = sadd.s32 %s206, 1
      %p210 = scmp.eq.s32.totalorder %s27, 1
      %p211 = scmp.ne.s32.totalorder %s206, %s208
      %p212 = scmp.eq.s32.totalorder %s27, 0
      %p213 = por %p211, %p212
      %p214 = scmp.ne.s32.totalorder %s206, %s208
      %p215 = scmp.eq.s32.totalorder %s32, 1
      %p216 = por %p214, %p215
      %p217 = scmp.ne.s32.totalorder %s208, %s209
      %p218 = scmp.eq.s32.totalorder %s32, 0
      %p219 = por %p217, %p218
      %p220 = scmp.ne.s32.totalorder %s208, %s209
      %p221 = scmp.eq.s32.totalorder %s33, 1
      %p222 = por %p220, %p221
      %p224 = scmp.ne.s32.totalorder %s209, %s223
      %p225 = scmp.eq.s32.totalorder %s33, 0
      %p226 = por %p224, %p225
      %s228 = sadd.s32 %s227, 1
      %p231 = scmp.eq.s32.totalorder %s27, 1
      %p232 = scmp.ne.s32.totalorder %s227, %s229
      %p233 = scmp.eq.s32.totalorder %s27, 0
      %p234 = por %p232, %p233
      %p235 = scmp.ne.s32.totalorder %s227, %s229
      %p236 = scmp.eq.s32.totalorder %s32, 1
      %p237 = por %p235, %p236
      %p238 = scmp.ne.s32.totalorder %s229, %s230
      %p239 = scmp.eq.s32.totalorder %s32, 0
      %p240 = por %p238, %p239
      %p241 = scmp.ne.s32.totalorder %s229, %s230
      %p242 = scmp.eq.s32.totalorder %s33, 1
      %p243 = por %p241, %p242
      %p245 = scmp.ne.s32.totalorder %s230, %s244
      %p246 = scmp.eq.s32.totalorder %s33, 0
      %p247 = por %p245, %p246
      %s249 = sadd.s32 %s248, 1
      %p252 = scmp.eq.s32.totalorder %s27, 1
      %p253 = scmp.ne.s32.totalorder %s248, %s250
      %p254 = scmp.eq.s32.totalorder %s27, 0
      %p255 = por %p253, %p254
      %p256 = scmp.ne.s32.totalorder %s248, %s250
      %p257 = scmp.eq.s32.totalorder %s32, 1
      %p258 = por %p256, %p257
      %p259 = scmp.ne.s32.totalorder %s250, %s251
      %p260 = scmp.eq.s32.totalorder %s32, 0
      %p261 = por %p259, %p260
      %p262 = scmp.ne.s32.totalorder %s250, %s251
      %p263 = scmp.eq.s32.totalorder %s33, 1
      %p264 = por %p262, %p263
      %p266 = scmp.ne.s32.totalorder %s251, %s265
      %p267 = scmp.eq.s32.totalorder %s33, 0
      %p268 = por %p266, %p267
      %s270 = sadd.s32 %s269, 1
      %p273 = scmp.eq.s32.totalorder %s27, 1
      %p274 = scmp.ne.s32.totalorder %s269, %s271
      %p275 = scmp.eq.s32.totalorder %s27, 0
      %p276 = por %p274, %p275
      %p277 = scmp.ne.s32.totalorder %s269, %s271
      %p278 = scmp.eq.s32.totalorder %s32, 1
      %p279 = por %p277, %p278
      %p280 = scmp.ne.s32.totalorder %s271, %s272
      %p281 = scmp.eq.s32.totalorder %s32, 0
      %p282 = por %p280, %p281
      %p283 = scmp.ne.s32.totalorder %s271, %s272
      %p284 = scmp.eq.s32.totalorder %s33, 1
      %p285 = por %p283, %p284
      %p287 = scmp.ne.s32.totalorder %s272, %s286
      %p288 = scmp.eq.s32.totalorder %s33, 0
      %p289 = por %p287, %p288
      %s291 = sadd.s32 %s290, 1
      %p294 = scmp.eq.s32.totalorder %s27, 1
      %p295 = scmp.ne.s32.totalorder %s290, %s292
      %p296 = scmp.eq.s32.totalorder %s27, 0
      %p297 = por %p295, %p296
      %p298 = scmp.ne.s32.totalorder %s290, %s292
      %p299 = scmp.eq.s32.totalorder %s32, 1
      %p300 = por %p298, %p299
      %p301 = scmp.ne.s32.totalorder %s292, %s293
      %p302 = scmp.eq.s32.totalorder %s32, 0
      %p303 = por %p301, %p302
      %p304 = scmp.ne.s32.totalorder %s292, %s293
      %p305 = scmp.eq.s32.totalorder %s33, 1
      %p306 = por %p304, %p305
      %p308 = scmp.ne.s32.totalorder %s293, %s307
      %p309 = scmp.eq.s32.totalorder %s33, 0
      %p310 = por %p308, %p309
      %s312 = sadd.s32 %s311, 1
      %p315 = scmp.eq.s32.totalorder %s27, 1
      %p316 = scmp.ne.s32.totalorder %s311, %s313
      %p317 = scmp.eq.s32.totalorder %s27, 0
      %p318 = por %p316, %p317
      %p319 = scmp.ne.s32.totalorder %s311, %s313
      %p320 = scmp.eq.s32.totalorder %s32, 1
      %p321 = por %p319, %p320
      %p322 = scmp.ne.s32.totalorder %s313, %s314
      %p323 = scmp.eq.s32.totalorder %s32, 0
      %p324 = por %p322, %p323
      %p325 = scmp.ne.s32.totalorder %s313, %s314
      %p326 = scmp.eq.s32.totalorder %s33, 1
      %p327 = por %p325, %p326
      %p329 = scmp.ne.s32.totalorder %s314, %s328
      %p330 = scmp.eq.s32.totalorder %s33, 0
      %p331 = por %p329, %p330
      %s333 = sadd.s32 %s332, 1
      %p336 = scmp.eq.s32.totalorder %s27, 1
      %p337 = scmp.ne.s32.totalorder %s332, %s334
      %p338 = scmp.eq.s32.totalorder %s27, 0
      %p339 = por %p337, %p338
      %p340 = scmp.ne.s32.totalorder %s332, %s334
      %p341 = scmp.eq.s32.totalorder %s32, 1
      %p342 = por %p340, %p341
      %p343 = scmp.ne.s32.totalorder %s334, %s335
      %p344 = scmp.eq.s32.totalorder %s32, 0
      %p345 = por %p343, %p344
      %p346 = scmp.ne.s32.totalorder %s334, %s335
      %p347 = scmp.eq.s32.totalorder %s33, 1
      %p348 = por %p346, %p347
      %p350 = scmp.ne.s32.totalorder %s335, %s349
      %p351 = scmp.eq.s32.totalorder %s33, 0
      %p352 = por %p350, %p351
      %s354 = sadd.s32 %s353, 1
      %p357 = scmp.eq.s32.totalorder %s27, 1
      %p358 = scmp.ne.s32.totalorder %s353, %s355
      %p359 = scmp.eq.s32.totalorder %s27, 0
      %p360 = por %p358, %p359
      %p361 = scmp.ne.s32.totalorder %s353, %s355
      %p362 = scmp.eq.s32.totalorder %s32, 1
      %p363 = por %p361, %p362
      %p364 = scmp.ne.s32.totalorder %s355, %s356
      %p365 = scmp.eq.s32.totalorder %s32, 0
      %p366 = por %p364, %p365
      %p367 = scmp.ne.s32.totalorder %s355, %s356
      %p368 = scmp.eq.s32.totalorder %s33, 1
      %p369 = por %p367, %p368
      %p371 = scmp.ne.s32.totalorder %s356, %s370
      %p372 = scmp.eq.s32.totalorder %s33, 0
      %p373 = por %p371, %p372
      %s374 = ssub.s32 %s34, %s46
      %s375 = ssub.s32 %s35, %s42
      %s376 = sor.u32 %s374, %s375
      %p377 = scmp.eq.s32.totalorder %s376, 0
      %s379 = sadd.s32 %s378, 1
      %s380 = scalar_select %p377, %s378, %s379
      %p383 = pneg %p377
      %p384 = scmp.eq.s32.totalorder %s27, 1
      %p385 = por %p383, %p384
      %p386 = scmp.ne.s32.totalorder %s378, %s381
      %p387 = scmp.eq.s32.totalorder %s27, 0
      %p388 = por %p386, %p387
      %p389 = scmp.ne.s32.totalorder %s378, %s381
      %p390 = scmp.eq.s32.totalorder %s32, 1
      %p391 = por %p389, %p390
      %p392 = scmp.ne.s32.totalorder %s381, %s382
      %p393 = scmp.eq.s32.totalorder %s32, 0
      %p394 = por %p392, %p393
      %p395 = scmp.ne.s32.totalorder %s381, %s382
      %p396 = scmp.eq.s32.totalorder %s33, 1
      %p397 = por %p395, %p396
      %p399 = scmp.ne.s32.totalorder %s382, %s398
      %p400 = scmp.eq.s32.totalorder %s33, 0
      %p401 = por %p399, %p400
      %p402 = scmp.le.s32.totalorder 1, %s27
      %p403 = scmp.lt.s32.totalorder %s27, 3
      %p404 = pnand %p402, %p403
      %p405 = pneg %p404
      // Predicated region
      $region9: #{tpu_custom_call.1} parent=5 // pred_check
        _
      $region10: #{tpu_custom_call.1} parent=5 // pred_check_branch
        %407 = sbr.rel (%p404) target = $region12
      $region11: #{tpu_custom_call.1} parent=5 // pred_region
        %s408 = ssub.s32 %s27, 1
        // Predicated region
        $region13: #{tpu_custom_call.1} parent=11 // pred_check
          %p409 = pneg %p114
        $region14: #{tpu_custom_call.1} parent=11 // pred_check_branch
          %411 = sbr.rel (%p409) target = $region16
        $region15: #{tpu_custom_call.1} parent=11 // pred_region
          _
        $region16: #{tpu_custom_call.1} parent=11 // pred_fallthru
          _
        // Predicated region
        $region17: #{tpu_custom_call.1} parent=11 // pred_check
          %p412 = pneg %p135
        $region18: #{tpu_custom_call.1} parent=11 // pred_check_branch
          %414 = sbr.rel (%p412) target = $region20
        $region19: #{tpu_custom_call.1} parent=11 // pred_region
          _
        $region20: #{tpu_custom_call.1} parent=11 // pred_fallthru
          _
        // Predicated region
        $region21: #{tpu_custom_call.1} parent=11 // pred_check
          %p415 = pneg %p156
        $region22: #{tpu_custom_call.1} parent=11 // pred_check_branch
          %417 = sbr.rel (%p415) target = $region24
        $region23: #{tpu_custom_call.1} parent=11 // pred_region
          _
        $region24: #{tpu_custom_call.1} parent=11 // pred_fallthru
          _
        // Predicated region
        $region25: #{tpu_custom_call.1} parent=11 // pred_check
          %p418 = pneg %p177
        $region26: #{tpu_custom_call.1} parent=11 // pred_check_branch
          %420 = sbr.rel (%p418) target = $region28
        $region27: #{tpu_custom_call.1} parent=11 // pred_region
          %s422 = ssub.s32 256, 256
          %423 = vsyncadd [#allocation5], %s422
          %s424 = sshll.u32 [#allocation4], 4
          %s425 = int_to_ptr.vmem [resolvable:$true] %s424
          %430 = dma.hbm_to_vmem [thread:$0]  %s5, 256, %s425, [#allocation5], 64, 64, 4
        $region28: #{tpu_custom_call.1} parent=11 // pred_fallthru
          _
        // Predicated region
        $region29: #{tpu_custom_call.1} parent=11 // pred_check
          %p431 = pneg %p198
        $region30: #{tpu_custom_call.1} parent=11 // pred_check_branch
          %433 = sbr.rel (%p431) target = $region32
        $region31: #{tpu_custom_call.1} parent=11 // pred_region
          %s435 = ssub.s32 16, 16
          %436 = vsyncadd [#allocation8], %s435
          %s438 = sshll.u32 [#allocation7], 4
          %s439 = int_to_ptr.vmem [resolvable:$true] %s438
          %441 = dma.hbm_to_vmem [thread:$0]  %s6, 16, %s439, [#allocation8]
        $region32: #{tpu_custom_call.1} parent=11 // pred_fallthru
          _
        // Predicated region
        $region33: #{tpu_custom_call.1} parent=11 // pred_check
          %p442 = pneg %p219
        $region34: #{tpu_custom_call.1} parent=11 // pred_check_branch
          %444 = sbr.rel (%p442) target = $region36
        $region35: #{tpu_custom_call.1} parent=11 // pred_region
          %s446 = ssub.s32 16, 16
          %447 = vsyncadd [#allocation8], %s446
          %s449 = sshll.u32 [#allocation9], 4
          %s450 = int_to_ptr.vmem [resolvable:$true] %s449
          %452 = dma.hbm_to_vmem [thread:$0]  %s7, 16, %s450, [#allocation8]
        $region36: #{tpu_custom_call.1} parent=11 // pred_fallthru
          _
        // Predicated region
        $region37: #{tpu_custom_call.1} parent=11 // pred_check
          %p453 = pneg %p240
        $region38: #{tpu_custom_call.1} parent=11 // pred_check_branch
          %455 = sbr.rel (%p453) target = $region40
        $region39: #{tpu_custom_call.1} parent=11 // pred_region
          %s457 = ssub.s32 16, 16
          %458 = vsyncadd [#allocation11], %s457
          %s460 = sshll.u32 [#allocation10], 4
          %s461 = int_to_ptr.vmem [resolvable:$true] %s460
          %463 = dma.hbm_to_vmem [thread:$0]  %s8, 16, %s461, [#allocation11]
        $region40: #{tpu_custom_call.1} parent=11 // pred_fallthru
          _
        // Predicated region
        $region41: #{tpu_custom_call.1} parent=11 // pred_check
          %p464 = pneg %p261
        $region42: #{tpu_custom_call.1} parent=11 // pred_check_branch
          %466 = sbr.rel (%p464) target = $region44
        $region43: #{tpu_custom_call.1} parent=11 // pred_region
          _
        $region44: #{tpu_custom_call.1} parent=11 // pred_fallthru
          _
        // Predicated region
        $region45: #{tpu_custom_call.1} parent=11 // pred_check
          %p467 = pneg %p282
        $region46: #{tpu_custom_call.1} parent=11 // pred_check_branch
          %469 = sbr.rel (%p467) target = $region48
        $region47: #{tpu_custom_call.1} parent=11 // pred_region
          _
        $region48: #{tpu_custom_call.1} parent=11 // pred_fallthru
          _
        // Predicated region
        $region49: #{tpu_custom_call.1} parent=11 // pred_check
          %p470 = pneg %p303
        $region50: #{tpu_custom_call.1} parent=11 // pred_check_branch
          %472 = sbr.rel (%p470) target = $region52
        $region51: #{tpu_custom_call.1} parent=11 // pred_region
          _
        $region52: #{tpu_custom_call.1} parent=11 // pred_fallthru
          _
        // Predicated region
        $region53: #{tpu_custom_call.1} parent=11 // pred_check
          %p473 = pneg %p324
        $region54: #{tpu_custom_call.1} parent=11 // pred_check_branch
          %475 = sbr.rel (%p473) target = $region56
        $region55: #{tpu_custom_call.1} parent=11 // pred_region
          _
        $region56: #{tpu_custom_call.1} parent=11 // pred_fallthru
          _
        // Predicated region
        $region57: #{tpu_custom_call.1} parent=11 // pred_check
          %p476 = pneg %p345
        $region58: #{tpu_custom_call.1} parent=11 // pred_check_branch
          %478 = sbr.rel (%p476) target = $region60
        $region59: #{tpu_custom_call.1} parent=11 // pred_region
          _
        $region60: #{tpu_custom_call.1} parent=11 // pred_fallthru
          _
        // Predicated region
        $region61: #{tpu_custom_call.1} parent=11 // pred_check
          %p479 = pneg %p366
        $region62: #{tpu_custom_call.1} parent=11 // pred_check_branch
          %481 = sbr.rel (%p479) target = $region64
        $region63: #{tpu_custom_call.1} parent=11 // pred_region
          _
        $region64: #{tpu_custom_call.1} parent=11 // pred_fallthru
          _
      $region12: #{tpu_custom_call.1} parent=5 // pred_fallthru
        _
      %p482 = scmp.lt.s32.totalorder %s27, 2
      // Predicated region
      $region65: #{tpu_custom_call.1} parent=5 // pred_check
        %p483 = pneg %p482
      $region66: #{tpu_custom_call.1} parent=5 // pred_check_branch
        %485 = sbr.rel (%p483) target = $region68
      $region67: #{tpu_custom_call.1} parent=5 // pred_region
        // Predicated region
        $region69: #{tpu_custom_call.1} parent=67 // pred_check
          %p486 = pneg %p59
        $region70: #{tpu_custom_call.1} parent=67 // pred_check_branch
          %488 = sbr.rel (%p486) target = $region72
        $region71: #{tpu_custom_call.1} parent=67 // pred_region
          %p489 = scmp.lt.s32.totalorder %s34, 1
          %s490 = scalar_select %p489, %s34, 1
          %s491 = smul.addr %s490, 8
          %s492 = scalar_lea.vmem %s0, %s491
        $region72: #{tpu_custom_call.1} parent=67 // pred_fallthru
          _
        // Predicated region
        $region73: #{tpu_custom_call.1} parent=67 // pred_check
          %p493 = pneg %p87
        $region74: #{tpu_custom_call.1} parent=67 // pred_check_branch
          %495 = sbr.rel (%p493) target = $region76
        $region75: #{tpu_custom_call.1} parent=67 // pred_region
          %p496 = scmp.lt.s32.totalorder %s34, 1
          %s497 = scalar_select %p496, %s34, 1
          %p498 = scmp.lt.s32.totalorder %s35, 0
          %s499 = scalar_select %p498, %s35, 0
          %s500 = sadd.s32 %s499, %s497
          %s501 = smul.addr %s500, 8
          %s502 = scalar_lea.vmem %s1, %s501
        $region76: #{tpu_custom_call.1} parent=67 // pred_fallthru
          _
      $region68: #{tpu_custom_call.1} parent=5 // pred_fallthru
        _
      %p503 = scmp.le.s32.totalorder 1, %s27
      %p504 = scmp.lt.s32.totalorder %s27, 3
      %p505 = pnand %p503, %p504
      %p506 = pneg %p505
      // Predicated region
      $region77: #{tpu_custom_call.1} parent=5 // pred_check
        _
      $region78: #{tpu_custom_call.1} parent=5 // pred_check_branch
        %508 = sbr.rel (%p505) target = $region80
      $region79: #{tpu_custom_call.1} parent=5 // pred_region
        %s509 = ssub.s32 %s27, 1
        // Predicated region
        $region81: #{tpu_custom_call.1} parent=79 // pred_check
          %p510 = pneg %p177
        $region82: #{tpu_custom_call.1} parent=79 // pred_check_branch
          %512 = sbr.rel (%p510) target = $region84
        $region83: #{tpu_custom_call.1} parent=79 // pred_region
          %513 = dma.done [#allocation5], 256
        $region84: #{tpu_custom_call.1} parent=79 // pred_fallthru
          _
        // Predicated region
        $region85: #{tpu_custom_call.1} parent=79 // pred_check
          %p514 = pneg %p198
        $region86: #{tpu_custom_call.1} parent=79 // pred_check_branch
          %516 = sbr.rel (%p514) target = $region88
        $region87: #{tpu_custom_call.1} parent=79 // pred_region
          %517 = dma.done [#allocation8], 16
        $region88: #{tpu_custom_call.1} parent=79 // pred_fallthru
          _
        // Predicated region
        $region89: #{tpu_custom_call.1} parent=79 // pred_check
          %p518 = pneg %p219
        $region90: #{tpu_custom_call.1} parent=79 // pred_check_branch
          %520 = sbr.rel (%p518) target = $region92
        $region91: #{tpu_custom_call.1} parent=79 // pred_region
          %521 = dma.done [#allocation8], 16
        $region92: #{tpu_custom_call.1} parent=79 // pred_fallthru
          _
        // Predicated region
        $region93: #{tpu_custom_call.1} parent=79 // pred_check
          %p522 = pneg %p240
        $region94: #{tpu_custom_call.1} parent=79 // pred_check_branch
          %524 = sbr.rel (%p522) target = $region96
        $region95: #{tpu_custom_call.1} parent=79 // pred_region
          %525 = dma.done [#allocation11], 16
        $region96: #{tpu_custom_call.1} parent=79 // pred_fallthru
          _
        %p526 = scmp.lt.s32.totalorder %s36, 1
        %s527 = scalar_select %p526, %s36, 1
        %s528 = smul.addr %s527, 8
        %s529 = scalar_lea.vmem %s0, %s528
        %p530 = pneg %p65
        %p531 = pneg %p62
        %p532 = scmp.lt.s32.totalorder %s36, 1
        %s533 = scalar_select %p532, %s36, 1
        %p534 = scmp.lt.s32.totalorder %s37, 0
        %s535 = scalar_select %p534, %s37, 0
        %s536 = sadd.s32 %s535, %s533
        %s537 = smul.addr %s536, 8
        %s538 = scalar_lea.vmem %s1, %s537
        %p539 = pneg %p93
        %p540 = pneg %p90
        %p541 = pneg %p114
        %p542 = pneg %p111
        %p543 = pneg %p135
        %p544 = pneg %p132
        %p545 = pneg %p156
        %p546 = pneg %p153
        %p547 = pneg %p177
        %p548 = pneg %p174
        %p549 = pneg %p198
        %p550 = pneg %p195
        %p551 = pneg %p219
        %p552 = pneg %p216
        %p553 = pneg %p240
        %p554 = pneg %p237
        %p555 = pneg %p261
        %p556 = pneg %p258
        %p557 = pneg %p282
        %p558 = pneg %p279
        %p559 = pneg %p303
        %p560 = pneg %p300
        %p561 = pneg %p324
        %p562 = pneg %p321
        %p563 = pneg %p345
        %p564 = pneg %p342
        %p565 = pneg %p366
        %p566 = pneg %p363
        %p567 = pneg %p394
        %p568 = pneg %p391
        %s569 = sand.u32 %s381, 1
        %s570 = scalar_lea.sflag [#allocation6], %s569
        %s571 = sand.u32 %s381, 1
        %s572 = smul.addr %s571, 8
        %s573 = scalar_lea.vmem [#allocation12], %s572
        %p574 = scmp.lt.s32.totalorder %s36, 1
        %s575 = scalar_select %p574, %s36, 1
        %s576 = smul.addr %s575, 8
        %s577 = scalar_lea.vmem %s0, %s576
        %p578 = scmp.lt.s32.totalorder %s36, 1
        %s579 = scalar_select %p578, %s36, 1
        %p580 = scmp.lt.s32.totalorder %s37, 0
        %s581 = scalar_select %p580, %s37, 0
        %s582 = sadd.s32 %s581, %s579
        %s583 = smul.addr %s582, 8
        %s584 = scalar_lea.vmem %s1, %s583
        %p586 = scmp.eq.s32.totalorder %s37, 0
        // Predicated region
        $region97: #{tpu_custom_call.1} parent=79 // pred_check
          %p587 = pneg %p586
        $region98: #{tpu_custom_call.1} parent=79 // pred_check_branch
          %589 = sbr.rel (%p587) target = $region100
        $region99: #{tpu_custom_call.1} parent=79 // pred_region
          %v590 = vld [vmem:[%s577] sm:$0xff]
          %v591 = vpack.c.bf16 %v590, %v590
          %v592 = vld [vmem:[%s3] sm:$0xf]
          %v593 = vld [vmem:[%s3 + $0x4] sm:$0xf]
          %v594 = vld [vmem:[%s3 + $0x8] sm:$0xf]
          %v595 = vld [vmem:[%s3 + $0xc] sm:$0xf]
          %v600 = vunpack.c.l.b16 %v592
          %v601 = vunpack.c.l.b16 %v593
          %v602 = vunpack.c.l.b16 %v594
          %v603 = vunpack.c.l.b16 %v595
          %v604 = vpack.c.b16 %v601, %v600
          %v605 = vpack.c.b16 %v603, %v602
          %vm608 = vcmask 261120
          %v610 = vsel %vm608, %v591, 0
          %612 = vmatprep.subr.bf16.mxu0 0
          %613 = vmatpush1.bf16.msra.mxu0 0
          %614 = vmatprep.subr.bf16.mxu0 0
          %615 = vmatpush1.bf16.msra.mxu0 0
          %616 = vmatprep.subr.bf16.mxu0 0
          %617 = vmatpush1.bf16.msra.mxu0 0
          %618 = vmatprep.subr.bf16.mxu0 0
          %619 = vmatpush1.bf16.msra.mxu0 0
          %620 = vmatprep.subr.bf16.mxu0 0
          %621 = vmatpush1.bf16.msra.mxu0 0
          %622 = vmatprep.subr.bf16.mxu0 0
          %623 = vmatpush1.bf16.msra.mxu0 0
          %624 = vmatprep.subr.bf16.mxu0 0
          %625 = vmatpush1.bf16.msra.mxu0 %v605
          %626 = vmatprep.subr.bf16.mxu0 0
          %627 = vmatpush1.bf16.msra.mxu0 %v604
          %628 = vmatprep.subr.bf16.mxu0 0
          %629 = vmatpush2.bf16.msra.mxu0 0
          %630 = vmatprep.subr.bf16.mxu0 0
          %631 = vmatpush2.bf16.msra.mxu0 0
          %632 = vmatprep.subr.bf16.mxu0 0
          %633 = vmatpush2.bf16.msra.mxu0 0
          %634 = vmatprep.subr.bf16.mxu0 0
          %635 = vmatpush2.bf16.msra.mxu0 0
          %636 = vmatprep.subr.bf16.mxu0 0
          %637 = vmatpush2.bf16.msra.mxu0 0
          %638 = vmatprep.subr.bf16.mxu0 0
          %639 = vmatpush2.bf16.msra.mxu0 0
          %640 = vmatprep.subr.bf16.mxu0 0
          %641 = vmatpush2.bf16.msra.mxu0 0
          %642 = vmatprep.subr.bf16.mxu0 0
          %643 = vmatpush2.bf16.msra.mxu0 0
          %644 = vmatprep.mubr.bf16.mxu0 0
          %645 = vmatmul.mubr.bf16.gmra.mxu0 %v610
          %v646 = vpop.f32.mrf.mxu0
          %v647 = vadd.f32 0.0, %v646
          %v648 = vpop.f32.mrf.mxu0
          %v649 = vpop.f32.mrf.mxu0
          %v650 = vpop.f32.mrf.mxu0
          %651 = vdwg.mxu0
          %v652 = vld [vmem:[%s4] sm:$0xf]
          %v653 = vld [vmem:[%s4 + $0x4] sm:$0xf]
          %v654 = vld [vmem:[%s4 + $0x8] sm:$0xf]
          %v655 = vld [vmem:[%s4 + $0xc] sm:$0xf]
          %v660 = vunpack.c.l.b16 %v652
          %v661 = vunpack.c.l.b16 %v653
          %v662 = vunpack.c.l.b16 %v654
          %v663 = vunpack.c.l.b16 %v655
          %v664 = vpack.c.b16 %v661, %v660
          %v665 = vpack.c.b16 %v663, %v662
          %668 = vmatprep.subr.bf16.mxu0 0
          %669 = vmatpush1.bf16.msra.mxu0 0
          %670 = vmatprep.subr.bf16.mxu0 0
          %671 = vmatpush1.bf16.msra.mxu0 0
          %672 = vmatprep.subr.bf16.mxu0 0
          %673 = vmatpush1.bf16.msra.mxu0 0
          %674 = vmatprep.subr.bf16.mxu0 0
          %675 = vmatpush1.bf16.msra.mxu0 0
          %676 = vmatprep.subr.bf16.mxu0 0
          %677 = vmatpush1.bf16.msra.mxu0 0
          %678 = vmatprep.subr.bf16.mxu0 0
          %679 = vmatpush1.bf16.msra.mxu0 0
          %680 = vmatprep.subr.bf16.mxu0 0
          %681 = vmatpush1.bf16.msra.mxu0 %v665
          %682 = vmatprep.subr.bf16.mxu0 0
          %683 = vmatpush1.bf16.msra.mxu0 %v664
          %684 = vmatprep.subr.bf16.mxu0 0
          %685 = vmatpush2.bf16.msra.mxu0 0
          %686 = vmatprep.subr.bf16.mxu0 0
          %687 = vmatpush2.bf16.msra.mxu0 0
          %688 = vmatprep.subr.bf16.mxu0 0
          %689 = vmatpush2.bf16.msra.mxu0 0
          %690 = vmatprep.subr.bf16.mxu0 0
          %691 = vmatpush2.bf16.msra.mxu0 0
          %692 = vmatprep.subr.bf16.mxu0 0
          %693 = vmatpush2.bf16.msra.mxu0 0
          %694 = vmatprep.subr.bf16.mxu0 0
          %695 = vmatpush2.bf16.msra.mxu0 0
          %696 = vmatprep.subr.bf16.mxu0 0
          %697 = vmatpush2.bf16.msra.mxu0 0
          %698 = vmatprep.subr.bf16.mxu0 0
          %699 = vmatpush2.bf16.msra.mxu0 0
          %700 = vmatprep.mubr.bf16.mxu0 0
          %701 = vmatmul.mubr.bf16.gmra.mxu0 %v610
          %v702 = vpop.f32.mrf.mxu0
          %v703 = vadd.f32 0.0, %v702
          %v704 = vpop.f32.mrf.mxu0
          %v705 = vpop.f32.mrf.mxu0
          %v706 = vpop.f32.mrf.mxu0
          %707 = vdwg.mxu0
          %v708 = vpack.c.bf16 %v647, %v647
          %v709 = vpack.c.bf16 %v703, %v703
          %vm710 = vcmask 60416
          %711 = vst.msk [vmem:[#allocation2] sm:$0xf] %vm710, %v708
          %712 = vst.msk [vmem:[#allocation3] sm:$0xf] %vm710, %v709
          %v714 = vunpack.c.l.b16 %v708
          %v715 = vpack.c.b16 %v714, %v714
          %716 = vrot.lane.b32.xlu0 %v715, 120
          %v717 = vpop.permute.xlu0 %716
          %s719 = scalar_lea.vmem [#allocation2], 4
          %720 = vst.msk [vmem:[%s719] sm:$0xf] %vm710, %v717
          %v722 = vunpack.c.l.b16 %v709
          %v723 = vpack.c.b16 %v722, %v722
          %724 = vrot.lane.b32.xlu0 %v723, 120
          %v725 = vpop.permute.xlu0 %724
          %s727 = scalar_lea.vmem [#allocation3], 4
          %728 = vst.msk [vmem:[%s727] sm:$0xf] %vm710, %v725
          %729 = vrot.lane.b32.xlu0 %v715, 112
          %v730 = vpop.permute.xlu0 %729
          %s732 = scalar_lea.vmem [#allocation2], 8
          %733 = vst.msk [vmem:[%s732] sm:$0xf] %vm710, %v730
          %734 = vrot.lane.b32.xlu0 %v723, 112
          %v735 = vpop.permute.xlu0 %734
          %s737 = scalar_lea.vmem [#allocation3], 8
          %738 = vst.msk [vmem:[%s737] sm:$0xf] %vm710, %v735
          %739 = vrot.lane.b32.xlu0 %v715, 104
          %v740 = vpop.permute.xlu0 %739
          %s742 = scalar_lea.vmem [#allocation2], 12
          %743 = vst.msk [vmem:[%s742] sm:$0xf] %vm710, %v740
          %744 = vrot.lane.b32.xlu0 %v723, 104
          %v745 = vpop.permute.xlu0 %744
          %s747 = scalar_lea.vmem [#allocation3], 12
          %748 = vst.msk [vmem:[%s747] sm:$0xf] %vm710, %v745
        $region100: #{tpu_custom_call.1} parent=79 // pred_fallthru
          _
        %v749 = vld [vmem:[%s584] sm:$0xff]
        %v750 = vpack.c.bf16 %v749, %v749
        %v751 = vld [vmem:[%s2] sm:$0xf]
        %v752 = vld [vmem:[%s2 + $0x4] sm:$0xf]
        %v753 = vld [vmem:[%s2 + $0x8] sm:$0xf]
        %v754 = vld [vmem:[%s2 + $0xc] sm:$0xf]
        %v759 = vunpack.c.l.b16 %v751
        %v760 = vunpack.c.l.b16 %v752
        %v761 = vunpack.c.l.b16 %v753
        %v762 = vunpack.c.l.b16 %v754
        %v763 = vpack.c.b16 %v760, %v759
        %v764 = vpack.c.b16 %v762, %v761
        %vm767 = vcmask 261120
        %v769 = vsel %vm767, %v750, 0
        %771 = vmatprep.subr.bf16.mxu0 0
        %772 = vmatpush1.bf16.msra.mxu0 0
        %773 = vmatprep.subr.bf16.mxu0 0
        %774 = vmatpush1.bf16.msra.mxu0 0
        %775 = vmatprep.subr.bf16.mxu0 0
        %776 = vmatpush1.bf16.msra.mxu0 0
        %777 = vmatprep.subr.bf16.mxu0 0
        %778 = vmatpush1.bf16.msra.mxu0 0
        %779 = vmatprep.subr.bf16.mxu0 0
        %780 = vmatpush1.bf16.msra.mxu0 0
        %781 = vmatprep.subr.bf16.mxu0 0
        %782 = vmatpush1.bf16.msra.mxu0 0
        %783 = vmatprep.subr.bf16.mxu0 0
        %784 = vmatpush1.bf16.msra.mxu0 %v764
        %785 = vmatprep.subr.bf16.mxu0 0
        %786 = vmatpush1.bf16.msra.mxu0 %v763
        %787 = vmatprep.subr.bf16.mxu0 0
        %788 = vmatpush2.bf16.msra.mxu0 0
        %789 = vmatprep.subr.bf16.mxu0 0
        %790 = vmatpush2.bf16.msra.mxu0 0
        %791 = vmatprep.subr.bf16.mxu0 0
        %792 = vmatpush2.bf16.msra.mxu0 0
        %793 = vmatprep.subr.bf16.mxu0 0
        %794 = vmatpush2.bf16.msra.mxu0 0
        %795 = vmatprep.subr.bf16.mxu0 0
        %796 = vmatpush2.bf16.msra.mxu0 0
        %797 = vmatprep.subr.bf16.mxu0 0
        %798 = vmatpush2.bf16.msra.mxu0 0
        %799 = vmatprep.subr.bf16.mxu0 0
        %800 = vmatpush2.bf16.msra.mxu0 0
        %801 = vmatprep.subr.bf16.mxu0 0
        %802 = vmatpush2.bf16.msra.mxu0 0
        %803 = vmatprep.mubr.bf16.mxu0 0
        %804 = vmatmul.mubr.bf16.gmra.mxu0 %v769
        %v805 = vpop.f32.mrf.mxu0
        %v806 = vadd.f32 0.0, %v805
        %v807 = vpop.f32.mrf.mxu0
        %v808 = vpop.f32.mrf.mxu0
        %v809 = vpop.f32.mrf.mxu0
        %810 = vdwg.mxu0
        %v811 = vmul.f32 %v806, 0.35355338
        %v812 = vpack.c.bf16 %v811, %v811
        %v813 = vld [vmem:[#allocation2] sm:$0xf]
        %vm814 = vcmask 64512
        %v816 = vsel %vm814, %v812, 0
        %v819 = vsel %vm814, %v813, 0
        %821 = vmatprep.subr.bf16.mxu0 0
        %822 = vmatpush1.bf16.xpose.msra.mxu0 0
        %823 = vmatprep.subr.bf16.mxu0 0
        %824 = vmatpush1.bf16.xpose.msra.mxu0 0
        %825 = vmatprep.subr.bf16.mxu0 0
        %826 = vmatpush1.bf16.xpose.msra.mxu0 0
        %827 = vmatprep.subr.bf16.mxu0 0
        %828 = vmatpush1.bf16.xpose.msra.mxu0 0
        %829 = vmatprep.subr.bf16.mxu0 0
        %830 = vmatpush1.bf16.xpose.msra.mxu0 0
        %831 = vmatprep.subr.bf16.mxu0 0
        %832 = vmatpush1.bf16.xpose.msra.mxu0 0
        %833 = vmatprep.subr.bf16.mxu0 0
        %834 = vmatpush1.bf16.xpose.msra.mxu0 0
        %835 = vmatprep.subr.bf16.mxu0 0
        %836 = vmatpush1.bf16.xpose.msra.mxu0 %v819
        %837 = vmatprep.subr.bf16.mxu0 0
        %838 = vmatpush2.bf16.xpose.msra.mxu0 0
        %839 = vmatprep.subr.bf16.mxu0 0
        %840 = vmatpush2.bf16.xpose.msra.mxu0 0
        %841 = vmatprep.subr.bf16.mxu0 0
        %842 = vmatpush2.bf16.xpose.msra.mxu0 0
        %843 = vmatprep.subr.bf16.mxu0 0
        %844 = vmatpush2.bf16.xpose.msra.mxu0 0
        %845 = vmatprep.subr.bf16.mxu0 0
        %846 = vmatpush2.bf16.xpose.msra.mxu0 0
        %847 = vmatprep.subr.bf16.mxu0 0
        %848 = vmatpush2.bf16.xpose.msra.mxu0 0
        %849 = vmatprep.subr.bf16.mxu0 0
        %850 = vmatpush2.bf16.xpose.msra.mxu0 0
        %851 = vmatprep.subr.bf16.mxu0 0
        %852 = vmatpush2.bf16.xpose.msra.mxu0 0
        %853 = vmatprep.mubr.bf16.mxu0 0
        %854 = vmatmul.mubr.bf16.gmra.mxu0 %v816
        %v855 = vpop.f32.mrf.mxu0
        %v856 = vadd.f32 0.0, %v855
        %v857 = vpop.f32.mrf.mxu0
        %v858 = vpop.f32.mrf.mxu0
        %v859 = vpop.f32.mrf.mxu0
        %860 = vdwg.mxu0
        %v861 = vsel %vm814, %v856, -inf
        %862 = vmax.xlane.f32.xlu0 %v861
        %v863 = vpop.xlane.xlu0 %862
        %v864 = vsub.f32 %v856, %v863
        %v865 = vmul.f32 %v864, 1.442695
        %v866 = vpow.pop %v865
        %v867 = vsel %vm814, %v866, 0.0
        %868 = vadd.xlane.f32.xlu0 %v867
        %v869 = vpop.xlane.xlu0 %868
        %v870 = vrcp.pop %v869
        %v871 = vmul.f32 %v866, %v870
        %v872 = vpack.c.bf16 %v871, %v871
        %v873 = vld [vmem:[#allocation3] sm:$0xf]
        %v875 = vsel %vm814, %v872, 0
        %vm877 = vcmask 1043456
        %v879 = vsel %vm877, %v873, 0
        %881 = vmatprep.subr.bf16.mxu0 0
        %882 = vmatpush1.bf16.msra.mxu0 0
        %883 = vmatprep.subr.bf16.mxu0 0
        %884 = vmatpush1.bf16.msra.mxu0 0
        %885 = vmatprep.subr.bf16.mxu0 0
        %886 = vmatpush1.bf16.msra.mxu0 0
        %887 = vmatprep.subr.bf16.mxu0 0
        %888 = vmatpush1.bf16.msra.mxu0 0
        %889 = vmatprep.subr.bf16.mxu0 0
        %890 = vmatpush1.bf16.msra.mxu0 0
        %891 = vmatprep.subr.bf16.mxu0 0
        %892 = vmatpush1.bf16.msra.mxu0 0
        %893 = vmatprep.subr.bf16.mxu0 0
        %894 = vmatpush1.bf16.msra.mxu0 0
        %895 = vmatprep.subr.bf16.mxu0 0
        %896 = vmatpush1.bf16.msra.mxu0 %v879
        %897 = vmatprep.subr.bf16.mxu0 0
        %898 = vmatpush2.bf16.msra.mxu0 0
        %899 = vmatprep.subr.bf16.mxu0 0
        %900 = vmatpush2.bf16.msra.mxu0 0
        %901 = vmatprep.subr.bf16.mxu0 0
        %902 = vmatpush2.bf16.msra.mxu0 0
        %903 = vmatprep.subr.bf16.mxu0 0
        %904 = vmatpush2.bf16.msra.mxu0 0
        %905 = vmatprep.subr.bf16.mxu0 0
        %906 = vmatpush2.bf16.msra.mxu0 0
        %907 = vmatprep.subr.bf16.mxu0 0
        %908 = vmatpush2.bf16.msra.mxu0 0
        %909 = vmatprep.subr.bf16.mxu0 0
        %910 = vmatpush2.bf16.msra.mxu0 0
        %911 = vmatprep.subr.bf16.mxu0 0
        %912 = vmatpush2.bf16.msra.mxu0 0
        %913 = vmatprep.mubr.bf16.mxu0 0
        %914 = vmatmul.mubr.bf16.gmra.mxu0 %v875
        %v915 = vpop.f32.mrf.mxu0
        %v916 = vadd.f32 0.0, %v915
        %v917 = vpop.f32.mrf.mxu0
        %v918 = vpop.f32.mrf.mxu0
        %v919 = vpop.f32.mrf.mxu0
        %920 = vdwg.mxu0
        %s921 = scalar_lea.vmem [#allocation2], 4
        %v922 = vld [vmem:[%s921] sm:$0xf]
        %924 = vrot.lane.b32.xlu0 %v812, 120
        %v925 = vpop.permute.xlu0 %924
        %v927 = vsel %vm814, %v925, 0
        %v930 = vsel %vm814, %v922, 0
        %932 = vmatprep.subr.bf16.mxu0 0
        %933 = vmatpush1.bf16.xpose.msra.mxu0 0
        %934 = vmatprep.subr.bf16.mxu0 0
        %935 = vmatpush1.bf16.xpose.msra.mxu0 0
        %936 = vmatprep.subr.bf16.mxu0 0
        %937 = vmatpush1.bf16.xpose.msra.mxu0 0
        %938 = vmatprep.subr.bf16.mxu0 0
        %939 = vmatpush1.bf16.xpose.msra.mxu0 0
        %940 = vmatprep.subr.bf16.mxu0 0
        %941 = vmatpush1.bf16.xpose.msra.mxu0 0
        %942 = vmatprep.subr.bf16.mxu0 0
        %943 = vmatpush1.bf16.xpose.msra.mxu0 0
        %944 = vmatprep.subr.bf16.mxu0 0
        %945 = vmatpush1.bf16.xpose.msra.mxu0 0
        %946 = vmatprep.subr.bf16.mxu0 0
        %947 = vmatpush1.bf16.xpose.msra.mxu0 %v930
        %948 = vmatprep.subr.bf16.mxu0 0
        %949 = vmatpush2.bf16.xpose.msra.mxu0 0
        %950 = vmatprep.subr.bf16.mxu0 0
        %951 = vmatpush2.bf16.xpose.msra.mxu0 0
        %952 = vmatprep.subr.bf16.mxu0 0
        %953 = vmatpush2.bf16.xpose.msra.mxu0 0
        %954 = vmatprep.subr.bf16.mxu0 0
        %955 = vmatpush2.bf16.xpose.msra.mxu0 0
        %956 = vmatprep.subr.bf16.mxu0 0
        %957 = vmatpush2.bf16.xpose.msra.mxu0 0
        %958 = vmatprep.subr.bf16.mxu0 0
        %959 = vmatpush2.bf16.xpose.msra.mxu0 0
        %960 = vmatprep.subr.bf16.mxu0 0
        %961 = vmatpush2.bf16.xpose.msra.mxu0 0
        %962 = vmatprep.subr.bf16.mxu0 0
        %963 = vmatpush2.bf16.xpose.msra.mxu0 0
        %964 = vmatprep.mubr.bf16.mxu0 0
        %965 = vmatmul.mubr.bf16.gmra.mxu0 %v927
        %v966 = vpop.f32.mrf.mxu0
        %v967 = vadd.f32 0.0, %v966
        %v968 = vpop.f32.mrf.mxu0
        %v969 = vpop.f32.mrf.mxu0
        %v970 = vpop.f32.mrf.mxu0
        %971 = vdwg.mxu0
        %v972 = vsel %vm814, %v967, -inf
        %973 = vmax.xlane.f32.xlu0 %v972
        %v974 = vpop.xlane.xlu0 %973
        %v975 = vsub.f32 %v967, %v974
        %v976 = vmul.f32 %v975, 1.442695
        %v977 = vpow.pop %v976
        %v978 = vsel %vm814, %v977, 0.0
        %979 = vadd.xlane.f32.xlu0 %v978
        %v980 = vpop.xlane.xlu0 %979
        %v981 = vrcp.pop %v980
        %v982 = vmul.f32 %v977, %v981
        %v983 = vpack.c.bf16 %v982, %v982
        %s984 = scalar_lea.vmem [#allocation3], 4
        %v985 = vld [vmem:[%s984] sm:$0xf]
        %v987 = vsel %vm814, %v983, 0
        %v990 = vsel %vm877, %v985, 0
        %992 = vmatprep.subr.bf16.mxu0 0
        %993 = vmatpush1.bf16.msra.mxu0 0
        %994 = vmatprep.subr.bf16.mxu0 0
        %995 = vmatpush1.bf16.msra.mxu0 0
        %996 = vmatprep.subr.bf16.mxu0 0
        %997 = vmatpush1.bf16.msra.mxu0 0
        %998 = vmatprep.subr.bf16.mxu0 0
        %999 = vmatpush1.bf16.msra.mxu0 0
        %1000 = vmatprep.subr.bf16.mxu0 0
        %1001 = vmatpush1.bf16.msra.mxu0 0
        %1002 = vmatprep.subr.bf16.mxu0 0
        %1003 = vmatpush1.bf16.msra.mxu0 0
        %1004 = vmatprep.subr.bf16.mxu0 0
        %1005 = vmatpush1.bf16.msra.mxu0 0
        %1006 = vmatprep.subr.bf16.mxu0 0
        %1007 = vmatpush1.bf16.msra.mxu0 %v990
        %1008 = vmatprep.subr.bf16.mxu0 0
        %1009 = vmatpush2.bf16.msra.mxu0 0
        %1010 = vmatprep.subr.bf16.mxu0 0
        %1011 = vmatpush2.bf16.msra.mxu0 0
        %1012 = vmatprep.subr.bf16.mxu0 0
        %1013 = vmatpush2.bf16.msra.mxu0 0
        %1014 = vmatprep.subr.bf16.mxu0 0
        %1015 = vmatpush2.bf16.msra.mxu0 0
        %1016 = vmatprep.subr.bf16.mxu0 0
        %1017 = vmatpush2.bf16.msra.mxu0 0
        %1018 = vmatprep.subr.bf16.mxu0 0
        %1019 = vmatpush2.bf16.msra.mxu0 0
        %1020 = vmatprep.subr.bf16.mxu0 0
        %1021 = vmatpush2.bf16.msra.mxu0 0
        %1022 = vmatprep.subr.bf16.mxu0 0
        %1023 = vmatpush2.bf16.msra.mxu0 0
        %1024 = vmatprep.mubr.bf16.mxu0 0
        %1025 = vmatmul.mubr.bf16.gmra.mxu0 %v987
        %v1026 = vpop.f32.mrf.mxu0
        %v1027 = vadd.f32 0.0, %v1026
        %v1028 = vpop.f32.mrf.mxu0
        %v1029 = vpop.f32.mrf.mxu0
        %v1030 = vpop.f32.mrf.mxu0
        %1031 = vdwg.mxu0
        %s1032 = scalar_lea.vmem [#allocation2], 8
        %v1033 = vld [vmem:[%s1032] sm:$0xf]
        %1034 = vrot.lane.b32.xlu0 %v812, 112
        %v1035 = vpop.permute.xlu0 %1034
        %v1037 = vsel %vm814, %v1035, 0
        %v1040 = vsel %vm814, %v1033, 0
        %1042 = vmatprep.subr.bf16.mxu0 0
        %1043 = vmatpush1.bf16.xpose.msra.mxu0 0
        %1044 = vmatprep.subr.bf16.mxu0 0
        %1045 = vmatpush1.bf16.xpose.msra.mxu0 0
        %1046 = vmatprep.subr.bf16.mxu0 0
        %1047 = vmatpush1.bf16.xpose.msra.mxu0 0
        %1048 = vmatprep.subr.bf16.mxu0 0
        %1049 = vmatpush1.bf16.xpose.msra.mxu0 0
        %1050 = vmatprep.subr.bf16.mxu0 0
        %1051 = vmatpush1.bf16.xpose.msra.mxu0 0
        %1052 = vmatprep.subr.bf16.mxu0 0
        %1053 = vmatpush1.bf16.xpose.msra.mxu0 0
        %1054 = vmatprep.subr.bf16.mxu0 0
        %1055 = vmatpush1.bf16.xpose.msra.mxu0 0
        %1056 = vmatprep.subr.bf16.mxu0 0
        %1057 = vmatpush1.bf16.xpose.msra.mxu0 %v1040
        %1058 = vmatprep.subr.bf16.mxu0 0
        %1059 = vmatpush2.bf16.xpose.msra.mxu0 0
        %1060 = vmatprep.subr.bf16.mxu0 0
        %1061 = vmatpush2.bf16.xpose.msra.mxu0 0
        %1062 = vmatprep.subr.bf16.mxu0 0
        %1063 = vmatpush2.bf16.xpose.msra.mxu0 0
        %1064 = vmatprep.subr.bf16.mxu0 0
        %1065 = vmatpush2.bf16.xpose.msra.mxu0 0
        %1066 = vmatprep.subr.bf16.mxu0 0
        %1067 = vmatpush2.bf16.xpose.msra.mxu0 0
        %1068 = vmatprep.subr.bf16.mxu0 0
        %1069 = vmatpush2.bf16.xpose.msra.mxu0 0
        %1070 = vmatprep.subr.bf16.mxu0 0
        %1071 = vmatpush2.bf16.xpose.msra.mxu0 0
        %1072 = vmatprep.subr.bf16.mxu0 0
        %1073 = vmatpush2.bf16.xpose.msra.mxu0 0
        %1074 = vmatprep.mubr.bf16.mxu0 0
        %1075 = vmatmul.mubr.bf16.gmra.mxu0 %v1037
        %v1076 = vpop.f32.mrf.mxu0
        %v1077 = vadd.f32 0.0, %v1076
        %v1078 = vpop.f32.mrf.mxu0
        %v1079 = vpop.f32.mrf.mxu0
        %v1080 = vpop.f32.mrf.mxu0
        %1081 = vdwg.mxu0
        %v1082 = vsel %vm814, %v1077, -inf
        %1083 = vmax.xlane.f32.xlu0 %v1082
        %v1084 = vpop.xlane.xlu0 %1083
        %v1085 = vsub.f32 %v1077, %v1084
        %v1086 = vmul.f32 %v1085, 1.442695
        %v1087 = vpow.pop %v1086
        %v1088 = vsel %vm814, %v1087, 0.0
        %1089 = vadd.xlane.f32.xlu0 %v1088
        %v1090 = vpop.xlane.xlu0 %1089
        %v1091 = vrcp.pop %v1090
        %v1092 = vmul.f32 %v1087, %v1091
        %v1093 = vpack.c.bf16 %v1092, %v1092
        %s1094 = scalar_lea.vmem [#allocation3], 8
        %v1095 = vld [vmem:[%s1094] sm:$0xf]
        %v1097 = vsel %vm814, %v1093, 0
        %v1100 = vsel %vm877, %v1095, 0
        %1102 = vmatprep.subr.bf16.mxu0 0
        %1103 = vmatpush1.bf16.msra.mxu0 0
        %1104 = vmatprep.subr.bf16.mxu0 0
        %1105 = vmatpush1.bf16.msra.mxu0 0
        %1106 = vmatprep.subr.bf16.mxu0 0
        %1107 = vmatpush1.bf16.msra.mxu0 0
        %1108 = vmatprep.subr.bf16.mxu0 0
        %1109 = vmatpush1.bf16.msra.mxu0 0
        %1110 = vmatprep.subr.bf16.mxu0 0
        %1111 = vmatpush1.bf16.msra.mxu0 0
        %1112 = vmatprep.subr.bf16.mxu0 0
        %1113 = vmatpush1.bf16.msra.mxu0 0
        %1114 = vmatprep.subr.bf16.mxu0 0
        %1115 = vmatpush1.bf16.msra.mxu0 0
        %1116 = vmatprep.subr.bf16.mxu0 0
        %1117 = vmatpush1.bf16.msra.mxu0 %v1100
        %1118 = vmatprep.subr.bf16.mxu0 0
        %1119 = vmatpush2.bf16.msra.mxu0 0
        %1120 = vmatprep.subr.bf16.mxu0 0
        %1121 = vmatpush2.bf16.msra.mxu0 0
        %1122 = vmatprep.subr.bf16.mxu0 0
        %1123 = vmatpush2.bf16.msra.mxu0 0
        %1124 = vmatprep.subr.bf16.mxu0 0
        %1125 = vmatpush2.bf16.msra.mxu0 0
        %1126 = vmatprep.subr.bf16.mxu0 0
        %1127 = vmatpush2.bf16.msra.mxu0 0
        %1128 = vmatprep.subr.bf16.mxu0 0
        %1129 = vmatpush2.bf16.msra.mxu0 0
        %1130 = vmatprep.subr.bf16.mxu0 0
        %1131 = vmatpush2.bf16.msra.mxu0 0
        %1132 = vmatprep.subr.bf16.mxu0 0
        %1133 = vmatpush2.bf16.msra.mxu0 0
        %1134 = vmatprep.mubr.bf16.mxu0 0
        %1135 = vmatmul.mubr.bf16.gmra.mxu0 %v1097
        %v1136 = vpop.f32.mrf.mxu0
        %v1137 = vadd.f32 0.0, %v1136
        %v1138 = vpop.f32.mrf.mxu0
        %v1139 = vpop.f32.mrf.mxu0
        %v1140 = vpop.f32.mrf.mxu0
        %1141 = vdwg.mxu0
        %s1142 = scalar_lea.vmem [#allocation2], 12
        %v1143 = vld [vmem:[%s1142] sm:$0xf]
        %1144 = vrot.lane.b32.xlu0 %v812, 104
        %v1145 = vpop.permute.xlu0 %1144
        %v1147 = vsel %vm814, %v1145, 0
        %v1150 = vsel %vm814, %v1143, 0
        %1152 = vmatprep.subr.bf16.mxu0 0
        %1153 = vmatpush1.bf16.xpose.msra.mxu0 0
        %1154 = vmatprep.subr.bf16.mxu0 0
        %1155 = vmatpush1.bf16.xpose.msra.mxu0 0
        %1156 = vmatprep.subr.bf16.mxu0 0
        %1157 = vmatpush1.bf16.xpose.msra.mxu0 0
        %1158 = vmatprep.subr.bf16.mxu0 0
        %1159 = vmatpush1.bf16.xpose.msra.mxu0 0
        %1160 = vmatprep.subr.bf16.mxu0 0
        %1161 = vmatpush1.bf16.xpose.msra.mxu0 0
        %1162 = vmatprep.subr.bf16.mxu0 0
        %1163 = vmatpush1.bf16.xpose.msra.mxu0 0
        %1164 = vmatprep.subr.bf16.mxu0 0
        %1165 = vmatpush1.bf16.xpose.msra.mxu0 0
        %1166 = vmatprep.subr.bf16.mxu0 0
        %1167 = vmatpush1.bf16.xpose.msra.mxu0 %v1150
        %1168 = vmatprep.subr.bf16.mxu0 0
        %1169 = vmatpush2.bf16.xpose.msra.mxu0 0
        %1170 = vmatprep.subr.bf16.mxu0 0
        %1171 = vmatpush2.bf16.xpose.msra.mxu0 0
        %1172 = vmatprep.subr.bf16.mxu0 0
        %1173 = vmatpush2.bf16.xpose.msra.mxu0 0
        %1174 = vmatprep.subr.bf16.mxu0 0
        %1175 = vmatpush2.bf16.xpose.msra.mxu0 0
        %1176 = vmatprep.subr.bf16.mxu0 0
        %1177 = vmatpush2.bf16.xpose.msra.mxu0 0
        %1178 = vmatprep.subr.bf16.mxu0 0
        %1179 = vmatpush2.bf16.xpose.msra.mxu0 0
        %1180 = vmatprep.subr.bf16.mxu0 0
        %1181 = vmatpush2.bf16.xpose.msra.mxu0 0
        %1182 = vmatprep.subr.bf16.mxu0 0
        %1183 = vmatpush2.bf16.xpose.msra.mxu0 0
        %1184 = vmatprep.mubr.bf16.mxu0 0
        %1185 = vmatmul.mubr.bf16.gmra.mxu0 %v1147
        %v1186 = vpop.f32.mrf.mxu0
        %v1187 = vadd.f32 0.0, %v1186
        %v1188 = vpop.f32.mrf.mxu0
        %v1189 = vpop.f32.mrf.mxu0
        %v1190 = vpop.f32.mrf.mxu0
        %1191 = vdwg.mxu0
        %v1192 = vsel %vm814, %v1187, -inf
        %1193 = vmax.xlane.f32.xlu0 %v1192
        %v1194 = vpop.xlane.xlu0 %1193
        %v1195 = vsub.f32 %v1187, %v1194
        %v1196 = vmul.f32 %v1195, 1.442695
        %v1197 = vpow.pop %v1196
        %v1198 = vsel %vm814, %v1197, 0.0
        %1199 = vadd.xlane.f32.xlu0 %v1198
        %v1200 = vpop.xlane.xlu0 %1199
        %v1201 = vrcp.pop %v1200
        %v1202 = vmul.f32 %v1197, %v1201
        %v1203 = vpack.c.bf16 %v1202, %v1202
        %s1204 = scalar_lea.vmem [#allocation3], 12
        %v1205 = vld [vmem:[%s1204] sm:$0xf]
        %v1207 = vsel %vm814, %v1203, 0
        %v1210 = vsel %vm877, %v1205, 0
        %1212 = vmatprep.subr.bf16.mxu0 0
        %1213 = vmatpush1.bf16.msra.mxu0 0
        %1214 = vmatprep.subr.bf16.mxu0 0
        %1215 = vmatpush1.bf16.msra.mxu0 0
        %1216 = vmatprep.subr.bf16.mxu0 0
        %1217 = vmatpush1.bf16.msra.mxu0 0
        %1218 = vmatprep.subr.bf16.mxu0 0
        %1219 = vmatpush1.bf16.msra.mxu0 0
        %1220 = vmatprep.subr.bf16.mxu0 0
        %1221 = vmatpush1.bf16.msra.mxu0 0
        %1222 = vmatprep.subr.bf16.mxu0 0
        %1223 = vmatpush1.bf16.msra.mxu0 0
        %1224 = vmatprep.subr.bf16.mxu0 0
        %1225 = vmatpush1.bf16.msra.mxu0 0
        %1226 = vmatprep.subr.bf16.mxu0 0
        %1227 = vmatpush1.bf16.msra.mxu0 %v1210
        %1228 = vmatprep.subr.bf16.mxu0 0
        %1229 = vmatpush2.bf16.msra.mxu0 0
        %1230 = vmatprep.subr.bf16.mxu0 0
        %1231 = vmatpush2.bf16.msra.mxu0 0
        %1232 = vmatprep.subr.bf16.mxu0 0
        %1233 = vmatpush2.bf16.msra.mxu0 0
        %1234 = vmatprep.subr.bf16.mxu0 0
        %1235 = vmatpush2.bf16.msra.mxu0 0
        %1236 = vmatprep.subr.bf16.mxu0 0
        %1237 = vmatpush2.bf16.msra.mxu0 0
        %1238 = vmatprep.subr.bf16.mxu0 0
        %1239 = vmatpush2.bf16.msra.mxu0 0
        %1240 = vmatprep.subr.bf16.mxu0 0
        %1241 = vmatpush2.bf16.msra.mxu0 0
        %1242 = vmatprep.subr.bf16.mxu0 0
        %1243 = vmatpush2.bf16.msra.mxu0 0
        %1244 = vmatprep.mubr.bf16.mxu0 0
        %1245 = vmatmul.mubr.bf16.gmra.mxu0 %v1207
        %v1246 = vpop.f32.mrf.mxu0
        %v1247 = vadd.f32 0.0, %v1246
        %v1248 = vpop.f32.mrf.mxu0
        %v1249 = vpop.f32.mrf.mxu0
        %v1250 = vpop.f32.mrf.mxu0
        %1251 = vdwg.mxu0
        %1253 = vrot.lane.b32.xlu0 %v1027, 8
        %v1254 = vpop.permute.xlu0 %1253
        %1257 = vrot.lane.b32.xlu0 %v1137, 16
        %v1258 = vpop.permute.xlu0 %1257
        %1261 = vrot.lane.b32.xlu0 %v1247, 24
        %v1262 = vpop.permute.xlu0 %1261
        %v1264 = vsel %vm814, %v916, %v1254
        %vm1265 = vcmask 130048
        %v1266 = vsel %vm1265, %v1264, %v1258
        %vm1267 = vcmask 195584
        %v1268 = vsel %vm1267, %v1266, %v1262
        %v1269 = vpack.c.bf16 %v1268, %v1268
        %v1270 = vld [vmem:[#allocation4] sm:$0xf]
        %v1271 = vld [vmem:[#allocation4 + $0x4] sm:$0xf]
        %v1272 = vld [vmem:[#allocation4 + $0x8] sm:$0xf]
        %v1273 = vld [vmem:[#allocation4 + $0xc] sm:$0xf]
        %v1274 = vld [vmem:[#allocation7] sm:$0x1]
        %v1276 = vlaneseq
        %v1277 = vshrl.u32 %v1276, 7
        %v1278 = vsub.s32 0, %v1277
        %v1279 = vrot.slane %v1274, %v1278
        %v1285 = vunpack.c.l.b16 %v1270
        %v1286 = vunpack.c.l.b16 %v1271
        %v1287 = vunpack.c.l.b16 %v1272
        %v1288 = vunpack.c.l.b16 %v1273
        %v1289 = vpack.c.b16 %v1286, %v1285
        %v1290 = vpack.c.b16 %v1288, %v1287
        %v1294 = vsel %vm767, %v1269, 0
        %1296 = vmatprep.subr.bf16.mxu0 0
        %1297 = vmatpush1.bf16.msra.mxu0 0
        %1298 = vmatprep.subr.bf16.mxu0 0
        %1299 = vmatpush1.bf16.msra.mxu0 0
        %1300 = vmatprep.subr.bf16.mxu0 0
        %1301 = vmatpush1.bf16.msra.mxu0 0
        %1302 = vmatprep.subr.bf16.mxu0 0
        %1303 = vmatpush1.bf16.msra.mxu0 0
        %1304 = vmatprep.subr.bf16.mxu0 0
        %1305 = vmatpush1.bf16.msra.mxu0 0
        %1306 = vmatprep.subr.bf16.mxu0 0
        %1307 = vmatpush1.bf16.msra.mxu0 0
        %1308 = vmatprep.subr.bf16.mxu0 0
        %1309 = vmatpush1.bf16.msra.mxu0 %v1290
        %1310 = vmatprep.subr.bf16.mxu0 0
        %1311 = vmatpush1.bf16.msra.mxu0 %v1289
        %1312 = vmatprep.subr.bf16.mxu0 0
        %1313 = vmatpush2.bf16.msra.mxu0 0
        %1314 = vmatprep.subr.bf16.mxu0 0
        %1315 = vmatpush2.bf16.msra.mxu0 0
        %1316 = vmatprep.subr.bf16.mxu0 0
        %1317 = vmatpush2.bf16.msra.mxu0 0
        %1318 = vmatprep.subr.bf16.mxu0 0
        %1319 = vmatpush2.bf16.msra.mxu0 0
        %1320 = vmatprep.subr.bf16.mxu0 0
        %1321 = vmatpush2.bf16.msra.mxu0 0
        %1322 = vmatprep.subr.bf16.mxu0 0
        %1323 = vmatpush2.bf16.msra.mxu0 0
        %1324 = vmatprep.subr.bf16.mxu0 0
        %1325 = vmatpush2.bf16.msra.mxu0 0
        %1326 = vmatprep.subr.bf16.mxu0 0
        %1327 = vmatpush2.bf16.msra.mxu0 0
        %1328 = vmatprep.mubr.bf16.mxu0 0
        %1329 = vmatmul.mubr.bf16.gmra.mxu0 %v1294
        %v1330 = vpop.f32.mrf.mxu0
        %v1331 = vadd.f32 %v1279, %v1330
        %v1332 = vpop.f32.mrf.mxu0
        %v1333 = vpop.f32.mrf.mxu0
        %v1334 = vpop.f32.mrf.mxu0
        %1335 = vdwg.mxu0
        %v1336 = vadd.f32 %v1331, %v749
        %v1337 = vld [vmem:[#allocation9] sm:$0x1]
        %v1338 = vld [vmem:[#allocation10] sm:$0x1]
        %v1339 = vsel %vm767, %v1336, 0.0
        %1340 = vadd.xlane.f32.xlu0 %v1339
        %v1341 = vpop.xlane.xlu0 %1340
        %v1342 = vrcp.pop 32.0
        %v1343 = vmul.f32 %v1341, %v1342
        %v1344 = vsub.f32 %v1336, %v1343
        %v1345 = vmul.f32 %v1344, %v1344
        %v1346 = vsel %vm767, %v1345, 0.0
        %1347 = vadd.xlane.f32.xlu0 %v1346
        %v1348 = vpop.xlane.xlu0 %1347
        %v1349 = vmul.f32 %v1348, %v1342
        %v1350 = vadd.f32 %v1349, 1e-05
        %v1351 = vrsqrt.pop %v1350
        %v1352 = vmul.f32 %v1344, %v1351
        %v1354 = vlaneseq
        %v1355 = vshrl.u32 %v1354, 7
        %v1356 = vsub.s32 0, %v1355
        %v1357 = vrot.slane %v1337, %v1356
        %v1359 = vmul.f32 %v1352, %v1357
        %v1361 = vlaneseq
        %v1362 = vshrl.u32 %v1361, 7
        %v1363 = vsub.s32 0, %v1362
        %v1364 = vrot.slane %v1338, %v1363
        %v1366 = vadd.f32 %v1359, %v1364
        %v1367 = vpack.c.bf16 %v1366, %v1366
        %v1368 = vld [vmem:[%s9] sm:$0xf]
        %v1369 = vld [vmem:[%s9 + $0x4] sm:$0xf]
        %v1370 = vld [vmem:[%s9 + $0x8] sm:$0xf]
        %v1371 = vld [vmem:[%s9 + $0xc] sm:$0xf]
        %v1372 = vld [vmem:[%s10] sm:$0x1]
        %v1374 = vlaneseq
        %v1375 = vshrl.u32 %v1374, 7
        %v1376 = vsub.s32 0, %v1375
        %v1377 = vrot.slane %v1372, %v1376
        %v1383 = vunpack.c.l.b16 %v1368
        %v1384 = vunpack.c.l.b16 %v1369
        %v1385 = vunpack.c.l.b16 %v1370
        %v1386 = vunpack.c.l.b16 %v1371
        %v1387 = vpack.c.b16 %v1384, %v1383
        %v1388 = vpack.c.b16 %v1386, %v1385
        %v1392 = vsel %vm767, %v1367, 0
        %1394 = vmatprep.subr.bf16.mxu0 0
        %1395 = vmatpush1.bf16.msra.mxu0 0
        %1396 = vmatprep.subr.bf16.mxu0 0
        %1397 = vmatpush1.bf16.msra.mxu0 0
        %1398 = vmatprep.subr.bf16.mxu0 0
        %1399 = vmatpush1.bf16.msra.mxu0 0
        %1400 = vmatprep.subr.bf16.mxu0 0
        %1401 = vmatpush1.bf16.msra.mxu0 0
        %1402 = vmatprep.subr.bf16.mxu0 0
        %1403 = vmatpush1.bf16.msra.mxu0 0
        %1404 = vmatprep.subr.bf16.mxu0 0
        %1405 = vmatpush1.bf16.msra.mxu0 0
        %1406 = vmatprep.subr.bf16.mxu0 0
        %1407 = vmatpush1.bf16.msra.mxu0 %v1388
        %1408 = vmatprep.subr.bf16.mxu0 0
        %1409 = vmatpush1.bf16.msra.mxu0 %v1387
        %1410 = vmatprep.subr.bf16.mxu0 0
        %1411 = vmatpush2.bf16.msra.mxu0 0
        %1412 = vmatprep.subr.bf16.mxu0 0
        %1413 = vmatpush2.bf16.msra.mxu0 0
        %1414 = vmatprep.subr.bf16.mxu0 0
        %1415 = vmatpush2.bf16.msra.mxu0 0
        %1416 = vmatprep.subr.bf16.mxu0 0
        %1417 = vmatpush2.bf16.msra.mxu0 0
        %1418 = vmatprep.subr.bf16.mxu0 0
        %1419 = vmatpush2.bf16.msra.mxu0 0
        %1420 = vmatprep.subr.bf16.mxu0 0
        %1421 = vmatpush2.bf16.msra.mxu0 0
        %1422 = vmatprep.subr.bf16.mxu0 0
        %1423 = vmatpush2.bf16.msra.mxu0 0
        %1424 = vmatprep.subr.bf16.mxu0 0
        %1425 = vmatpush2.bf16.msra.mxu0 0
        %1426 = vmatprep.mubr.bf16.mxu0 0
        %1427 = vmatmul.mubr.bf16.gmra.mxu0 %v1392
        %v1428 = vpop.f32.mrf.mxu0
        %v1429 = vadd.f32 %v1377, %v1428
        %v1430 = vpop.f32.mrf.mxu0
        %v1431 = vpop.f32.mrf.mxu0
        %v1432 = vpop.f32.mrf.mxu0
        %1433 = vdwg.mxu0
        %v1434 = vmax.f32 %v1429, 0.0
        %v1435 = vpack.c.bf16 %v1434, %v1434
        %v1436 = vld [vmem:[%s11] sm:$0xf]
        %v1437 = vld [vmem:[%s11 + $0x4] sm:$0xf]
        %v1438 = vld [vmem:[%s11 + $0x8] sm:$0xf]
        %v1439 = vld [vmem:[%s11 + $0xc] sm:$0xf]
        %v1440 = vld [vmem:[%s11 + $0x10] sm:$0xf]
        %v1441 = vld [vmem:[%s11 + $0x14] sm:$0xf]
        %v1442 = vld [vmem:[%s11 + $0x18] sm:$0xf]
        %v1443 = vld [vmem:[%s11 + $0x1c] sm:$0xf]
        %v1444 = vld [vmem:[%s11 + $0x20] sm:$0xf]
        %v1445 = vld [vmem:[%s11 + $0x24] sm:$0xf]
        %v1446 = vld [vmem:[%s11 + $0x28] sm:$0xf]
        %v1447 = vld [vmem:[%s11 + $0x2c] sm:$0xf]
        %v1448 = vld [vmem:[%s11 + $0x30] sm:$0xf]
        %v1449 = vld [vmem:[%s11 + $0x34] sm:$0xf]
        %v1450 = vld [vmem:[%s11 + $0x38] sm:$0xf]
        %v1451 = vld [vmem:[%s11 + $0x3c] sm:$0xf]
        %v1452 = vld [vmem:[%s12] sm:$0x1]
        %v1454 = vlaneseq
        %v1455 = vshrl.u32 %v1454, 7
        %v1456 = vsub.s32 0, %v1455
        %v1457 = vrot.slane %v1452, %v1456
        %v1475 = vunpack.c.l.b16 %v1436
        %v1476 = vunpack.c.l.b16 %v1437
        %v1477 = vunpack.c.l.b16 %v1438
        %v1478 = vunpack.c.l.b16 %v1439
        %v1479 = vunpack.c.l.b16 %v1440
        %v1480 = vunpack.c.l.b16 %v1441
        %v1481 = vunpack.c.l.b16 %v1442
        %v1482 = vunpack.c.l.b16 %v1443
        %v1483 = vunpack.c.l.b16 %v1444
        %v1484 = vunpack.c.l.b16 %v1445
        %v1485 = vunpack.c.l.b16 %v1446
        %v1486 = vunpack.c.l.b16 %v1447
        %v1487 = vunpack.c.l.b16 %v1448
        %v1488 = vunpack.c.l.b16 %v1449
        %v1489 = vunpack.c.l.b16 %v1450
        %v1490 = vunpack.c.l.b16 %v1451
        %v1491 = vpack.c.b16 %v1476, %v1475
        %v1492 = vpack.c.b16 %v1478, %v1477
        %v1493 = vpack.c.b16 %v1480, %v1479
        %v1494 = vpack.c.b16 %v1482, %v1481
        %v1495 = vpack.c.b16 %v1484, %v1483
        %v1496 = vpack.c.b16 %v1486, %v1485
        %v1497 = vpack.c.b16 %v1488, %v1487
        %v1498 = vpack.c.b16 %v1490, %v1489
        %1507 = vmatprep.subr.bf16.mxu0 0
        %1508 = vmatpush1.bf16.msra.mxu0 %v1498
        %1509 = vmatprep.subr.bf16.mxu0 0
        %1510 = vmatpush1.bf16.msra.mxu0 %v1497
        %1511 = vmatprep.subr.bf16.mxu0 0
        %1512 = vmatpush1.bf16.msra.mxu0 %v1496
        %1513 = vmatprep.subr.bf16.mxu0 0
        %1514 = vmatpush1.bf16.msra.mxu0 %v1495
        %1515 = vmatprep.subr.bf16.mxu0 0
        %1516 = vmatpush1.bf16.msra.mxu0 %v1494
        %1517 = vmatprep.subr.bf16.mxu0 0
        %1518 = vmatpush1.bf16.msra.mxu0 %v1493
        %1519 = vmatprep.subr.bf16.mxu0 0
        %1520 = vmatpush1.bf16.msra.mxu0 %v1492
        %1521 = vmatprep.subr.bf16.mxu0 0
        %1522 = vmatpush1.bf16.msra.mxu0 %v1491
        %1523 = vmatprep.subr.bf16.mxu0 0
        %1524 = vmatpush2.bf16.msra.mxu0 0
        %1525 = vmatprep.subr.bf16.mxu0 0
        %1526 = vmatpush2.bf16.msra.mxu0 0
        %1527 = vmatprep.subr.bf16.mxu0 0
        %1528 = vmatpush2.bf16.msra.mxu0 0
        %1529 = vmatprep.subr.bf16.mxu0 0
        %1530 = vmatpush2.bf16.msra.mxu0 0
        %1531 = vmatprep.subr.bf16.mxu0 0
        %1532 = vmatpush2.bf16.msra.mxu0 0
        %1533 = vmatprep.subr.bf16.mxu0 0
        %1534 = vmatpush2.bf16.msra.mxu0 0
        %1535 = vmatprep.subr.bf16.mxu0 0
        %1536 = vmatpush2.bf16.msra.mxu0 0
        %1537 = vmatprep.subr.bf16.mxu0 0
        %1538 = vmatpush2.bf16.msra.mxu0 0
        %1539 = vmatprep.mubr.bf16.mxu0 0
        %1540 = vmatmul.mubr.bf16.gmra.mxu0 %v1435
        %v1541 = vpop.f32.mrf.mxu0
        %v1542 = vadd.f32 %v1457, %v1541
        %v1543 = vpop.f32.mrf.mxu0
        %v1544 = vpop.f32.mrf.mxu0
        %v1545 = vpop.f32.mrf.mxu0
        %1546 = vdwg.mxu0
        %v1547 = vadd.f32 %v1542, %v1366
        %v1548 = vld [vmem:[%s13] sm:$0x1]
        %v1549 = vld [vmem:[%s14] sm:$0x1]
        %v1550 = vsel %vm767, %v1547, 0.0
        %1551 = vadd.xlane.f32.xlu0 %v1550
        %v1552 = vpop.xlane.xlu0 %1551
        %v1553 = vmul.f32 %v1552, %v1342
        %v1554 = vsub.f32 %v1547, %v1553
        %v1555 = vmul.f32 %v1554, %v1554
        %v1556 = vsel %vm767, %v1555, 0.0
        %1557 = vadd.xlane.f32.xlu0 %v1556
        %v1558 = vpop.xlane.xlu0 %1557
        %v1559 = vmul.f32 %v1558, %v1342
        %v1560 = vadd.f32 %v1559, 1e-05
        %v1561 = vrsqrt.pop %v1560
        %v1562 = vmul.f32 %v1554, %v1561
        %v1564 = vlaneseq
        %v1565 = vshrl.u32 %v1564, 7
        %v1566 = vsub.s32 0, %v1565
        %v1567 = vrot.slane %v1548, %v1566
        %v1569 = vmul.f32 %v1562, %v1567
        %v1571 = vlaneseq
        %v1572 = vshrl.u32 %v1571, 7
        %v1573 = vsub.s32 0, %v1572
        %v1574 = vrot.slane %v1549, %v1573
        %v1576 = vadd.f32 %v1569, %v1574
        %1577 = vst.msk [vmem:[%s573] sm:$0xff] %vm767, %v1576
        %s1578 = sand.u32 %s381, 1
        %s1579 = scalar_lea.sflag [#allocation6], %s1578
        %s1580 = sand.u32 %s381, 1
        %s1581 = smul.addr %s1580, 8
        %s1582 = scalar_lea.vmem [#allocation12], %s1581
        // Predicated region
        $region101: #{tpu_custom_call.1} parent=79 // pred_check
          %p1583 = pneg %p391
        $region102: #{tpu_custom_call.1} parent=79 // pred_check_branch
          %1585 = sbr.rel (%p1583) target = $region104
        $region103: #{tpu_custom_call.1} parent=79 // pred_region
          %s1587 = ssub.s32 128, 128
          %1588 = vsyncadd %s1579, %s1587
          %s1589 = sadd.s32 %s37, %s36
          %s1590 = smul.addr %s1589, 128
          %s1591 = scalar_lea.hbm %s15, %s1590
          %s1593 = sshll.u32 %s1582, 4
          %s1594 = int_to_ptr.vmem [resolvable:$true] %s1593
          %1596 = dma.vmem_to_hbm [thread:$0]  %s1594, 128, %s1591, %s1579
        $region104: #{tpu_custom_call.1} parent=79 // pred_fallthru
          _
      $region80: #{tpu_custom_call.1} parent=5 // pred_fallthru
        _
      %p1597 = scmp.le.s32.totalorder 2, %s27
      // Predicated region
      $region105: #{tpu_custom_call.1} parent=5 // pred_check
        %p1598 = pneg %p1597
      $region106: #{tpu_custom_call.1} parent=5 // pred_check_branch
        %1600 = sbr.rel (%p1598) target = $region108
      $region107: #{tpu_custom_call.1} parent=5 // pred_region
        %s1601 = ssub.s32 %s27, 2
        // Predicated region
        $region109: #{tpu_custom_call.1} parent=107 // pred_check
          %p1602 = pneg %p397
        $region110: #{tpu_custom_call.1} parent=107 // pred_check_branch
          %1604 = sbr.rel (%p1602) target = $region112
        $region111: #{tpu_custom_call.1} parent=107 // pred_region
          %s1605 = sand.u32 %s382, 1
          %s1606 = scalar_lea.sflag [#allocation6], %s1605
          %s1607 = sand.u32 %s382, 1
          %s1608 = smul.addr %s1607, 8
          %s1609 = scalar_lea.vmem [#allocation12], %s1608
          %1610 = dma.done %s1606, 128
        $region112: #{tpu_custom_call.1} parent=107 // pred_fallthru
          _
      $region108: #{tpu_custom_call.1} parent=5 // pred_fallthru
        _
    $region6: #{tpu_custom_call.1} parent=1 // loop_footer
      %s31 = sadd.s32 1, %s27
    $region7: #{tpu_custom_call.1} parent=1 // loop_footer_branch
      %26 = sbr.rel target = $region3
    $region8: #{tpu_custom_call.1} parent=1 // loop_exit
      _
    %1611 = vsyncpa [#allocation5], 1
    %s1612 = scalar_lea.sflag [#allocation5], 1
    %1613 = vsyncpa %s1612, 1
    %1614 = vsyncpa [#allocation8], 1
    %1615 = vsyncpa [#allocation11], 1
    %1616 = vsyncpa [#allocation6], 1
    %s1617 = scalar_lea.sflag [#allocation6], 1
    %1618 = vsyncpa %s1617, 1

</llo_original>
